<compile_context>
chip_gen: v7x
topology: tpu7x:2x2x1
jax: 0.10.0
libtpu: 0.0.40
codegen_flags: <defaults>
</compile_context>

<pallas_src>
import functools

import numpy as np
import jax
import jax.numpy as jnp
from jax.experimental import pallas as pl
from jax.experimental.pallas import tpu as pltpu


def _bilinear_upsample_matrix(size):
    """(2*size, size) 1-D interpolation matrix matching
    PyTorch F.interpolate(scale_factor=2, mode='bilinear', align_corners=False)."""
    out = 2 * size
    j = np.arange(out, dtype=np.float64)
    src = np.maximum((j + 0.5) * 0.5 - 0.5, 0.0)
    i0 = np.minimum(np.floor(src).astype(np.int64), size - 1)
    i1 = np.minimum(i0 + 1, size - 1)
    lam = src - i0
    m = np.zeros((out, size), dtype=np.float32)
    m[np.arange(out), i0] += (1.0 - lam)
    m[np.arange(out), i1] += lam
    return m


def _kron_upsample_matrix_T(h, w):
    """(H*W, 4*H*W) matrix KT with up_flat = x_flat @ KT, where x_flat is the row-major
    flattened (H, W) image and up_flat the row-major (2H, 2W) bilinear x2 upsample
    (align_corners=False).  Entries are products of {0, 0.25, 0.75, 1.0} -> exact in
    bfloat16."""
    k = np.kron(_bilinear_upsample_matrix(h), _bilinear_upsample_matrix(w))  # (4HW, HW)
    return np.ascontiguousarray(k.T)


def _conv_tap_masks(h2, w2):
    """(9, 1, 4*H*W) f32 {0,1} masks that zero the out-of-bounds source pixels of the
    zero-padded 3x3 convolution on the row-major flattened (2H, 2W) grid.
    Tap index k = dy*3 + dx; source pixel of output (r, c) is (r+dy-1, c+dx-1)."""
    r = np.arange(h2)[:, None]
    c = np.arange(w2)[None, :]
    masks = np.empty((9, 1, h2 * w2), np.float32)
    for dy in range(3):
        for dx in range(3):
            ok = np.ones((h2, w2), bool)
            if dy == 0:
                ok &= (r >= 1)
            if dy == 2:
                ok &= (r <= h2 - 2)
            if dx == 0:
                ok &= (c >= 1)
            if dx == 2:
                ok &= (c <= w2 - 2)
            masks[dy * 3 + dx, 0, :] = ok.reshape(-1).astype(np.float32)
    return masks


def _upsample_conv_kernel(x_ref, kt_ref, w_ref, b_ref, m_ref, o_ref, *,
                          w2, negative_slope):
    """One (image, Cout-block) grid step.

    x_ref : (1, Cin, H*W)        f32   input image, NCHW with (H,W) flattened
    kt_ref: (H*W, 4*H*W)         bf16  Kronecker bilinear-upsample matrix
    w_ref : (9, Cout_blk, Cin)   bf16  conv taps, k = dy*3 + dx
    b_ref : (Cout_blk, 1)        f32   conv bias
    m_ref : (9, 1, 4*H*W)        f32   boundary masks for the zero-padded conv
    o_ref : (1, Cout_blk, 4*H*W)       output block (lane-dense spatial axis)
    """
    l = kt_ref.shape[1]
    cout = w_ref.shape[1]

    # ---- bilinear x2 upsample: one lane-dense MXU matmul (Cin,HW)@(HW,4HW) --------
    x = x_ref[0].astype(jnp.bfloat16)                    # in-kernel cast, VPU slack
    up = jnp.dot(x, kt_ref[...], preferred_element_type=jnp.float32)   # (Cin, L) f32

    # ---- 3x3 conv: 9 channel-contracting matmuls (Cout,Cin)@(Cin,4HW) -------------
    # Each tap is a pltpu.roll of the flat upsampled image (dx -> +/-1 lane,
    # dy -> +/-2W lanes) times a precomputed {0,1} boundary mask; no halo scratch,
    # no unaligned slice/reshape relayout copies.
    acc = jnp.zeros((cout, l), jnp.float32)
    for dy in range(3):
        for dx in range(3):
            k = dy * 3 + dx
            off = (dy - 1) * w2 + (dx - 1)               # flat source offset
            if off == 0:
                patch = up                               # center tap: no shift, no mask
            else:
                patch = pltpu.roll(up, (-off) % l, axis=1) * m_ref[k]
            # TODO(synk): roll/mask in bf16 (halves XLU/VMEM traffic) and chunk the
            #             lane axis with an unrolled fori_loop so acc stays near
            #             vregs/MRB; left out to keep the lowering bulletproof.
            acc = acc + jnp.dot(w_ref[k], patch.astype(jnp.bfloat16),
                                preferred_element_type=jnp.float32)

    # ---- bias + LeakyReLU (f32 epilogue), single cast at the store -----------------
    y = acc + b_ref[...]
    y = jnp.where(y >= 0, y, negative_slope * y)
    o_ref[0] = y.astype(o_ref.dtype)


def _pick_cout_block(cout, max_block=256):
    blk = min(cout, max_block)
    while cout % blk:
        blk -= 1
    return blk


def upsampling_forward(x, conv_w, conv_b, *, negative_slope=0.01, cout_block=None):
    """UpSampling forward: LeakyReLU(Conv3x3_pad1(bilinear_x2(x))).

    x: (N, C, H, W) float32. conv_w: (C//2, C, 3, 3). conv_b: (C//2,).
    Returns (N, C//2, 2H, 2W)."""
    n, cin, h, w = x.shape
    cout = conv_w.shape[0]
    h2, w2 = 2 * h, 2 * w
    hw, l = h * w, h2 * w2

    if cout_block is None:
        cout_block = _pick_cout_block(cout)
    n_cout_blocks = cout // cout_block

    # One-time parameter / constant prep (bf16 MXU operands; interpolation and mask
    # constants built on host).
    kt = jnp.asarray(_kron_upsample_matrix_T(h, w), dtype=jnp.bfloat16)      # (HW, 4HW)
    masks = jnp.asarray(_conv_tap_masks(h2, w2))                             # (9,1,4HW)
    w9 = jnp.transpose(conv_w, (2, 3, 0, 1)).reshape(9, cout, cin).astype(jnp.bfloat16)
    b2 = conv_b.astype(jnp.float32).reshape(cout, 1)
    x_in = x.reshape(n, cin, hw)            # free view: lane-dense spatial axis

    kernel = functools.partial(_upsample_conv_kernel, w2=w2,
                               negative_slope=float(negative_slope))

    out_flat = pl.pallas_call(
        kernel,
        out_shape=jax.ShapeDtypeStruct((n, cout, l), x.dtype),
        grid_spec=pltpu.PrefetchScalarGridSpec(
            num_scalar_prefetch=0,
            grid=(n, n_cout_blocks),
            in_specs=[
                pl.BlockSpec((1, cin, hw), lambda i, j: (i, 0, 0)),
                pl.BlockSpec((hw, l), lambda i, j: (0, 0)),
                pl.BlockSpec((9, cout_block, cin), lambda i, j: (0, j, 0)),
                pl.BlockSpec((cout_block, 1), lambda i, j: (j, 0)),
                pl.BlockSpec((9, 1, l), lambda i, j: (0, 0, 0)),
            ],
            out_specs=pl.BlockSpec((1, cout_block, l), lambda i, j: (i, j, 0)),
        ),
        compiler_params=pltpu.CompilerParams(
            # Both axes independent: shard over the two TensorCores on v7x
            # (neutral on single-TC v5e / v6e).
            dimension_semantics=("parallel", "parallel"),
            # Explicit budget with headroom under v7x's 64 MiB physical VMEM
            # (also above the 16/32 MiB scoped defaults on v5e/v6e for C=512).
            vmem_limit_bytes=48 * 1024 * 1024,
        ),
    )(x_in, kt, w9, b2, masks)

    return out_flat.reshape(n, cout, h2, w2)           # free view back to NCHW


def _reference(x, conv_w, conv_b, negative_slope=0.01):
    """Pure-JAX reference: PyTorch-style bilinear x2 (align_corners=False) +
    3x3 conv (pad 1) + bias + LeakyReLU, all in f32."""
    _, _, h, w = x.shape

    def src_idx(size):
        j = jnp.arange(2 * size, dtype=jnp.float32)
        s = jnp.maximum((j + 0.5) * 0.5 - 0.5, 0.0)
        i0 = jnp.clip(jnp.floor(s).astype(jnp.int32), 0, size - 1)
        i1 = jnp.minimum(i0 + 1, size - 1)
        lam = s - i0.astype(jnp.float32)
        return i0, i1, lam

    h0, h1, lh = src_idx(h)
    w0, w1, lw = src_idx(w)
    up = (x[:, :, h0, :] * (1 - lh)[None, None, :, None]
          + x[:, :, h1, :] * lh[None, None, :, None])
    up = up[:, :, :, w0] * (1 - lw) + up[:, :, :, w1] * lw

    y = jax.lax.conv_general_dilated(
        up, conv_w, window_strides=(1, 1), padding=((1, 1), (1, 1)),
        dimension_numbers=('NCHW', 'OIHW', 'NCHW'),
        precision=jax.lax.Precision.HIGHEST)
    y = y + conv_b[None, :, None, None]
    return jnp.where(y >= 0, y, negative_slope * y)


if __name__ == "__main__":
    key = jax.random.PRNGKey(0)
    # Module default is C=512; small demo shapes consistent with the forward.
    N, C, H, W = 2, 32, 16, 16
    Cout = C // 2

    kx, kw, kb = jax.random.split(key, 3)
    x = jax.random.normal(kx, (N, C, H, W), jnp.float32)
    conv_w = jax.random.normal(kw, (Cout, C, 3, 3), jnp.float32) * 0.1
    conv_b = jax.random.normal(kb, (Cout,), jnp.float32) * 0.1

    # Round x / conv_w to bf16-representable values so the kernel's bf16 MXU operands
    # introduce minimal extra error vs. the f32 reference (accumulation is f32).
    x = x.astype(jnp.bfloat16).astype(jnp.float32)
    conv_w = conv_w.astype(jnp.bfloat16).astype(jnp.float32)

    out = jax.block_until_ready(upsampling_forward(x, conv_w, conv_b))
    ref = _reference(x, conv_w, conv_b)

    assert out.shape == (N, Cout, 2 * H, 2 * W), out.shape
    max_err = float(jnp.max(jnp.abs(out - ref)))
    assert jnp.allclose(out, ref, atol=5e-2, rtol=5e-2), max_err
    print("KERNEL_OK")
</pallas_src>

<mosaic_0001>
module attributes {stable_mosaic.version = 11 : i64} {
  func.func @_upsample_conv_kernel(%arg0: i32, %arg1: i32, %arg2: memref<1x32x256xf32, #tpu.memory_space<vmem>>, %arg3: memref<256x1024xbf16, #tpu.memory_space<vmem>>, %arg4: memref<9x16x32xbf16, #tpu.memory_space<vmem>>, %arg5: memref<16x1xf32, #tpu.memory_space<vmem>>, %arg6: memref<9x1x1024xf32, #tpu.memory_space<vmem>>, %arg7: memref<1x16x1024xf32, #tpu.memory_space<vmem>>) attributes {dimension_semantics = [#tpu.dimension_semantics<parallel>, #tpu.dimension_semantics<parallel>], iteration_bounds = array<i64: 2, 1>, scalar_prefetch = 0 : i64, scratch_operands = 0 : i64, tpu.core_type = #tpu.core_type<tc>, window_params = [{transform_indices = @transform_0, window_bounds = array<i64: 1, 32, 256>}, {pipeline_mode = #tpu.pipeline_mode<synchronous>, transform_indices = @transform_1, window_bounds = array<i64: 256, 1024>}, {transform_indices = @transform_2, window_bounds = array<i64: 9, 16, 32>}, {transform_indices = @transform_3, window_bounds = array<i64: 16, 1>}, {pipeline_mode = #tpu.pipeline_mode<synchronous>, transform_indices = @transform_4, window_bounds = array<i64: 9, 1, 1024>}, {transform_indices = @transform_5, window_bounds = array<i64: 1, 16, 1024>}]} {
    %c0 = arith.constant 0 : index
    %c0_0 = arith.constant 0 : index
    %c0_1 = arith.constant 0 : index
    %0 = vector.load %arg2[%c0, %c0_0, %c0_1] : memref<1x32x256xf32, #tpu.memory_space<vmem>>, vector<1x32x256xf32>
    %1 = vector.shape_cast %0 : vector<1x32x256xf32> to vector<32x256xf32>
    %2 = arith.truncf %1 : vector<32x256xf32> to vector<32x256xbf16>
    %c0_2 = arith.constant 0 : index
    %c0_3 = arith.constant 0 : index
    %3 = vector.load %arg3[%c0_2, %c0_3] : memref<256x1024xbf16, #tpu.memory_space<vmem>>, vector<256x1024xbf16>
    %cst = arith.constant dense<0.000000e+00> : vector<32x1024xf32>
    %4 = tpu.matmul %2, %3, %cst {dimension_numbers = #tpu.dot_dimension_numbers<[1], [0], [0], [1], [0, 0, 1, 1], [], []>} : vector<32x256xbf16>, vector<256x1024xbf16>, vector<32x1024xf32> -> vector<32x1024xf32>
    %cst_4 = arith.constant 0.000000e+00 : f32
    %5 = vector.broadcast %cst_4 : f32 to vector<16x1024xf32>
    %c33_i32 = arith.constant 33 : i32
    %6 = tpu.dynamic_rotate %4 by %c33_i32 dim 1 : vector<32x1024xf32>, i32 -> vector<32x1024xf32>
    %c0_5 = arith.constant 0 : index
    %c0_6 = arith.constant 0 : index
    %c0_7 = arith.constant 0 : index
    %7 = vector.load %arg6[%c0_5, %c0_6, %c0_7] : memref<9x1x1024xf32, #tpu.memory_space<vmem>>, vector<1x1x1024xf32>
    %8 = vector.shape_cast %7 : vector<1x1x1024xf32> to vector<1x1024xf32>
    %9 = vector.broadcast %8 : vector<1x1024xf32> to vector<32x1024xf32>
    %10 = arith.mulf %6, %9 : vector<32x1024xf32>
    %c0_8 = arith.constant 0 : index
    %c0_9 = arith.constant 0 : index
    %c0_10 = arith.constant 0 : index
    %11 = vector.load %arg4[%c0_8, %c0_9, %c0_10] : memref<9x16x32xbf16, #tpu.memory_space<vmem>>, vector<1x16x32xbf16>
    %12 = vector.shape_cast %11 : vector<1x16x32xbf16> to vector<16x32xbf16>
    %13 = arith.truncf %10 : vector<32x1024xf32> to vector<32x1024xbf16>
    %cst_11 = arith.constant dense<0.000000e+00> : vector<16x1024xf32>
    %14 = tpu.matmul %12, %13, %cst_11 {dimension_numbers = #tpu.dot_dimension_numbers<[1], [0], [0], [1], [0, 0, 1, 1], [], []>} : vector<16x32xbf16>, vector<32x1024xbf16>, vector<16x1024xf32> -> vector<16x1024xf32>
    %15 = arith.addf %5, %14 : vector<16x1024xf32>
    %c32_i32 = arith.constant 32 : i32
    %16 = tpu.dynamic_rotate %4 by %c32_i32 dim 1 : vector<32x1024xf32>, i32 -> vector<32x1024xf32>
    %c1 = arith.constant 1 : index
    %c0_12 = arith.constant 0 : index
    %c0_13 = arith.constant 0 : index
    %17 = vector.load %arg6[%c1, %c0_12, %c0_13] : memref<9x1x1024xf32, #tpu.memory_space<vmem>>, vector<1x1x1024xf32>
    %18 = vector.shape_cast %17 : vector<1x1x1024xf32> to vector<1x1024xf32>
    %19 = vector.broadcast %18 : vector<1x1024xf32> to vector<32x1024xf32>
    %20 = arith.mulf %16, %19 : vector<32x1024xf32>
    %c1_14 = arith.constant 1 : index
    %c0_15 = arith.constant 0 : index
    %c0_16 = arith.constant 0 : index
    %21 = vector.load %arg4[%c1_14, %c0_15, %c0_16] : memref<9x16x32xbf16, #tpu.memory_space<vmem>>, vector<1x16x32xbf16>
    %22 = vector.shape_cast %21 : vector<1x16x32xbf16> to vector<16x32xbf16>
    %23 = arith.truncf %20 : vector<32x1024xf32> to vector<32x1024xbf16>
    %cst_17 = arith.constant dense<0.000000e+00> : vector<16x1024xf32>
    %24 = tpu.matmul %22, %23, %cst_17 {dimension_numbers = #tpu.dot_dimension_numbers<[1], [0], [0], [1], [0, 0, 1, 1], [], []>} : vector<16x32xbf16>, vector<32x1024xbf16>, vector<16x1024xf32> -> vector<16x1024xf32>
    %25 = arith.addf %15, %24 : vector<16x1024xf32>
    %c31_i32 = arith.constant 31 : i32
    %26 = tpu.dynamic_rotate %4 by %c31_i32 dim 1 : vector<32x1024xf32>, i32 -> vector<32x1024xf32>
    %c2 = arith.constant 2 : index
    %c0_18 = arith.constant 0 : index
    %c0_19 = arith.constant 0 : index
    %27 = vector.load %arg6[%c2, %c0_18, %c0_19] : memref<9x1x1024xf32, #tpu.memory_space<vmem>>, vector<1x1x1024xf32>
    %28 = vector.shape_cast %27 : vector<1x1x1024xf32> to vector<1x1024xf32>
    %29 = vector.broadcast %28 : vector<1x1024xf32> to vector<32x1024xf32>
    %30 = arith.mulf %26, %29 : vector<32x1024xf32>
    %c2_20 = arith.constant 2 : index
    %c0_21 = arith.constant 0 : index
    %c0_22 = arith.constant 0 : index
    %31 = vector.load %arg4[%c2_20, %c0_21, %c0_22] : memref<9x16x32xbf16, #tpu.memory_space<vmem>>, vector<1x16x32xbf16>
    %32 = vector.shape_cast %31 : vector<1x16x32xbf16> to vector<16x32xbf16>
    %33 = arith.truncf %30 : vector<32x1024xf32> to vector<32x1024xbf16>
    %cst_23 = arith.constant dense<0.000000e+00> : vector<16x1024xf32>
    %34 = tpu.matmul %32, %33, %cst_23 {dimension_numbers = #tpu.dot_dimension_numbers<[1], [0], [0], [1], [0, 0, 1, 1], [], []>} : vector<16x32xbf16>, vector<32x1024xbf16>, vector<16x1024xf32> -> vector<16x1024xf32>
    %35 = arith.addf %25, %34 : vector<16x1024xf32>
    %c1_i32 = arith.constant 1 : i32
    %36 = tpu.dynamic_rotate %4 by %c1_i32 dim 1 : vector<32x1024xf32>, i32 -> vector<32x1024xf32>
    %c3 = arith.constant 3 : index
    %c0_24 = arith.constant 0 : index
    %c0_25 = arith.constant 0 : index
    %37 = vector.load %arg6[%c3, %c0_24, %c0_25] : memref<9x1x1024xf32, #tpu.memory_space<vmem>>, vector<1x1x1024xf32>
    %38 = vector.shape_cast %37 : vector<1x1x1024xf32> to vector<1x1024xf32>
    %39 = vector.broadcast %38 : vector<1x1024xf32> to vector<32x1024xf32>
    %40 = arith.mulf %36, %39 : vector<32x1024xf32>
    %c3_26 = arith.constant 3 : index
    %c0_27 = arith.constant 0 : index
    %c0_28 = arith.constant 0 : index
    %41 = vector.load %arg4[%c3_26, %c0_27, %c0_28] : memref<9x16x32xbf16, #tpu.memory_space<vmem>>, vector<1x16x32xbf16>
    %42 = vector.shape_cast %41 : vector<1x16x32xbf16> to vector<16x32xbf16>
    %43 = arith.truncf %40 : vector<32x1024xf32> to vector<32x1024xbf16>
    %cst_29 = arith.constant dense<0.000000e+00> : vector<16x1024xf32>
    %44 = tpu.matmul %42, %43, %cst_29 {dimension_numbers = #tpu.dot_dimension_numbers<[1], [0], [0], [1], [0, 0, 1, 1], [], []>} : vector<16x32xbf16>, vector<32x1024xbf16>, vector<16x1024xf32> -> vector<16x1024xf32>
    %45 = arith.addf %35, %44 : vector<16x1024xf32>
    %c4 = arith.constant 4 : index
    %c0_30 = arith.constant 0 : index
    %c0_31 = arith.constant 0 : index
    %46 = vector.load %arg4[%c4, %c0_30, %c0_31] : memref<9x16x32xbf16, #tpu.memory_space<vmem>>, vector<1x16x32xbf16>
    %47 = vector.shape_cast %46 : vector<1x16x32xbf16> to vector<16x32xbf16>
    %48 = arith.truncf %4 : vector<32x1024xf32> to vector<32x1024xbf16>
    %cst_32 = arith.constant dense<0.000000e+00> : vector<16x1024xf32>
    %49 = tpu.matmul %47, %48, %cst_32 {dimension_numbers = #tpu.dot_dimension_numbers<[1], [0], [0], [1], [0, 0, 1, 1], [], []>} : vector<16x32xbf16>, vector<32x1024xbf16>, vector<16x1024xf32> -> vector<16x1024xf32>
    %50 = arith.addf %45, %49 : vector<16x1024xf32>
    %c1023_i32 = arith.constant 1023 : i32
    %51 = tpu.dynamic_rotate %4 by %c1023_i32 dim 1 : vector<32x1024xf32>, i32 -> vector<32x1024xf32>
    %c5 = arith.constant 5 : index
    %c0_33 = arith.constant 0 : index
    %c0_34 = arith.constant 0 : index
    %52 = vector.load %arg6[%c5, %c0_33, %c0_34] : memref<9x1x1024xf32, #tpu.memory_space<vmem>>, vector<1x1x1024xf32>
    %53 = vector.shape_cast %52 : vector<1x1x1024xf32> to vector<1x1024xf32>
    %54 = vector.broadcast %53 : vector<1x1024xf32> to vector<32x1024xf32>
    %55 = arith.mulf %51, %54 : vector<32x1024xf32>
    %c5_35 = arith.constant 5 : index
    %c0_36 = arith.constant 0 : index
    %c0_37 = arith.constant 0 : index
    %56 = vector.load %arg4[%c5_35, %c0_36, %c0_37] : memref<9x16x32xbf16, #tpu.memory_space<vmem>>, vector<1x16x32xbf16>
    %57 = vector.shape_cast %56 : vector<1x16x32xbf16> to vector<16x32xbf16>
    %58 = arith.truncf %55 : vector<32x1024xf32> to vector<32x1024xbf16>
    %cst_38 = arith.constant dense<0.000000e+00> : vector<16x1024xf32>
    %59 = tpu.matmul %57, %58, %cst_38 {dimension_numbers = #tpu.dot_dimension_numbers<[1], [0], [0], [1], [0, 0, 1, 1], [], []>} : vector<16x32xbf16>, vector<32x1024xbf16>, vector<16x1024xf32> -> vector<16x1024xf32>
    %60 = arith.addf %50, %59 : vector<16x1024xf32>
    %c993_i32 = arith.constant 993 : i32
    %61 = tpu.dynamic_rotate %4 by %c993_i32 dim 1 : vector<32x1024xf32>, i32 -> vector<32x1024xf32>
    %c6 = arith.constant 6 : index
    %c0_39 = arith.constant 0 : index
    %c0_40 = arith.constant 0 : index
    %62 = vector.load %arg6[%c6, %c0_39, %c0_40] : memref<9x1x1024xf32, #tpu.memory_space<vmem>>, vector<1x1x1024xf32>
    %63 = vector.shape_cast %62 : vector<1x1x1024xf32> to vector<1x1024xf32>
    %64 = vector.broadcast %63 : vector<1x1024xf32> to vector<32x1024xf32>
    %65 = arith.mulf %61, %64 : vector<32x1024xf32>
    %c6_41 = arith.constant 6 : index
    %c0_42 = arith.constant 0 : index
    %c0_43 = arith.constant 0 : index
    %66 = vector.load %arg4[%c6_41, %c0_42, %c0_43] : memref<9x16x32xbf16, #tpu.memory_space<vmem>>, vector<1x16x32xbf16>
    %67 = vector.shape_cast %66 : vector<1x16x32xbf16> to vector<16x32xbf16>
    %68 = arith.truncf %65 : vector<32x1024xf32> to vector<32x1024xbf16>
    %cst_44 = arith.constant dense<0.000000e+00> : vector<16x1024xf32>
    %69 = tpu.matmul %67, %68, %cst_44 {dimension_numbers = #tpu.dot_dimension_numbers<[1], [0], [0], [1], [0, 0, 1, 1], [], []>} : vector<16x32xbf16>, vector<32x1024xbf16>, vector<16x1024xf32> -> vector<16x1024xf32>
    %70 = arith.addf %60, %69 : vector<16x1024xf32>
    %c992_i32 = arith.constant 992 : i32
    %71 = tpu.dynamic_rotate %4 by %c992_i32 dim 1 : vector<32x1024xf32>, i32 -> vector<32x1024xf32>
    %c7 = arith.constant 7 : index
    %c0_45 = arith.constant 0 : index
    %c0_46 = arith.constant 0 : index
    %72 = vector.load %arg6[%c7, %c0_45, %c0_46] : memref<9x1x1024xf32, #tpu.memory_space<vmem>>, vector<1x1x1024xf32>
    %73 = vector.shape_cast %72 : vector<1x1x1024xf32> to vector<1x1024xf32>
    %74 = vector.broadcast %73 : vector<1x1024xf32> to vector<32x1024xf32>
    %75 = arith.mulf %71, %74 : vector<32x1024xf32>
    %c7_47 = arith.constant 7 : index
    %c0_48 = arith.constant 0 : index
    %c0_49 = arith.constant 0 : index
    %76 = vector.load %arg4[%c7_47, %c0_48, %c0_49] : memref<9x16x32xbf16, #tpu.memory_space<vmem>>, vector<1x16x32xbf16>
    %77 = vector.shape_cast %76 : vector<1x16x32xbf16> to vector<16x32xbf16>
    %78 = arith.truncf %75 : vector<32x1024xf32> to vector<32x1024xbf16>
    %cst_50 = arith.constant dense<0.000000e+00> : vector<16x1024xf32>
    %79 = tpu.matmul %77, %78, %cst_50 {dimension_numbers = #tpu.dot_dimension_numbers<[1], [0], [0], [1], [0, 0, 1, 1], [], []>} : vector<16x32xbf16>, vector<32x1024xbf16>, vector<16x1024xf32> -> vector<16x1024xf32>
    %80 = arith.addf %70, %79 : vector<16x1024xf32>
    %c991_i32 = arith.constant 991 : i32
    %81 = tpu.dynamic_rotate %4 by %c991_i32 dim 1 : vector<32x1024xf32>, i32 -> vector<32x1024xf32>
    %c8 = arith.constant 8 : index
    %c0_51 = arith.constant 0 : index
    %c0_52 = arith.constant 0 : index
    %82 = vector.load %arg6[%c8, %c0_51, %c0_52] : memref<9x1x1024xf32, #tpu.memory_space<vmem>>, vector<1x1x1024xf32>
    %83 = vector.shape_cast %82 : vector<1x1x1024xf32> to vector<1x1024xf32>
    %84 = vector.broadcast %83 : vector<1x1024xf32> to vector<32x1024xf32>
    %85 = arith.mulf %81, %84 : vector<32x1024xf32>
    %c8_53 = arith.constant 8 : index
    %c0_54 = arith.constant 0 : index
    %c0_55 = arith.constant 0 : index
    %86 = vector.load %arg4[%c8_53, %c0_54, %c0_55] : memref<9x16x32xbf16, #tpu.memory_space<vmem>>, vector<1x16x32xbf16>
    %87 = vector.shape_cast %86 : vector<1x16x32xbf16> to vector<16x32xbf16>
    %88 = arith.truncf %85 : vector<32x1024xf32> to vector<32x1024xbf16>
    %cst_56 = arith.constant dense<0.000000e+00> : vector<16x1024xf32>
    %89 = tpu.matmul %87, %88, %cst_56 {dimension_numbers = #tpu.dot_dimension_numbers<[1], [0], [0], [1], [0, 0, 1, 1], [], []>} : vector<16x32xbf16>, vector<32x1024xbf16>, vector<16x1024xf32> -> vector<16x1024xf32>
    %90 = arith.addf %80, %89 : vector<16x1024xf32>
    %c0_57 = arith.constant 0 : index
    %c0_58 = arith.constant 0 : index
    %91 = vector.load %arg5[%c0_57, %c0_58] : memref<16x1xf32, #tpu.memory_space<vmem>>, vector<16x1xf32>
    %92 = vector.broadcast %91 : vector<16x1xf32> to vector<16x1024xf32>
    %93 = arith.addf %90, %92 : vector<16x1024xf32>
    %cst_59 = arith.constant 0.000000e+00 : f32
    %94 = vector.broadcast %cst_59 : f32 to vector<16x1024xf32>
    %95 = arith.cmpf oge, %93, %94 : vector<16x1024xf32>
    %cst_60 = arith.constant 0.00999999977 : f32
    %96 = vector.broadcast %cst_60 : f32 to vector<16x1024xf32>
    %97 = arith.mulf %96, %93 : vector<16x1024xf32>
    %98 = arith.select %95, %93, %97 : vector<16x1024xi1>, vector<16x1024xf32>
    %c0_61 = arith.constant 0 : index
    %c0_62 = arith.constant 0 : index
    %c0_63 = arith.constant 0 : index
    %99 = vector.load %arg7[%c0_61, %c0_62, %c0_63] : memref<1x16x1024xf32, #tpu.memory_space<vmem>>, vector<1x16x1024xf32>
    %100 = vector.shape_cast %99 : vector<1x16x1024xf32> to vector<16x1024xf32>
    %101 = vector.shape_cast %98 : vector<16x1024xf32> to vector<1x16x1024xf32>
    tpu.vector_store %arg7[%c0_61, %c0_62, %c0_63], %101 {strides = array<i32>} : memref<1x16x1024xf32, #tpu.memory_space<vmem>>, vector<1x16x1024xf32>,
    return
  }
  func.func @transform_0(%arg0: i32, %arg1: i32) -> (i32, i32, i32) {
    %c0_i32 = arith.constant 0 : i32
    %c0_i32_0 = arith.constant 0 : i32
    %c0_i32_1 = arith.constant 0 : i32
    return %arg0, %c0_i32, %c0_i32_0 : i32, i32, i32
  }
  func.func @transform_1(%arg0: i32, %arg1: i32) -> (i32, i32) {
    %c0_i32 = arith.constant 0 : i32
    %c0_i32_0 = arith.constant 0 : i32
    %c0_i32_1 = arith.constant 0 : i32
    return %c0_i32, %c0_i32_0 : i32, i32
  }
  func.func @transform_2(%arg0: i32, %arg1: i32) -> (i32, i32, i32) {
    %c0_i32 = arith.constant 0 : i32
    %c0_i32_0 = arith.constant 0 : i32
    %c0_i32_1 = arith.constant 0 : i32
    return %c0_i32, %arg1, %c0_i32_0 : i32, i32, i32
  }
  func.func @transform_3(%arg0: i32, %arg1: i32) -> (i32, i32) {
    %c0_i32 = arith.constant 0 : i32
    %c0_i32_0 = arith.constant 0 : i32
    return %arg1, %c0_i32 : i32, i32
  }
  func.func @transform_4(%arg0: i32, %arg1: i32) -> (i32, i32, i32) {
    %c0_i32 = arith.constant 0 : i32
    %c0_i32_0 = arith.constant 0 : i32
    %c0_i32_1 = arith.constant 0 : i32
    %c0_i32_2 = arith.constant 0 : i32
    return %c0_i32, %c0_i32_0, %c0_i32_1 : i32, i32, i32
  }
  func.func @transform_5(%arg0: i32, %arg1: i32) -> (i32, i32, i32) {
    %c0_i32 = arith.constant 0 : i32
    %c0_i32_0 = arith.constant 0 : i32
    return %arg0, %arg1, %c0_i32 : i32, i32, i32
  }
}

</mosaic_0001>

<llo_original>
// kernel: tpu_custom_call.1
$region0: #{tpu_custom_call.1}
  #allocation0 [shape = 'u32[]', space=smem, size = 0x4, offset = 0x4, fixed_abs, tag = 'smem constant byte address 0x4 - core index']
  #allocation1 [shape = 'u32[144,128]{1,0:T(1,128)}', space=vmem, size = 0x12000, scoped, tag = 'internal scratch']
  %s0 = inlined_call_operand.hbm [shape: f32[2,32,256], index: 0, kind: input, shape index: {}]
  %s1 = inlined_call_operand.hbm [shape: bf16[256,1024], index: 1, kind: input, shape index: {}]
  %s2 = inlined_call_operand.hbm [shape: bf16[9,16,32], index: 2, kind: input, shape index: {}]
  %s3 = inlined_call_operand.vmem [shape: f32[16,1], index: 3, kind: input, shape index: {}]
  %s4 = inlined_call_operand.hbm [shape: f32[9,1,1024], index: 4, kind: input, shape index: {}]
  %s5 = inlined_call_operand.hbm [shape: f32[2,16,1024], index: 5, kind: output, shape index: {}]
  %s6 = sld [smem:[#allocation0]]
  $region69: #{tpu_custom_call.1} parent=0
    _
  %s8 = ssub.s32 1, %s6
  %s9 = scalar_select 0, %s8, %s6
  $region1: #{tpu_custom_call.1} parent=0
    #allocation2 [shape = 'u8[65536]{0}', space=vmem, size = 0x10000, scoped, tag = 'input window, operand 0']
    #allocation3 [shape = 's32[2]{0}', space=sflag, size = 0x8, scoped, tag = 'scoped memory for tpu_custom_call.1']
    #allocation4 [shape = 's32[2]{0}', space=sflag, size = 0x8, scoped, tag = 'scoped memory for tpu_custom_call.1']
    #allocation5 [shape = 'u8[524288]{0}', space=vmem, size = 0x80000, scoped, tag = 'input window, operand 1, single buffered']
    #allocation6 [shape = 's32[1]{0}', space=sflag, size = 0x4, scoped, tag = 'scoped memory for tpu_custom_call.1']
    #allocation7 [shape = 'u8[36864]{0}', space=vmem, size = 0x9000, scoped, tag = 'input window, operand 2, single buffered']
    #allocation8 [shape = 'u8[36864]{0}', space=vmem, size = 0x9000, scoped, tag = 'input window, operand 4, single buffered']
    #allocation9 [shape = 's32[1]{0}', space=sflag, size = 0x4, scoped, tag = 'scoped memory for tpu_custom_call.1']
    #allocation10 [shape = 'u8[131072]{0}', space=vmem, size = 0x20000, scoped, tag = 'output window, operand 0']
    %10 = vsyncpa [#allocation3], 0
    %s11 = scalar_lea.sflag [#allocation3], 1
    %12 = vsyncpa %s11, 0
    %13 = vsyncpa [#allocation6], 0
    %14 = vsyncpa [#allocation9], 0
    %15 = vsyncpa [#allocation4], 0
    %s16 = scalar_lea.sflag [#allocation4], 1
    %17 = vsyncpa %s16, 0
    loop: start=0, step=1, limit=4
    $region2: #{tpu_custom_call.1} parent=1 // loop_pre_header
      _
    $region3: #{tpu_custom_call.1} parent=1 // loop_header
      %s19 = sphi 0, %s23
      %p20 = scmp.ge.s32.totalorder %s19, 4
      %s26 = sphi 0, %s38
      %s27 = sphi 0, %s34
      %s28 = sphi 0, %s26
      %s29 = sphi 0, %s27
      %s30 = sphi 0, %s28
      %s31 = sphi 0, %s29
      %s41 = sphi 0, %s43
      %s44 = sphi 0, %s41
      %s45 = sphi 0, %s44
      %s61 = sphi 0, %s45
      %s65 = sphi 0, %s65
      %s67 = sphi 0, %s65
      %s68 = sphi 0, %s67
      %s82 = sphi 0, %s68
      %s88 = sphi 0, %s90
      %s91 = sphi 0, %s88
      %s92 = sphi 0, %s91
      %s108 = sphi 0, %s92
      %s114 = sphi 0, %s116
      %s117 = sphi 0, %s114
      %s118 = sphi 0, %s117
      %s134 = sphi 0, %s118
      %s138 = sphi 0, %s138
      %s140 = sphi 0, %s138
      %s141 = sphi 0, %s140
      %s155 = sphi 0, %s141
      %s163 = sphi 0, %s165
      %s166 = sphi 0, %s163
      %s167 = sphi 0, %s166
      %s183 = sphi 0, %s167
    $region4: #{tpu_custom_call.1} parent=1 // loop_header_branch
      %22 = sbr.rel (%p20) target = $region8
    $region5: #{tpu_custom_call.1} parent=1 // loop_body
      %s24 = ssub.s32 %s19, 1
      %s25 = ssub.s32 %s19, 2
      %s32 = sadd.s32 1, %s27
      %p33 = scmp.ge.s32.totalorder %s32, 1
      %s34 = scalar_select %p33, 0, %s32
      %s35 = sadd.s32 1, %s26
      %s36 = scalar_select %p33, %s35, %s26
      %p37 = scmp.ge.s32.totalorder %s36, 2
      %s38 = scalar_select %p37, 0, %s36
      %s39 = ssub.s32 %s26, %s38
      %p40 = scmp.eq.s32.totalorder %s39, 0
      %s42 = sadd.s32 %s41, 1
      %s43 = scalar_select %p40, %s41, %s42
      %p46 = pneg %p40
      %p47 = scmp.eq.s32.totalorder %s19, 1
      %p48 = por %p46, %p47
      %p49 = scmp.ne.s32.totalorder %s41, %s44
      %p50 = scmp.eq.s32.totalorder %s19, 0
      %p51 = por %p49, %p50
      %p52 = scmp.ne.s32.totalorder %s41, %s44
      %p53 = scmp.eq.s32.totalorder %s24, 1
      %p54 = por %p52, %p53
      %p55 = scmp.ne.s32.totalorder %s44, %s45
      %p56 = scmp.eq.s32.totalorder %s24, 0
      %p57 = por %p55, %p56
      %p58 = scmp.ne.s32.totalorder %s44, %s45
      %p59 = scmp.eq.s32.totalorder %s25, 1
      %p60 = por %p58, %p59
      %p62 = scmp.ne.s32.totalorder %s45, %s61
      %p63 = scmp.eq.s32.totalorder %s25, 0
      %p64 = por %p62, %p63
      %s66 = sadd.s32 %s65, 1
      %p69 = scmp.eq.s32.totalorder %s19, 1
      %p70 = scmp.ne.s32.totalorder %s65, %s67
      %p71 = scmp.eq.s32.totalorder %s19, 0
      %p72 = por %p70, %p71
      %p73 = scmp.ne.s32.totalorder %s65, %s67
      %p74 = scmp.eq.s32.totalorder %s24, 1
      %p75 = por %p73, %p74
      %p76 = scmp.ne.s32.totalorder %s67, %s68
      %p77 = scmp.eq.s32.totalorder %s24, 0
      %p78 = por %p76, %p77
      %p79 = scmp.ne.s32.totalorder %s67, %s68
      %p80 = scmp.eq.s32.totalorder %s25, 1
      %p81 = por %p79, %p80
      %p83 = scmp.ne.s32.totalorder %s68, %s82
      %p84 = scmp.eq.s32.totalorder %s25, 0
      %p85 = por %p83, %p84
      %s86 = ssub.s32 %s27, %s34
      %p87 = scmp.eq.s32.totalorder %s86, 0
      %s89 = sadd.s32 %s88, 1
      %s90 = scalar_select %p87, %s88, %s89
      %p93 = pneg %p87
      %p94 = scmp.eq.s32.totalorder %s19, 1
      %p95 = por %p93, %p94
      %p96 = scmp.ne.s32.totalorder %s88, %s91
      %p97 = scmp.eq.s32.totalorder %s19, 0
      %p98 = por %p96, %p97
      %p99 = scmp.ne.s32.totalorder %s88, %s91
      %p100 = scmp.eq.s32.totalorder %s24, 1
      %p101 = por %p99, %p100
      %p102 = scmp.ne.s32.totalorder %s91, %s92
      %p103 = scmp.eq.s32.totalorder %s24, 0
      %p104 = por %p102, %p103
      %p105 = scmp.ne.s32.totalorder %s91, %s92
      %p106 = scmp.eq.s32.totalorder %s25, 1
      %p107 = por %p105, %p106
      %p109 = scmp.ne.s32.totalorder %s92, %s108
      %p110 = scmp.eq.s32.totalorder %s25, 0
      %p111 = por %p109, %p110
      %s112 = ssub.s32 %s27, %s34
      %p113 = scmp.eq.s32.totalorder %s112, 0
      %s115 = sadd.s32 %s114, 1
      %s116 = scalar_select %p113, %s114, %s115
      %p119 = pneg %p113
      %p120 = scmp.eq.s32.totalorder %s19, 1
      %p121 = por %p119, %p120
      %p122 = scmp.ne.s32.totalorder %s114, %s117
      %p123 = scmp.eq.s32.totalorder %s19, 0
      %p124 = por %p122, %p123
      %p125 = scmp.ne.s32.totalorder %s114, %s117
      %p126 = scmp.eq.s32.totalorder %s24, 1
      %p127 = por %p125, %p126
      %p128 = scmp.ne.s32.totalorder %s117, %s118
      %p129 = scmp.eq.s32.totalorder %s24, 0
      %p130 = por %p128, %p129
      %p131 = scmp.ne.s32.totalorder %s117, %s118
      %p132 = scmp.eq.s32.totalorder %s25, 1
      %p133 = por %p131, %p132
      %p135 = scmp.ne.s32.totalorder %s118, %s134
      %p136 = scmp.eq.s32.totalorder %s25, 0
      %p137 = por %p135, %p136
      %s139 = sadd.s32 %s138, 1
      %p142 = scmp.eq.s32.totalorder %s19, 1
      %p143 = scmp.ne.s32.totalorder %s138, %s140
      %p144 = scmp.eq.s32.totalorder %s19, 0
      %p145 = por %p143, %p144
      %p146 = scmp.ne.s32.totalorder %s138, %s140
      %p147 = scmp.eq.s32.totalorder %s24, 1
      %p148 = por %p146, %p147
      %p149 = scmp.ne.s32.totalorder %s140, %s141
      %p150 = scmp.eq.s32.totalorder %s24, 0
      %p151 = por %p149, %p150
      %p152 = scmp.ne.s32.totalorder %s140, %s141
      %p153 = scmp.eq.s32.totalorder %s25, 1
      %p154 = por %p152, %p153
      %p156 = scmp.ne.s32.totalorder %s141, %s155
      %p157 = scmp.eq.s32.totalorder %s25, 0
      %p158 = por %p156, %p157
      %s159 = ssub.s32 %s26, %s38
      %s160 = ssub.s32 %s27, %s34
      %s161 = sor.u32 %s159, %s160
      %p162 = scmp.eq.s32.totalorder %s161, 0
      %s164 = sadd.s32 %s163, 1
      %s165 = scalar_select %p162, %s163, %s164
      %p168 = pneg %p162
      %p169 = scmp.eq.s32.totalorder %s19, 1
      %p170 = por %p168, %p169
      %p171 = scmp.ne.s32.totalorder %s163, %s166
      %p172 = scmp.eq.s32.totalorder %s19, 0
      %p173 = por %p171, %p172
      %p174 = scmp.ne.s32.totalorder %s163, %s166
      %p175 = scmp.eq.s32.totalorder %s24, 1
      %p176 = por %p174, %p175
      %p177 = scmp.ne.s32.totalorder %s166, %s167
      %p178 = scmp.eq.s32.totalorder %s24, 0
      %p179 = por %p177, %p178
      %p180 = scmp.ne.s32.totalorder %s166, %s167
      %p181 = scmp.eq.s32.totalorder %s25, 1
      %p182 = por %p180, %p181
      %p184 = scmp.ne.s32.totalorder %s167, %s183
      %p185 = scmp.eq.s32.totalorder %s25, 0
      %p186 = por %p184, %p185
      %p187 = scmp.le.s32.totalorder 1, %s19
      %p188 = scmp.lt.s32.totalorder %s19, 3
      %p189 = pnand %p187, %p188
      %p190 = pneg %p189
      // Predicated region
      $region9: #{tpu_custom_call.1} parent=5 // pred_check
        _
      $region10: #{tpu_custom_call.1} parent=5 // pred_check_branch
        %192 = sbr.rel (%p189) target = $region12
      $region11: #{tpu_custom_call.1} parent=5 // pred_region
        %s193 = ssub.s32 %s19, 1
        // Predicated region
        $region13: #{tpu_custom_call.1} parent=11 // pred_check
          %p194 = pneg %p78
        $region14: #{tpu_custom_call.1} parent=11 // pred_check_branch
          %196 = sbr.rel (%p194) target = $region16
        $region15: #{tpu_custom_call.1} parent=11 // pred_region
          %s198 = ssub.s32 16384, 16384
          %199 = vsyncadd [#allocation6], %s198
          %s200 = sshll.u32 [#allocation5], 4
          %s201 = int_to_ptr.vmem [resolvable:$true] %s200
          %206 = dma.hbm_to_vmem [thread:$0]  %s1, 16384, %s201, [#allocation6], 512, 512, 32
        $region16: #{tpu_custom_call.1} parent=11 // pred_fallthru
          _
        // Predicated region
        $region17: #{tpu_custom_call.1} parent=11 // pred_check
          %p207 = pneg %p104
        $region18: #{tpu_custom_call.1} parent=11 // pred_check_branch
          %209 = sbr.rel (%p207) target = $region20
        $region19: #{tpu_custom_call.1} parent=11 // pred_region
          %s210 = smul.u32 2, %s29
          %s212 = ssub.s32 1152, 1152
          %213 = vsyncadd [#allocation6], %s212
          %s214 = smul.addr %s210, 64
          %s215 = scalar_lea.hbm %s2, %s214
          %s216 = sshll.u32 [#allocation7], 4
          %s217 = int_to_ptr.vmem [resolvable:$true] %s216
          %222 = dma.hbm_to_vmem [thread:$0]  %s215, 1152, %s217, [#allocation6], 64, 64, 4
        $region20: #{tpu_custom_call.1} parent=11 // pred_fallthru
          _
        // Predicated region
        $region21: #{tpu_custom_call.1} parent=11 // pred_check
          %p223 = pneg %p130
        $region22: #{tpu_custom_call.1} parent=11 // pred_check_branch
          %225 = sbr.rel (%p223) target = $region24
        $region23: #{tpu_custom_call.1} parent=11 // pred_region
          %s226 = smul.u32 2, %s29
          %p227 = scmp.lt.s32.totalorder %s226, 1
          %s228 = scalar_select %p227, %s226, 1
          %s229 = smul.addr %s228, 8
          %s230 = scalar_lea.vmem %s3, %s229
          %s231 = smul.u32 2, %s29
        $region24: #{tpu_custom_call.1} parent=11 // pred_fallthru
          _
        // Predicated region
        $region25: #{tpu_custom_call.1} parent=11 // pred_check
          %p232 = pneg %p151
        $region26: #{tpu_custom_call.1} parent=11 // pred_check_branch
          %234 = sbr.rel (%p232) target = $region28
        $region27: #{tpu_custom_call.1} parent=11 // pred_region
          %s236 = ssub.s32 1152, 1152
          %237 = vsyncadd [#allocation9], %s236
          %s238 = sshll.u32 [#allocation8], 4
          %s239 = int_to_ptr.vmem [resolvable:$true] %s238
          %244 = dma.hbm_to_vmem [thread:$0]  %s4, 1152, %s239, [#allocation9], 128, 128, 8
        $region28: #{tpu_custom_call.1} parent=11 // pred_fallthru
          _
      $region12: #{tpu_custom_call.1} parent=5 // pred_fallthru
        _
      %p245 = scmp.lt.s32.totalorder %s19, 2
      // Predicated region
      $region29: #{tpu_custom_call.1} parent=5 // pred_check
        %p246 = pneg %p245
      $region30: #{tpu_custom_call.1} parent=5 // pred_check_branch
        %248 = sbr.rel (%p246) target = $region32
      $region31: #{tpu_custom_call.1} parent=5 // pred_region
        // Predicated region
        $region33: #{tpu_custom_call.1} parent=31 // pred_check
          %p249 = pneg %p51
        $region34: #{tpu_custom_call.1} parent=31 // pred_check_branch
          %251 = sbr.rel (%p249) target = $region36
        $region35: #{tpu_custom_call.1} parent=31 // pred_region
          %s252 = sand.u32 %s41, 1
          %s253 = scalar_lea.sflag [#allocation3], %s252
          %s254 = sand.u32 %s41, 1
          %s255 = smul.addr %s254, 64
          %s256 = scalar_lea.vmem [#allocation2], %s255
          %s258 = ssub.s32 1024, 1024
          %259 = vsyncadd %s253, %s258
          %s260 = smul.addr %s26, 8
          %s261 = smul.addr %s260, 128
          %s262 = scalar_lea.hbm %s0, %s261
          %s263 = sshll.u32 %s256, 4
          %s264 = int_to_ptr.vmem [resolvable:$true] %s263
          %269 = dma.hbm_to_vmem [thread:$0]  %s262, 1024, %s264, %s253, 256, 256, 16
        $region36: #{tpu_custom_call.1} parent=31 // pred_fallthru
          _
      $region32: #{tpu_custom_call.1} parent=5 // pred_fallthru
        _
      %p270 = scmp.le.s32.totalorder 1, %s19
      %p271 = scmp.lt.s32.totalorder %s19, 3
      %p272 = pnand %p270, %p271
      %p273 = pneg %p272
      // Predicated region
      $region37: #{tpu_custom_call.1} parent=5 // pred_check
        _
      $region38: #{tpu_custom_call.1} parent=5 // pred_check_branch
        %275 = sbr.rel (%p272) target = $region40
      $region39: #{tpu_custom_call.1} parent=5 // pred_region
        %s276 = ssub.s32 %s19, 1
        %s277 = sand.u32 %s44, 1
        %s278 = scalar_lea.sflag [#allocation3], %s277
        %s279 = sand.u32 %s44, 1
        %s280 = smul.addr %s279, 64
        %s281 = scalar_lea.vmem [#allocation2], %s280
        // Predicated region
        $region41: #{tpu_custom_call.1} parent=39 // pred_check
          %p282 = pneg %p57
        $region42: #{tpu_custom_call.1} parent=39 // pred_check_branch
          %284 = sbr.rel (%p282) target = $region44
        $region43: #{tpu_custom_call.1} parent=39 // pred_region
          %285 = dma.done %s278, 1024
        $region44: #{tpu_custom_call.1} parent=39 // pred_fallthru
          _
        // Predicated region
        $region45: #{tpu_custom_call.1} parent=39 // pred_check
          %p286 = pneg %p78
        $region46: #{tpu_custom_call.1} parent=39 // pred_check_branch
          %288 = sbr.rel (%p286) target = $region48
        $region47: #{tpu_custom_call.1} parent=39 // pred_region
          %289 = dma.done [#allocation6], 16384
        $region48: #{tpu_custom_call.1} parent=39 // pred_fallthru
          _
        // Predicated region
        $region49: #{tpu_custom_call.1} parent=39 // pred_check
          %p290 = pneg %p104
        $region50: #{tpu_custom_call.1} parent=39 // pred_check_branch
          %292 = sbr.rel (%p290) target = $region52
        $region51: #{tpu_custom_call.1} parent=39 // pred_region
          %293 = dma.done [#allocation6], 1152
        $region52: #{tpu_custom_call.1} parent=39 // pred_fallthru
          _
        // Predicated region
        $region53: #{tpu_custom_call.1} parent=39 // pred_check
          %p294 = pneg %p151
        $region54: #{tpu_custom_call.1} parent=39 // pred_check_branch
          %296 = sbr.rel (%p294) target = $region56
        $region55: #{tpu_custom_call.1} parent=39 // pred_region
          %297 = dma.done [#allocation9], 1152
        $region56: #{tpu_custom_call.1} parent=39 // pred_fallthru
          _
        %s298 = sand.u32 %s44, 1
        %s299 = scalar_lea.sflag [#allocation3], %s298
        %s300 = sand.u32 %s44, 1
        %s301 = smul.addr %s300, 64
        %s302 = scalar_lea.vmem [#allocation2], %s301
        %p303 = pneg %p57
        %p304 = pneg %p54
        %p305 = pneg %p78
        %p306 = pneg %p75
        %p307 = pneg %p104
        %p308 = pneg %p101
        %s309 = smul.u32 2, %s29
        %p310 = scmp.lt.s32.totalorder %s309, 1
        %s311 = scalar_select %p310, %s309, 1
        %s312 = smul.addr %s311, 8
        %s313 = scalar_lea.vmem %s3, %s312
        %p314 = pneg %p130
        %p315 = pneg %p127
        %p316 = pneg %p151
        %p317 = pneg %p148
        %p318 = pneg %p179
        %p319 = pneg %p176
        %s320 = sand.u32 %s166, 1
        %s321 = scalar_lea.sflag [#allocation4], %s320
        %s322 = sand.u32 %s166, 1
        %s323 = smul.addr %s322, 128
        %s324 = scalar_lea.vmem [#allocation10], %s323
        %s325 = smul.u32 2, %s29
        %s326 = smul.u32 2, %s29
        %p327 = scmp.lt.s32.totalorder %s326, 1
        %s328 = scalar_select %p327, %s326, 1
        %s329 = smul.addr %s328, 8
        %s330 = scalar_lea.vmem %s3, %s329
        %s331 = smul.u32 2, %s29
        %s332 = smul.u32 2, %s29
        %v334 = vld [vmem:[%s281] sm:$0xff]
        %v335 = vld [vmem:[%s281 + $0x8] sm:$0xff]
        %v336 = vld [vmem:[%s281 + $0x10] sm:$0xff]
        %v337 = vld [vmem:[%s281 + $0x18] sm:$0xff]
        %v338 = vld [vmem:[%s281 + $0x20] sm:$0xff]
        %v339 = vld [vmem:[%s281 + $0x28] sm:$0xff]
        %v340 = vld [vmem:[%s281 + $0x30] sm:$0xff]
        %v341 = vld [vmem:[%s281 + $0x38] sm:$0xff]
        %v342 = vpack.c.bf16 %v336, %v334
        %v343 = vpack.c.bf16 %v337, %v335
        %v344 = vpack.c.bf16 %v340, %v338
        %v345 = vpack.c.bf16 %v341, %v339
        %v346 = vld [vmem:[#allocation5] sm:$0xff]
        %v347 = vld [vmem:[#allocation5 + $0x8] sm:$0xff]
        %v348 = vld [vmem:[#allocation5 + $0x10] sm:$0xff]
        %v349 = vld [vmem:[#allocation5 + $0x18] sm:$0xff]
        %v350 = vld [vmem:[#allocation5 + $0x20] sm:$0xff]
        %v351 = vld [vmem:[#allocation5 + $0x28] sm:$0xff]
        %v352 = vld [vmem:[#allocation5 + $0x30] sm:$0xff]
        %v353 = vld [vmem:[#allocation5 + $0x38] sm:$0xff]
        %v354 = vld [vmem:[#allocation5 + $0x40] sm:$0xff]
        %v355 = vld [vmem:[#allocation5 + $0x48] sm:$0xff]
        %v356 = vld [vmem:[#allocation5 + $0x50] sm:$0xff]
        %v357 = vld [vmem:[#allocation5 + $0x58] sm:$0xff]
        %v358 = vld [vmem:[#allocation5 + $0x60] sm:$0xff]
        %v359 = vld [vmem:[#allocation5 + $0x68] sm:$0xff]
        %v360 = vld [vmem:[#allocation5 + $0x70] sm:$0xff]
        %v361 = vld [vmem:[#allocation5 + $0x78] sm:$0xff]
        %v362 = vld [vmem:[#allocation5 + $0x80] sm:$0xff]
        %v363 = vld [vmem:[#allocation5 + $0x88] sm:$0xff]
        %v364 = vld [vmem:[#allocation5 + $0x90] sm:$0xff]
        %v365 = vld [vmem:[#allocation5 + $0x98] sm:$0xff]
        %v366 = vld [vmem:[#allocation5 + $0xa0] sm:$0xff]
        %v367 = vld [vmem:[#allocation5 + $0xa8] sm:$0xff]
        %v368 = vld [vmem:[#allocation5 + $0xb0] sm:$0xff]
        %v369 = vld [vmem:[#allocation5 + $0xb8] sm:$0xff]
        %v370 = vld [vmem:[#allocation5 + $0xc0] sm:$0xff]
        %v371 = vld [vmem:[#allocation5 + $0xc8] sm:$0xff]
        %v372 = vld [vmem:[#allocation5 + $0xd0] sm:$0xff]
        %v373 = vld [vmem:[#allocation5 + $0xd8] sm:$0xff]
        %v374 = vld [vmem:[#allocation5 + $0xe0] sm:$0xff]
        %v375 = vld [vmem:[#allocation5 + $0xe8] sm:$0xff]
        %v376 = vld [vmem:[#allocation5 + $0xf0] sm:$0xff]
        %v377 = vld [vmem:[#allocation5 + $0xf8] sm:$0xff]
        %v378 = vld [vmem:[#allocation5 + $0x100] sm:$0xff]
        %v379 = vld [vmem:[#allocation5 + $0x108] sm:$0xff]
        %v380 = vld [vmem:[#allocation5 + $0x110] sm:$0xff]
        %v381 = vld [vmem:[#allocation5 + $0x118] sm:$0xff]
        %v382 = vld [vmem:[#allocation5 + $0x120] sm:$0xff]
        %v383 = vld [vmem:[#allocation5 + $0x128] sm:$0xff]
        %v384 = vld [vmem:[#allocation5 + $0x130] sm:$0xff]
        %v385 = vld [vmem:[#allocation5 + $0x138] sm:$0xff]
        %v386 = vld [vmem:[#allocation5 + $0x140] sm:$0xff]
        %v387 = vld [vmem:[#allocation5 + $0x148] sm:$0xff]
        %v388 = vld [vmem:[#allocation5 + $0x150] sm:$0xff]
        %v389 = vld [vmem:[#allocation5 + $0x158] sm:$0xff]
        %v390 = vld [vmem:[#allocation5 + $0x160] sm:$0xff]
        %v391 = vld [vmem:[#allocation5 + $0x168] sm:$0xff]
        %v392 = vld [vmem:[#allocation5 + $0x170] sm:$0xff]
        %v393 = vld [vmem:[#allocation5 + $0x178] sm:$0xff]
        %v394 = vld [vmem:[#allocation5 + $0x180] sm:$0xff]
        %v395 = vld [vmem:[#allocation5 + $0x188] sm:$0xff]
        %v396 = vld [vmem:[#allocation5 + $0x190] sm:$0xff]
        %v397 = vld [vmem:[#allocation5 + $0x198] sm:$0xff]
        %v398 = vld [vmem:[#allocation5 + $0x1a0] sm:$0xff]
        %v399 = vld [vmem:[#allocation5 + $0x1a8] sm:$0xff]
        %v400 = vld [vmem:[#allocation5 + $0x1b0] sm:$0xff]
        %v401 = vld [vmem:[#allocation5 + $0x1b8] sm:$0xff]
        %v402 = vld [vmem:[#allocation5 + $0x1c0] sm:$0xff]
        %v403 = vld [vmem:[#allocation5 + $0x1c8] sm:$0xff]
        %v404 = vld [vmem:[#allocation5 + $0x1d0] sm:$0xff]
        %v405 = vld [vmem:[#allocation5 + $0x1d8] sm:$0xff]
        %v406 = vld [vmem:[#allocation5 + $0x1e0] sm:$0xff]
        %v407 = vld [vmem:[#allocation5 + $0x1e8] sm:$0xff]
        %v408 = vld [vmem:[#allocation5 + $0x1f0] sm:$0xff]
        %v409 = vld [vmem:[#allocation5 + $0x1f8] sm:$0xff]
        %v410 = vld [vmem:[#allocation5 + $0x200] sm:$0xff]
        %v411 = vld [vmem:[#allocation5 + $0x208] sm:$0xff]
        %v412 = vld [vmem:[#allocation5 + $0x210] sm:$0xff]
        %v413 = vld [vmem:[#allocation5 + $0x218] sm:$0xff]
        %v414 = vld [vmem:[#allocation5 + $0x220] sm:$0xff]
        %v415 = vld [vmem:[#allocation5 + $0x228] sm:$0xff]
        %v416 = vld [vmem:[#allocation5 + $0x230] sm:$0xff]
        %v417 = vld [vmem:[#allocation5 + $0x238] sm:$0xff]
        %v418 = vld [vmem:[#allocation5 + $0x240] sm:$0xff]
        %v419 = vld [vmem:[#allocation5 + $0x248] sm:$0xff]
        %v420 = vld [vmem:[#allocation5 + $0x250] sm:$0xff]
        %v421 = vld [vmem:[#allocation5 + $0x258] sm:$0xff]
        %v422 = vld [vmem:[#allocation5 + $0x260] sm:$0xff]
        %v423 = vld [vmem:[#allocation5 + $0x268] sm:$0xff]
        %v424 = vld [vmem:[#allocation5 + $0x270] sm:$0xff]
        %v425 = vld [vmem:[#allocation5 + $0x278] sm:$0xff]
        %v426 = vld [vmem:[#allocation5 + $0x280] sm:$0xff]
        %v427 = vld [vmem:[#allocation5 + $0x288] sm:$0xff]
        %v428 = vld [vmem:[#allocation5 + $0x290] sm:$0xff]
        %v429 = vld [vmem:[#allocation5 + $0x298] sm:$0xff]
        %v430 = vld [vmem:[#allocation5 + $0x2a0] sm:$0xff]
        %v431 = vld [vmem:[#allocation5 + $0x2a8] sm:$0xff]
        %v432 = vld [vmem:[#allocation5 + $0x2b0] sm:$0xff]
        %v433 = vld [vmem:[#allocation5 + $0x2b8] sm:$0xff]
        %v434 = vld [vmem:[#allocation5 + $0x2c0] sm:$0xff]
        %v435 = vld [vmem:[#allocation5 + $0x2c8] sm:$0xff]
        %v436 = vld [vmem:[#allocation5 + $0x2d0] sm:$0xff]
        %v437 = vld [vmem:[#allocation5 + $0x2d8] sm:$0xff]
        %v438 = vld [vmem:[#allocation5 + $0x2e0] sm:$0xff]
        %v439 = vld [vmem:[#allocation5 + $0x2e8] sm:$0xff]
        %v440 = vld [vmem:[#allocation5 + $0x2f0] sm:$0xff]
        %v441 = vld [vmem:[#allocation5 + $0x2f8] sm:$0xff]
        %v442 = vld [vmem:[#allocation5 + $0x300] sm:$0xff]
        %v443 = vld [vmem:[#allocation5 + $0x308] sm:$0xff]
        %v444 = vld [vmem:[#allocation5 + $0x310] sm:$0xff]
        %v445 = vld [vmem:[#allocation5 + $0x318] sm:$0xff]
        %v446 = vld [vmem:[#allocation5 + $0x320] sm:$0xff]
        %v447 = vld [vmem:[#allocation5 + $0x328] sm:$0xff]
        %v448 = vld [vmem:[#allocation5 + $0x330] sm:$0xff]
        %v449 = vld [vmem:[#allocation5 + $0x338] sm:$0xff]
        %v450 = vld [vmem:[#allocation5 + $0x340] sm:$0xff]
        %v451 = vld [vmem:[#allocation5 + $0x348] sm:$0xff]
        %v452 = vld [vmem:[#allocation5 + $0x350] sm:$0xff]
        %v453 = vld [vmem:[#allocation5 + $0x358] sm:$0xff]
        %v454 = vld [vmem:[#allocation5 + $0x360] sm:$0xff]
        %v455 = vld [vmem:[#allocation5 + $0x368] sm:$0xff]
        %v456 = vld [vmem:[#allocation5 + $0x370] sm:$0xff]
        %v457 = vld [vmem:[#allocation5 + $0x378] sm:$0xff]
        %v458 = vld [vmem:[#allocation5 + $0x380] sm:$0xff]
        %v459 = vld [vmem:[#allocation5 + $0x388] sm:$0xff]
        %v460 = vld [vmem:[#allocation5 + $0x390] sm:$0xff]
        %v461 = vld [vmem:[#allocation5 + $0x398] sm:$0xff]
        %v462 = vld [vmem:[#allocation5 + $0x3a0] sm:$0xff]
        %v463 = vld [vmem:[#allocation5 + $0x3a8] sm:$0xff]
        %v464 = vld [vmem:[#allocation5 + $0x3b0] sm:$0xff]
        %v465 = vld [vmem:[#allocation5 + $0x3b8] sm:$0xff]
        %v466 = vld [vmem:[#allocation5 + $0x3c0] sm:$0xff]
        %v467 = vld [vmem:[#allocation5 + $0x3c8] sm:$0xff]
        %v468 = vld [vmem:[#allocation5 + $0x3d0] sm:$0xff]
        %v469 = vld [vmem:[#allocation5 + $0x3d8] sm:$0xff]
        %v470 = vld [vmem:[#allocation5 + $0x3e0] sm:$0xff]
        %v471 = vld [vmem:[#allocation5 + $0x3e8] sm:$0xff]
        %v472 = vld [vmem:[#allocation5 + $0x3f0] sm:$0xff]
        %v473 = vld [vmem:[#allocation5 + $0x3f8] sm:$0xff]
        %v602 = vunpack.c.l.b16 %v346
        %v603 = vunpack.c.h.b16 %v346
        %v604 = vunpack.c.l.b16 %v347
        %v605 = vunpack.c.h.b16 %v347
        %v606 = vunpack.c.l.b16 %v348
        %v607 = vunpack.c.h.b16 %v348
        %v608 = vunpack.c.l.b16 %v349
        %v609 = vunpack.c.h.b16 %v349
        %v610 = vunpack.c.l.b16 %v350
        %v611 = vunpack.c.h.b16 %v350
        %v612 = vunpack.c.l.b16 %v351
        %v613 = vunpack.c.h.b16 %v351
        %v614 = vunpack.c.l.b16 %v352
        %v615 = vunpack.c.h.b16 %v352
        %v616 = vunpack.c.l.b16 %v353
        %v617 = vunpack.c.h.b16 %v353
        %v618 = vunpack.c.l.b16 %v354
        %v619 = vunpack.c.h.b16 %v354
        %v620 = vunpack.c.l.b16 %v355
        %v621 = vunpack.c.h.b16 %v355
        %v622 = vunpack.c.l.b16 %v356
        %v623 = vunpack.c.h.b16 %v356
        %v624 = vunpack.c.l.b16 %v357
        %v625 = vunpack.c.h.b16 %v357
        %v626 = vunpack.c.l.b16 %v358
        %v627 = vunpack.c.h.b16 %v358
        %v628 = vunpack.c.l.b16 %v359
        %v629 = vunpack.c.h.b16 %v359
        %v630 = vunpack.c.l.b16 %v360
        %v631 = vunpack.c.h.b16 %v360
        %v632 = vunpack.c.l.b16 %v361
        %v633 = vunpack.c.h.b16 %v361
        %v634 = vunpack.c.l.b16 %v362
        %v635 = vunpack.c.h.b16 %v362
        %v636 = vunpack.c.l.b16 %v363
        %v637 = vunpack.c.h.b16 %v363
        %v638 = vunpack.c.l.b16 %v364
        %v639 = vunpack.c.h.b16 %v364
        %v640 = vunpack.c.l.b16 %v365
        %v641 = vunpack.c.h.b16 %v365
        %v642 = vunpack.c.l.b16 %v366
        %v643 = vunpack.c.h.b16 %v366
        %v644 = vunpack.c.l.b16 %v367
        %v645 = vunpack.c.h.b16 %v367
        %v646 = vunpack.c.l.b16 %v368
        %v647 = vunpack.c.h.b16 %v368
        %v648 = vunpack.c.l.b16 %v369
        %v649 = vunpack.c.h.b16 %v369
        %v650 = vunpack.c.l.b16 %v370
        %v651 = vunpack.c.h.b16 %v370
        %v652 = vunpack.c.l.b16 %v371
        %v653 = vunpack.c.h.b16 %v371
        %v654 = vunpack.c.l.b16 %v372
        %v655 = vunpack.c.h.b16 %v372
        %v656 = vunpack.c.l.b16 %v373
        %v657 = vunpack.c.h.b16 %v373
        %v658 = vunpack.c.l.b16 %v374
        %v659 = vunpack.c.h.b16 %v374
        %v660 = vunpack.c.l.b16 %v375
        %v661 = vunpack.c.h.b16 %v375
        %v662 = vunpack.c.l.b16 %v376
        %v663 = vunpack.c.h.b16 %v376
        %v664 = vunpack.c.l.b16 %v377
        %v665 = vunpack.c.h.b16 %v377
        %v666 = vunpack.c.l.b16 %v378
        %v667 = vunpack.c.h.b16 %v378
        %v668 = vunpack.c.l.b16 %v379
        %v669 = vunpack.c.h.b16 %v379
        %v670 = vunpack.c.l.b16 %v380
        %v671 = vunpack.c.h.b16 %v380
        %v672 = vunpack.c.l.b16 %v381
        %v673 = vunpack.c.h.b16 %v381
        %v674 = vunpack.c.l.b16 %v382
        %v675 = vunpack.c.h.b16 %v382
        %v676 = vunpack.c.l.b16 %v383
        %v677 = vunpack.c.h.b16 %v383
        %v678 = vunpack.c.l.b16 %v384
        %v679 = vunpack.c.h.b16 %v384
        %v680 = vunpack.c.l.b16 %v385
        %v681 = vunpack.c.h.b16 %v385
        %v682 = vunpack.c.l.b16 %v386
        %v683 = vunpack.c.h.b16 %v386
        %v684 = vunpack.c.l.b16 %v387
        %v685 = vunpack.c.h.b16 %v387
        %v686 = vunpack.c.l.b16 %v388
        %v687 = vunpack.c.h.b16 %v388
        %v688 = vunpack.c.l.b16 %v389
        %v689 = vunpack.c.h.b16 %v389
        %v690 = vunpack.c.l.b16 %v390
        %v691 = vunpack.c.h.b16 %v390
        %v692 = vunpack.c.l.b16 %v391
        %v693 = vunpack.c.h.b16 %v391
        %v694 = vunpack.c.l.b16 %v392
        %v695 = vunpack.c.h.b16 %v392
        %v696 = vunpack.c.l.b16 %v393
        %v697 = vunpack.c.h.b16 %v393
        %v698 = vunpack.c.l.b16 %v394
        %v699 = vunpack.c.h.b16 %v394
        %v700 = vunpack.c.l.b16 %v395
        %v701 = vunpack.c.h.b16 %v395
        %v702 = vunpack.c.l.b16 %v396
        %v703 = vunpack.c.h.b16 %v396
        %v704 = vunpack.c.l.b16 %v397
        %v705 = vunpack.c.h.b16 %v397
        %v706 = vunpack.c.l.b16 %v398
        %v707 = vunpack.c.h.b16 %v398
        %v708 = vunpack.c.l.b16 %v399
        %v709 = vunpack.c.h.b16 %v399
        %v710 = vunpack.c.l.b16 %v400
        %v711 = vunpack.c.h.b16 %v400
        %v712 = vunpack.c.l.b16 %v401
        %v713 = vunpack.c.h.b16 %v401
        %v714 = vunpack.c.l.b16 %v402
        %v715 = vunpack.c.h.b16 %v402
        %v716 = vunpack.c.l.b16 %v403
        %v717 = vunpack.c.h.b16 %v403
        %v718 = vunpack.c.l.b16 %v404
        %v719 = vunpack.c.h.b16 %v404
        %v720 = vunpack.c.l.b16 %v405
        %v721 = vunpack.c.h.b16 %v405
        %v722 = vunpack.c.l.b16 %v406
        %v723 = vunpack.c.h.b16 %v406
        %v724 = vunpack.c.l.b16 %v407
        %v725 = vunpack.c.h.b16 %v407
        %v726 = vunpack.c.l.b16 %v408
        %v727 = vunpack.c.h.b16 %v408
        %v728 = vunpack.c.l.b16 %v409
        %v729 = vunpack.c.h.b16 %v409
        %v730 = vunpack.c.l.b16 %v410
        %v731 = vunpack.c.h.b16 %v410
        %v732 = vunpack.c.l.b16 %v411
        %v733 = vunpack.c.h.b16 %v411
        %v734 = vunpack.c.l.b16 %v412
        %v735 = vunpack.c.h.b16 %v412
        %v736 = vunpack.c.l.b16 %v413
        %v737 = vunpack.c.h.b16 %v413
        %v738 = vunpack.c.l.b16 %v414
        %v739 = vunpack.c.h.b16 %v414
        %v740 = vunpack.c.l.b16 %v415
        %v741 = vunpack.c.h.b16 %v415
        %v742 = vunpack.c.l.b16 %v416
        %v743 = vunpack.c.h.b16 %v416
        %v744 = vunpack.c.l.b16 %v417
        %v745 = vunpack.c.h.b16 %v417
        %v746 = vunpack.c.l.b16 %v418
        %v747 = vunpack.c.h.b16 %v418
        %v748 = vunpack.c.l.b16 %v419
        %v749 = vunpack.c.h.b16 %v419
        %v750 = vunpack.c.l.b16 %v420
        %v751 = vunpack.c.h.b16 %v420
        %v752 = vunpack.c.l.b16 %v421
        %v753 = vunpack.c.h.b16 %v421
        %v754 = vunpack.c.l.b16 %v422
        %v755 = vunpack.c.h.b16 %v422
        %v756 = vunpack.c.l.b16 %v423
        %v757 = vunpack.c.h.b16 %v423
        %v758 = vunpack.c.l.b16 %v424
        %v759 = vunpack.c.h.b16 %v424
        %v760 = vunpack.c.l.b16 %v425
        %v761 = vunpack.c.h.b16 %v425
        %v762 = vunpack.c.l.b16 %v426
        %v763 = vunpack.c.h.b16 %v426
        %v764 = vunpack.c.l.b16 %v427
        %v765 = vunpack.c.h.b16 %v427
        %v766 = vunpack.c.l.b16 %v428
        %v767 = vunpack.c.h.b16 %v428
        %v768 = vunpack.c.l.b16 %v429
        %v769 = vunpack.c.h.b16 %v429
        %v770 = vunpack.c.l.b16 %v430
        %v771 = vunpack.c.h.b16 %v430
        %v772 = vunpack.c.l.b16 %v431
        %v773 = vunpack.c.h.b16 %v431
        %v774 = vunpack.c.l.b16 %v432
        %v775 = vunpack.c.h.b16 %v432
        %v776 = vunpack.c.l.b16 %v433
        %v777 = vunpack.c.h.b16 %v433
        %v778 = vunpack.c.l.b16 %v434
        %v779 = vunpack.c.h.b16 %v434
        %v780 = vunpack.c.l.b16 %v435
        %v781 = vunpack.c.h.b16 %v435
        %v782 = vunpack.c.l.b16 %v436
        %v783 = vunpack.c.h.b16 %v436
        %v784 = vunpack.c.l.b16 %v437
        %v785 = vunpack.c.h.b16 %v437
        %v786 = vunpack.c.l.b16 %v438
        %v787 = vunpack.c.h.b16 %v438
        %v788 = vunpack.c.l.b16 %v439
        %v789 = vunpack.c.h.b16 %v439
        %v790 = vunpack.c.l.b16 %v440
        %v791 = vunpack.c.h.b16 %v440
        %v792 = vunpack.c.l.b16 %v441
        %v793 = vunpack.c.h.b16 %v441
        %v794 = vunpack.c.l.b16 %v442
        %v795 = vunpack.c.h.b16 %v442
        %v796 = vunpack.c.l.b16 %v443
        %v797 = vunpack.c.h.b16 %v443
        %v798 = vunpack.c.l.b16 %v444
        %v799 = vunpack.c.h.b16 %v444
        %v800 = vunpack.c.l.b16 %v445
        %v801 = vunpack.c.h.b16 %v445
        %v802 = vunpack.c.l.b16 %v446
        %v803 = vunpack.c.h.b16 %v446
        %v804 = vunpack.c.l.b16 %v447
        %v805 = vunpack.c.h.b16 %v447
        %v806 = vunpack.c.l.b16 %v448
        %v807 = vunpack.c.h.b16 %v448
        %v808 = vunpack.c.l.b16 %v449
        %v809 = vunpack.c.h.b16 %v449
        %v810 = vunpack.c.l.b16 %v450
        %v811 = vunpack.c.h.b16 %v450
        %v812 = vunpack.c.l.b16 %v451
        %v813 = vunpack.c.h.b16 %v451
        %v814 = vunpack.c.l.b16 %v452
        %v815 = vunpack.c.h.b16 %v452
        %v816 = vunpack.c.l.b16 %v453
        %v817 = vunpack.c.h.b16 %v453
        %v818 = vunpack.c.l.b16 %v454
        %v819 = vunpack.c.h.b16 %v454
        %v820 = vunpack.c.l.b16 %v455
        %v821 = vunpack.c.h.b16 %v455
        %v822 = vunpack.c.l.b16 %v456
        %v823 = vunpack.c.h.b16 %v456
        %v824 = vunpack.c.l.b16 %v457
        %v825 = vunpack.c.h.b16 %v457
        %v826 = vunpack.c.l.b16 %v458
        %v827 = vunpack.c.h.b16 %v458
        %v828 = vunpack.c.l.b16 %v459
        %v829 = vunpack.c.h.b16 %v459
        %v830 = vunpack.c.l.b16 %v460
        %v831 = vunpack.c.h.b16 %v460
        %v832 = vunpack.c.l.b16 %v461
        %v833 = vunpack.c.h.b16 %v461
        %v834 = vunpack.c.l.b16 %v462
        %v835 = vunpack.c.h.b16 %v462
        %v836 = vunpack.c.l.b16 %v463
        %v837 = vunpack.c.h.b16 %v463
        %v838 = vunpack.c.l.b16 %v464
        %v839 = vunpack.c.h.b16 %v464
        %v840 = vunpack.c.l.b16 %v465
        %v841 = vunpack.c.h.b16 %v465
        %v842 = vunpack.c.l.b16 %v466
        %v843 = vunpack.c.h.b16 %v466
        %v844 = vunpack.c.l.b16 %v467
        %v845 = vunpack.c.h.b16 %v467
        %v846 = vunpack.c.l.b16 %v468
        %v847 = vunpack.c.h.b16 %v468
        %v848 = vunpack.c.l.b16 %v469
        %v849 = vunpack.c.h.b16 %v469
        %v850 = vunpack.c.l.b16 %v470
        %v851 = vunpack.c.h.b16 %v470
        %v852 = vunpack.c.l.b16 %v471
        %v853 = vunpack.c.h.b16 %v471
        %v854 = vunpack.c.l.b16 %v472
        %v855 = vunpack.c.h.b16 %v472
        %v856 = vunpack.c.l.b16 %v473
        %v857 = vunpack.c.h.b16 %v473
        %v858 = vpack.c.b16 %v610, %v602
        %v859 = vpack.c.b16 %v611, %v603
        %v860 = vpack.c.b16 %v612, %v604
        %v861 = vpack.c.b16 %v613, %v605
        %v862 = vpack.c.b16 %v614, %v606
        %v863 = vpack.c.b16 %v615, %v607
        %v864 = vpack.c.b16 %v616, %v608
        %v865 = vpack.c.b16 %v617, %v609
        %v866 = vpack.c.b16 %v626, %v618
        %v867 = vpack.c.b16 %v627, %v619
        %v868 = vpack.c.b16 %v628, %v620
        %v869 = vpack.c.b16 %v629, %v621
        %v870 = vpack.c.b16 %v630, %v622
        %v871 = vpack.c.b16 %v631, %v623
        %v872 = vpack.c.b16 %v632, %v624
        %v873 = vpack.c.b16 %v633, %v625
        %v874 = vpack.c.b16 %v642, %v634
        %v875 = vpack.c.b16 %v643, %v635
        %v876 = vpack.c.b16 %v644, %v636
        %v877 = vpack.c.b16 %v645, %v637
        %v878 = vpack.c.b16 %v646, %v638
        %v879 = vpack.c.b16 %v647, %v639
        %v880 = vpack.c.b16 %v648, %v640
        %v881 = vpack.c.b16 %v649, %v641
        %v882 = vpack.c.b16 %v658, %v650
        %v883 = vpack.c.b16 %v659, %v651
        %v884 = vpack.c.b16 %v660, %v652
        %v885 = vpack.c.b16 %v661, %v653
        %v886 = vpack.c.b16 %v662, %v654
        %v887 = vpack.c.b16 %v663, %v655
        %v888 = vpack.c.b16 %v664, %v656
        %v889 = vpack.c.b16 %v665, %v657
        %v890 = vpack.c.b16 %v674, %v666
        %v891 = vpack.c.b16 %v675, %v667
        %v892 = vpack.c.b16 %v676, %v668
        %v893 = vpack.c.b16 %v677, %v669
        %v894 = vpack.c.b16 %v678, %v670
        %v895 = vpack.c.b16 %v679, %v671
        %v896 = vpack.c.b16 %v680, %v672
        %v897 = vpack.c.b16 %v681, %v673
        %v898 = vpack.c.b16 %v690, %v682
        %v899 = vpack.c.b16 %v691, %v683
        %v900 = vpack.c.b16 %v692, %v684
        %v901 = vpack.c.b16 %v693, %v685
        %v902 = vpack.c.b16 %v694, %v686
        %v903 = vpack.c.b16 %v695, %v687
        %v904 = vpack.c.b16 %v696, %v688
        %v905 = vpack.c.b16 %v697, %v689
        %v906 = vpack.c.b16 %v706, %v698
        %v907 = vpack.c.b16 %v707, %v699
        %v908 = vpack.c.b16 %v708, %v700
        %v909 = vpack.c.b16 %v709, %v701
        %v910 = vpack.c.b16 %v710, %v702
        %v911 = vpack.c.b16 %v711, %v703
        %v912 = vpack.c.b16 %v712, %v704
        %v913 = vpack.c.b16 %v713, %v705
        %v914 = vpack.c.b16 %v722, %v714
        %v915 = vpack.c.b16 %v723, %v715
        %v916 = vpack.c.b16 %v724, %v716
        %v917 = vpack.c.b16 %v725, %v717
        %v918 = vpack.c.b16 %v726, %v718
        %v919 = vpack.c.b16 %v727, %v719
        %v920 = vpack.c.b16 %v728, %v720
        %v921 = vpack.c.b16 %v729, %v721
        %v922 = vpack.c.b16 %v738, %v730
        %v923 = vpack.c.b16 %v739, %v731
        %v924 = vpack.c.b16 %v740, %v732
        %v925 = vpack.c.b16 %v741, %v733
        %v926 = vpack.c.b16 %v742, %v734
        %v927 = vpack.c.b16 %v743, %v735
        %v928 = vpack.c.b16 %v744, %v736
        %v929 = vpack.c.b16 %v745, %v737
        %v930 = vpack.c.b16 %v754, %v746
        %v931 = vpack.c.b16 %v755, %v747
        %v932 = vpack.c.b16 %v756, %v748
        %v933 = vpack.c.b16 %v757, %v749
        %v934 = vpack.c.b16 %v758, %v750
        %v935 = vpack.c.b16 %v759, %v751
        %v936 = vpack.c.b16 %v760, %v752
        %v937 = vpack.c.b16 %v761, %v753
        %v938 = vpack.c.b16 %v770, %v762
        %v939 = vpack.c.b16 %v771, %v763
        %v940 = vpack.c.b16 %v772, %v764
        %v941 = vpack.c.b16 %v773, %v765
        %v942 = vpack.c.b16 %v774, %v766
        %v943 = vpack.c.b16 %v775, %v767
        %v944 = vpack.c.b16 %v776, %v768
        %v945 = vpack.c.b16 %v777, %v769
        %v946 = vpack.c.b16 %v786, %v778
        %v947 = vpack.c.b16 %v787, %v779
        %v948 = vpack.c.b16 %v788, %v780
        %v949 = vpack.c.b16 %v789, %v781
        %v950 = vpack.c.b16 %v790, %v782
        %v951 = vpack.c.b16 %v791, %v783
        %v952 = vpack.c.b16 %v792, %v784
        %v953 = vpack.c.b16 %v793, %v785
        %v954 = vpack.c.b16 %v802, %v794
        %v955 = vpack.c.b16 %v803, %v795
        %v956 = vpack.c.b16 %v804, %v796
        %v957 = vpack.c.b16 %v805, %v797
        %v958 = vpack.c.b16 %v806, %v798
        %v959 = vpack.c.b16 %v807, %v799
        %v960 = vpack.c.b16 %v808, %v800
        %v961 = vpack.c.b16 %v809, %v801
        %v962 = vpack.c.b16 %v818, %v810
        %v963 = vpack.c.b16 %v819, %v811
        %v964 = vpack.c.b16 %v820, %v812
        %v965 = vpack.c.b16 %v821, %v813
        %v966 = vpack.c.b16 %v822, %v814
        %v967 = vpack.c.b16 %v823, %v815
        %v968 = vpack.c.b16 %v824, %v816
        %v969 = vpack.c.b16 %v825, %v817
        %v970 = vpack.c.b16 %v834, %v826
        %v971 = vpack.c.b16 %v835, %v827
        %v972 = vpack.c.b16 %v836, %v828
        %v973 = vpack.c.b16 %v837, %v829
        %v974 = vpack.c.b16 %v838, %v830
        %v975 = vpack.c.b16 %v839, %v831
        %v976 = vpack.c.b16 %v840, %v832
        %v977 = vpack.c.b16 %v841, %v833
        %v978 = vpack.c.b16 %v850, %v842
        %v979 = vpack.c.b16 %v851, %v843
        %v980 = vpack.c.b16 %v852, %v844
        %v981 = vpack.c.b16 %v853, %v845
        %v982 = vpack.c.b16 %v854, %v846
        %v983 = vpack.c.b16 %v855, %v847
        %v984 = vpack.c.b16 %v856, %v848
        %v985 = vpack.c.b16 %v857, %v849
        %1114 = vmatprep.subr.bf16.mxu0 %v859
        %1115 = vmatpush1.bf16.msra.mxu0 %v858
        %1116 = vmatprep.subr.bf16.mxu0 %v867
        %1117 = vmatpush1.bf16.msra.mxu0 %v866
        %1118 = vmatprep.subr.bf16.mxu0 %v875
        %1119 = vmatpush1.bf16.msra.mxu0 %v874
        %1120 = vmatprep.subr.bf16.mxu0 %v883
        %1121 = vmatpush1.bf16.msra.mxu0 %v882
        %1122 = vmatprep.subr.bf16.mxu0 %v891
        %1123 = vmatpush1.bf16.msra.mxu0 %v890
        %1124 = vmatprep.subr.bf16.mxu0 %v899
        %1125 = vmatpush1.bf16.msra.mxu0 %v898
        %1126 = vmatprep.subr.bf16.mxu0 %v907
        %1127 = vmatpush1.bf16.msra.mxu0 %v906
        %1128 = vmatprep.subr.bf16.mxu0 %v915
        %1129 = vmatpush1.bf16.msra.mxu0 %v914
        %1130 = vmatprep.subr.bf16.mxu0 %v923
        %1131 = vmatpush1.bf16.msra.mxu0 %v922
        %1132 = vmatprep.subr.bf16.mxu0 %v931
        %1133 = vmatpush1.bf16.msra.mxu0 %v930
        %1134 = vmatprep.subr.bf16.mxu0 %v939
        %1135 = vmatpush1.bf16.msra.mxu0 %v938
        %1136 = vmatprep.subr.bf16.mxu0 %v947
        %1137 = vmatpush1.bf16.msra.mxu0 %v946
        %1138 = vmatprep.subr.bf16.mxu0 %v955
        %1139 = vmatpush1.bf16.msra.mxu0 %v954
        %1140 = vmatprep.subr.bf16.mxu0 %v963
        %1141 = vmatpush1.bf16.msra.mxu0 %v962
        %1142 = vmatprep.subr.bf16.mxu0 %v971
        %1143 = vmatpush1.bf16.msra.mxu0 %v970
        %1144 = vmatprep.subr.bf16.mxu0 %v979
        %1145 = vmatpush1.bf16.msra.mxu0 %v978
        %1146 = vmatprep.mubr.bf16.mxu0 %v343
        %1147 = vmatmul.mubr.bf16.gmra.mrb[0].mxu0 %v342
        %v1148 = vpop.f32.mrb[0].mxu0
        %v1149 = vadd.f32 0.0, %v1148
        %v1150 = vpop.f32.mrb[0].mxu0
        %v1151 = vadd.f32 0.0, %v1150
        %v1152 = vpop.f32.mrb[0].mxu0
        %v1153 = vadd.f32 0.0, %v1152
        %v1154 = vpop.f32.mrb[0].mxu0
        %v1155 = vadd.f32 0.0, %v1154
        %1156 = vmatprep.mubr.bf16.mxu0 %v345
        %1157 = vmatmul.mubr.bf16.gmra.mrb[0].mxu0 %v344
        %v1158 = vpop.f32.mrb[0].mxu0
        %v1159 = vadd.f32 0.0, %v1158
        %v1160 = vpop.f32.mrb[0].mxu0
        %v1161 = vadd.f32 0.0, %v1160
        %v1162 = vpop.f32.mrb[0].mxu0
        %v1163 = vadd.f32 0.0, %v1162
        %v1164 = vpop.f32.mrb[0].mxu0
        %v1165 = vadd.f32 0.0, %v1164
        %1166 = vdwg.mxu0
        %1167 = vmatprep.subr.bf16.mxu0 %v861
        %1168 = vmatpush1.bf16.msra.mxu0 %v860
        %1169 = vmatprep.subr.bf16.mxu0 %v869
        %1170 = vmatpush1.bf16.msra.mxu0 %v868
        %1171 = vmatprep.subr.bf16.mxu0 %v877
        %1172 = vmatpush1.bf16.msra.mxu0 %v876
        %1173 = vmatprep.subr.bf16.mxu0 %v885
        %1174 = vmatpush1.bf16.msra.mxu0 %v884
        %1175 = vmatprep.subr.bf16.mxu0 %v893
        %1176 = vmatpush1.bf16.msra.mxu0 %v892
        %1177 = vmatprep.subr.bf16.mxu0 %v901
        %1178 = vmatpush1.bf16.msra.mxu0 %v900
        %1179 = vmatprep.subr.bf16.mxu0 %v909
        %1180 = vmatpush1.bf16.msra.mxu0 %v908
        %1181 = vmatprep.subr.bf16.mxu0 %v917
        %1182 = vmatpush1.bf16.msra.mxu0 %v916
        %1183 = vmatprep.subr.bf16.mxu0 %v925
        %1184 = vmatpush1.bf16.msra.mxu0 %v924
        %1185 = vmatprep.subr.bf16.mxu0 %v933
        %1186 = vmatpush1.bf16.msra.mxu0 %v932
        %1187 = vmatprep.subr.bf16.mxu0 %v941
        %1188 = vmatpush1.bf16.msra.mxu0 %v940
        %1189 = vmatprep.subr.bf16.mxu0 %v949
        %1190 = vmatpush1.bf16.msra.mxu0 %v948
        %1191 = vmatprep.subr.bf16.mxu0 %v957
        %1192 = vmatpush1.bf16.msra.mxu0 %v956
        %1193 = vmatprep.subr.bf16.mxu0 %v965
        %1194 = vmatpush1.bf16.msra.mxu0 %v964
        %1195 = vmatprep.subr.bf16.mxu0 %v973
        %1196 = vmatpush1.bf16.msra.mxu0 %v972
        %1197 = vmatprep.subr.bf16.mxu0 %v981
        %1198 = vmatpush1.bf16.msra.mxu0 %v980
        %1199 = vmatprep.mubr.bf16.mxu0 %v343
        %1200 = vmatmul.mubr.bf16.gmra.mrb[0].mxu0 %v342
        %v1201 = vpop.f32.mrb[0].mxu0
        %v1202 = vadd.f32 0.0, %v1201
        %v1203 = vpop.f32.mrb[0].mxu0
        %v1204 = vadd.f32 0.0, %v1203
        %v1205 = vpop.f32.mrb[0].mxu0
        %v1206 = vadd.f32 0.0, %v1205
        %v1207 = vpop.f32.mrb[0].mxu0
        %v1208 = vadd.f32 0.0, %v1207
        %1209 = vmatprep.mubr.bf16.mxu0 %v345
        %1210 = vmatmul.mubr.bf16.gmra.mrb[0].mxu0 %v344
        %v1211 = vpop.f32.mrb[0].mxu0
        %v1212 = vadd.f32 0.0, %v1211
        %v1213 = vpop.f32.mrb[0].mxu0
        %v1214 = vadd.f32 0.0, %v1213
        %v1215 = vpop.f32.mrb[0].mxu0
        %v1216 = vadd.f32 0.0, %v1215
        %v1217 = vpop.f32.mrb[0].mxu0
        %v1218 = vadd.f32 0.0, %v1217
        %1219 = vdwg.mxu0
        %1220 = vmatprep.subr.bf16.mxu0 %v863
        %1221 = vmatpush1.bf16.msra.mxu0 %v862
        %1222 = vmatprep.subr.bf16.mxu0 %v871
        %1223 = vmatpush1.bf16.msra.mxu0 %v870
        %1224 = vmatprep.subr.bf16.mxu0 %v879
        %1225 = vmatpush1.bf16.msra.mxu0 %v878
        %1226 = vmatprep.subr.bf16.mxu0 %v887
        %1227 = vmatpush1.bf16.msra.mxu0 %v886
        %1228 = vmatprep.subr.bf16.mxu0 %v895
        %1229 = vmatpush1.bf16.msra.mxu0 %v894
        %1230 = vmatprep.subr.bf16.mxu0 %v903
        %1231 = vmatpush1.bf16.msra.mxu0 %v902
        %1232 = vmatprep.subr.bf16.mxu0 %v911
        %1233 = vmatpush1.bf16.msra.mxu0 %v910
        %1234 = vmatprep.subr.bf16.mxu0 %v919
        %1235 = vmatpush1.bf16.msra.mxu0 %v918
        %1236 = vmatprep.subr.bf16.mxu0 %v927
        %1237 = vmatpush1.bf16.msra.mxu0 %v926
        %1238 = vmatprep.subr.bf16.mxu0 %v935
        %1239 = vmatpush1.bf16.msra.mxu0 %v934
        %1240 = vmatprep.subr.bf16.mxu0 %v943
        %1241 = vmatpush1.bf16.msra.mxu0 %v942
        %1242 = vmatprep.subr.bf16.mxu0 %v951
        %1243 = vmatpush1.bf16.msra.mxu0 %v950
        %1244 = vmatprep.subr.bf16.mxu0 %v959
        %1245 = vmatpush1.bf16.msra.mxu0 %v958
        %1246 = vmatprep.subr.bf16.mxu0 %v967
        %1247 = vmatpush1.bf16.msra.mxu0 %v966
        %1248 = vmatprep.subr.bf16.mxu0 %v975
        %1249 = vmatpush1.bf16.msra.mxu0 %v974
        %1250 = vmatprep.subr.bf16.mxu0 %v983
        %1251 = vmatpush1.bf16.msra.mxu0 %v982
        %1252 = vmatprep.mubr.bf16.mxu0 %v343
        %1253 = vmatmul.mubr.bf16.gmra.mrb[0].mxu0 %v342
        %v1254 = vpop.f32.mrb[0].mxu0
        %v1255 = vadd.f32 0.0, %v1254
        %v1256 = vpop.f32.mrb[0].mxu0
        %v1257 = vadd.f32 0.0, %v1256
        %v1258 = vpop.f32.mrb[0].mxu0
        %v1259 = vadd.f32 0.0, %v1258
        %v1260 = vpop.f32.mrb[0].mxu0
        %v1261 = vadd.f32 0.0, %v1260
        %1262 = vmatprep.mubr.bf16.mxu0 %v345
        %1263 = vmatmul.mubr.bf16.gmra.mrb[0].mxu0 %v344
        %v1264 = vpop.f32.mrb[0].mxu0
        %v1265 = vadd.f32 0.0, %v1264
        %v1266 = vpop.f32.mrb[0].mxu0
        %v1267 = vadd.f32 0.0, %v1266
        %v1268 = vpop.f32.mrb[0].mxu0
        %v1269 = vadd.f32 0.0, %v1268
        %v1270 = vpop.f32.mrb[0].mxu0
        %v1271 = vadd.f32 0.0, %v1270
        %1272 = vdwg.mxu0
        %1273 = vmatprep.subr.bf16.mxu0 %v865
        %1274 = vmatpush1.bf16.msra.mxu0 %v864
        %1275 = vmatprep.subr.bf16.mxu0 %v873
        %1276 = vmatpush1.bf16.msra.mxu0 %v872
        %1277 = vmatprep.subr.bf16.mxu0 %v881
        %1278 = vmatpush1.bf16.msra.mxu0 %v880
        %1279 = vmatprep.subr.bf16.mxu0 %v889
        %1280 = vmatpush1.bf16.msra.mxu0 %v888
        %1281 = vmatprep.subr.bf16.mxu0 %v897
        %1282 = vmatpush1.bf16.msra.mxu0 %v896
        %1283 = vmatprep.subr.bf16.mxu0 %v905
        %1284 = vmatpush1.bf16.msra.mxu0 %v904
        %1285 = vmatprep.subr.bf16.mxu0 %v913
        %1286 = vmatpush1.bf16.msra.mxu0 %v912
        %1287 = vmatprep.subr.bf16.mxu0 %v921
        %1288 = vmatpush1.bf16.msra.mxu0 %v920
        %1289 = vmatprep.subr.bf16.mxu0 %v929
        %1290 = vmatpush1.bf16.msra.mxu0 %v928
        %1291 = vmatprep.subr.bf16.mxu0 %v937
        %1292 = vmatpush1.bf16.msra.mxu0 %v936
        %1293 = vmatprep.subr.bf16.mxu0 %v945
        %1294 = vmatpush1.bf16.msra.mxu0 %v944
        %1295 = vmatprep.subr.bf16.mxu0 %v953
        %1296 = vmatpush1.bf16.msra.mxu0 %v952
        %1297 = vmatprep.subr.bf16.mxu0 %v961
        %1298 = vmatpush1.bf16.msra.mxu0 %v960
        %1299 = vmatprep.subr.bf16.mxu0 %v969
        %1300 = vmatpush1.bf16.msra.mxu0 %v968
        %1301 = vmatprep.subr.bf16.mxu0 %v977
        %1302 = vmatpush1.bf16.msra.mxu0 %v976
        %1303 = vmatprep.subr.bf16.mxu0 %v985
        %1304 = vmatpush1.bf16.msra.mxu0 %v984
        %1305 = vmatprep.mubr.bf16.mxu0 %v343
        %1306 = vmatmul.mubr.bf16.gmra.mrb[0].mxu0 %v342
        %v1307 = vpop.f32.mrb[0].mxu0
        %v1308 = vadd.f32 0.0, %v1307
        %v1309 = vpop.f32.mrb[0].mxu0
        %v1310 = vadd.f32 0.0, %v1309
        %v1311 = vpop.f32.mrb[0].mxu0
        %v1312 = vadd.f32 0.0, %v1311
        %v1313 = vpop.f32.mrb[0].mxu0
        %v1314 = vadd.f32 0.0, %v1313
        %1315 = vmatprep.mubr.bf16.mxu0 %v345
        %1316 = vmatmul.mubr.bf16.gmra.mrb[0].mxu0 %v344
        %v1317 = vpop.f32.mrb[0].mxu0
        %v1318 = vadd.f32 0.0, %v1317
        %v1319 = vpop.f32.mrb[0].mxu0
        %v1320 = vadd.f32 0.0, %v1319
        %v1321 = vpop.f32.mrb[0].mxu0
        %v1322 = vadd.f32 0.0, %v1321
        %v1323 = vpop.f32.mrb[0].mxu0
        %v1324 = vadd.f32 0.0, %v1323
        %1325 = vdwg.mxu0
        %1326 = vrot.lane.b32.xlu0 %v1149, 33
        %v1327 = vpop.permute.xlu0 %1326
        %1328 = vrot.lane.b32.xlu0 %v1153, 33
        %v1329 = vpop.permute.xlu0 %1328
        %1330 = vrot.lane.b32.xlu0 %v1159, 33
        %v1331 = vpop.permute.xlu0 %1330
        %1332 = vrot.lane.b32.xlu0 %v1163, 33
        %v1333 = vpop.permute.xlu0 %1332
        %1334 = vrot.lane.b32.xlu0 %v1151, 33
        %v1335 = vpop.permute.xlu0 %1334
        %1336 = vrot.lane.b32.xlu0 %v1155, 33
        %v1337 = vpop.permute.xlu0 %1336
        %1338 = vrot.lane.b32.xlu0 %v1161, 33
        %v1339 = vpop.permute.xlu0 %1338
        %1340 = vrot.lane.b32.xlu0 %v1165, 33
        %v1341 = vpop.permute.xlu0 %1340
        %1342 = vrot.lane.b32.xlu0 %v1202, 33
        %v1343 = vpop.permute.xlu0 %1342
        %1344 = vrot.lane.b32.xlu0 %v1206, 33
        %v1345 = vpop.permute.xlu0 %1344
        %1346 = vrot.lane.b32.xlu0 %v1212, 33
        %v1347 = vpop.permute.xlu0 %1346
        %1348 = vrot.lane.b32.xlu0 %v1216, 33
        %v1349 = vpop.permute.xlu0 %1348
        %1350 = vrot.lane.b32.xlu0 %v1204, 33
        %v1351 = vpop.permute.xlu0 %1350
        %1352 = vrot.lane.b32.xlu0 %v1208, 33
        %v1353 = vpop.permute.xlu0 %1352
        %1354 = vrot.lane.b32.xlu0 %v1214, 33
        %v1355 = vpop.permute.xlu0 %1354
        %1356 = vrot.lane.b32.xlu0 %v1218, 33
        %v1357 = vpop.permute.xlu0 %1356
        %1358 = vrot.lane.b32.xlu0 %v1255, 33
        %v1359 = vpop.permute.xlu0 %1358
        %1360 = vrot.lane.b32.xlu0 %v1259, 33
        %v1361 = vpop.permute.xlu0 %1360
        %1362 = vrot.lane.b32.xlu0 %v1265, 33
        %v1363 = vpop.permute.xlu0 %1362
        %1364 = vrot.lane.b32.xlu0 %v1269, 33
        %v1365 = vpop.permute.xlu0 %1364
        %1366 = vrot.lane.b32.xlu0 %v1257, 33
        %v1367 = vpop.permute.xlu0 %1366
        %1368 = vrot.lane.b32.xlu0 %v1261, 33
        %v1369 = vpop.permute.xlu0 %1368
        %1370 = vrot.lane.b32.xlu0 %v1267, 33
        %v1371 = vpop.permute.xlu0 %1370
        %1372 = vrot.lane.b32.xlu0 %v1271, 33
        %v1373 = vpop.permute.xlu0 %1372
        %1374 = vrot.lane.b32.xlu0 %v1308, 33
        %v1375 = vpop.permute.xlu0 %1374
        %1376 = vrot.lane.b32.xlu0 %v1312, 33
        %v1377 = vpop.permute.xlu0 %1376
        %1378 = vrot.lane.b32.xlu0 %v1318, 33
        %v1379 = vpop.permute.xlu0 %1378
        %1380 = vrot.lane.b32.xlu0 %v1322, 33
        %v1381 = vpop.permute.xlu0 %1380
        %1382 = vrot.lane.b32.xlu0 %v1310, 33
        %v1383 = vpop.permute.xlu0 %1382
        %1384 = vrot.lane.b32.xlu0 %v1314, 33
        %v1385 = vpop.permute.xlu0 %1384
        %1386 = vrot.lane.b32.xlu0 %v1320, 33
        %v1387 = vpop.permute.xlu0 %1386
        %1388 = vrot.lane.b32.xlu0 %v1324, 33
        %v1389 = vpop.permute.xlu0 %1388
        %v1390 = vlaneseq
        %v1391 = vand.u32 %v1390, 127
        %vm1392 = vcmp.lt.s32.totalorder %v1391, 33
        %v1393 = vsel %vm1392, %v1375, %v1383
        %v1394 = vsel %vm1392, %v1377, %v1385
        %v1395 = vsel %vm1392, %v1379, %v1387
        %v1396 = vsel %vm1392, %v1381, %v1389
        %v1397 = vsel %vm1392, %v1367, %v1375
        %v1398 = vsel %vm1392, %v1369, %v1377
        %v1399 = vsel %vm1392, %v1371, %v1379
        %v1400 = vsel %vm1392, %v1373, %v1381
        %v1401 = vsel %vm1392, %v1359, %v1367
        %v1402 = vsel %vm1392, %v1361, %v1369
        %v1403 = vsel %vm1392, %v1363, %v1371
        %v1404 = vsel %vm1392, %v1365, %v1373
        %v1405 = vsel %vm1392, %v1351, %v1359
        %v1406 = vsel %vm1392, %v1353, %v1361
        %v1407 = vsel %vm1392, %v1355, %v1363
        %v1408 = vsel %vm1392, %v1357, %v1365
        %v1409 = vsel %vm1392, %v1343, %v1351
        %v1410 = vsel %vm1392, %v1345, %v1353
        %v1411 = vsel %vm1392, %v1347, %v1355
        %v1412 = vsel %vm1392, %v1349, %v1357
        %v1413 = vsel %vm1392, %v1335, %v1343
        %v1414 = vsel %vm1392, %v1337, %v1345
        %v1415 = vsel %vm1392, %v1339, %v1347
        %v1416 = vsel %vm1392, %v1341, %v1349
        %v1417 = vsel %vm1392, %v1327, %v1335
        %v1418 = vsel %vm1392, %v1329, %v1337
        %v1419 = vsel %vm1392, %v1331, %v1339
        %v1420 = vsel %vm1392, %v1333, %v1341
        %v1421 = vsel %vm1392, %v1383, %v1327
        %v1422 = vsel %vm1392, %v1385, %v1329
        %v1423 = vsel %vm1392, %v1387, %v1331
        %v1424 = vsel %vm1392, %v1389, %v1333
        %v1425 = vld [vmem:[#allocation8] sm:$0xff]
        %v1427 = vlaneseq
        %v1428 = vshrl.u32 %v1427, 7
        %v1429 = vsub.s32 0, %v1428
        %v1430 = vrot.slane %v1425, %v1429
        %v1431 = vlaneseq
        %v1432 = vshrl.u32 %v1431, 7
        %v1433 = vsub.s32 1, %v1432
        %v1434 = vrot.slane %v1425, %v1433
        %v1435 = vlaneseq
        %v1436 = vshrl.u32 %v1435, 7
        %v1437 = vsub.s32 2, %v1436
        %v1438 = vrot.slane %v1425, %v1437
        %v1439 = vlaneseq
        %v1440 = vshrl.u32 %v1439, 7
        %v1441 = vsub.s32 3, %v1440
        %v1442 = vrot.slane %v1425, %v1441
        %v1443 = vlaneseq
        %v1444 = vshrl.u32 %v1443, 7
        %v1445 = vsub.s32 4, %v1444
        %v1446 = vrot.slane %v1425, %v1445
        %v1447 = vlaneseq
        %v1448 = vshrl.u32 %v1447, 7
        %v1449 = vsub.s32 5, %v1448
        %v1450 = vrot.slane %v1425, %v1449
        %v1451 = vlaneseq
        %v1452 = vshrl.u32 %v1451, 7
        %v1453 = vsub.s32 6, %v1452
        %v1454 = vrot.slane %v1425, %v1453
        %v1455 = vlaneseq
        %v1456 = vshrl.u32 %v1455, 7
        %v1457 = vsub.s32 7, %v1456
        %v1458 = vrot.slane %v1425, %v1457
        %v1467 = vmul.f32 %v1421, %v1430
        %v1468 = vmul.f32 %v1417, %v1434
        %v1469 = vmul.f32 %v1413, %v1438
        %v1470 = vmul.f32 %v1409, %v1442
        %v1471 = vmul.f32 %v1405, %v1446
        %v1472 = vmul.f32 %v1401, %v1450
        %v1473 = vmul.f32 %v1397, %v1454
        %v1474 = vmul.f32 %v1393, %v1458
        %v1475 = vmul.f32 %v1422, %v1430
        %v1476 = vmul.f32 %v1418, %v1434
        %v1477 = vmul.f32 %v1414, %v1438
        %v1478 = vmul.f32 %v1410, %v1442
        %v1479 = vmul.f32 %v1406, %v1446
        %v1480 = vmul.f32 %v1402, %v1450
        %v1481 = vmul.f32 %v1398, %v1454
        %v1482 = vmul.f32 %v1394, %v1458
        %v1483 = vmul.f32 %v1423, %v1430
        %v1484 = vmul.f32 %v1419, %v1434
        %v1485 = vmul.f32 %v1415, %v1438
        %v1486 = vmul.f32 %v1411, %v1442
        %v1487 = vmul.f32 %v1407, %v1446
        %v1488 = vmul.f32 %v1403, %v1450
        %v1489 = vmul.f32 %v1399, %v1454
        %v1490 = vmul.f32 %v1395, %v1458
        %v1491 = vmul.f32 %v1424, %v1430
        %v1492 = vmul.f32 %v1420, %v1434
        %v1493 = vmul.f32 %v1416, %v1438
        %v1494 = vmul.f32 %v1412, %v1442
        %v1495 = vmul.f32 %v1408, %v1446
        %v1496 = vmul.f32 %v1404, %v1450
        %v1497 = vmul.f32 %v1400, %v1454
        %v1498 = vmul.f32 %v1396, %v1458
        %v1499 = vld [vmem:[#allocation7] sm:$0xf]
        %v1500 = vld [vmem:[#allocation7 + $0x4] sm:$0xf]
        %v1501 = vpack.c.bf16 %v1475, %v1467
        %v1502 = vpack.c.bf16 %v1476, %v1468
        %v1503 = vpack.c.bf16 %v1477, %v1469
        %v1504 = vpack.c.bf16 %v1478, %v1470
        %v1505 = vpack.c.bf16 %v1479, %v1471
        %v1506 = vpack.c.bf16 %v1480, %v1472
        %v1507 = vpack.c.bf16 %v1481, %v1473
        %v1508 = vpack.c.bf16 %v1482, %v1474
        %v1509 = vpack.c.bf16 %v1491, %v1483
        %v1510 = vpack.c.bf16 %v1492, %v1484
        %v1511 = vpack.c.bf16 %v1493, %v1485
        %v1512 = vpack.c.bf16 %v1494, %v1486
        %v1513 = vpack.c.bf16 %v1495, %v1487
        %v1514 = vpack.c.bf16 %v1496, %v1488
        %v1515 = vpack.c.bf16 %v1497, %v1489
        %v1516 = vpack.c.bf16 %v1498, %v1490
        %1517 = vrot.lane.b32.xlu0 %v1149, 32
        %v1518 = vpop.permute.xlu0 %1517
        %1519 = vrot.lane.b32.xlu0 %v1153, 32
        %v1520 = vpop.permute.xlu0 %1519
        %1521 = vrot.lane.b32.xlu0 %v1159, 32
        %v1522 = vpop.permute.xlu0 %1521
        %1523 = vrot.lane.b32.xlu0 %v1163, 32
        %v1524 = vpop.permute.xlu0 %1523
        %1525 = vrot.lane.b32.xlu0 %v1151, 32
        %v1526 = vpop.permute.xlu0 %1525
        %1527 = vrot.lane.b32.xlu0 %v1155, 32
        %v1528 = vpop.permute.xlu0 %1527
        %1529 = vrot.lane.b32.xlu0 %v1161, 32
        %v1530 = vpop.permute.xlu0 %1529
        %1531 = vrot.lane.b32.xlu0 %v1165, 32
        %v1532 = vpop.permute.xlu0 %1531
        %1533 = vrot.lane.b32.xlu0 %v1202, 32
        %v1534 = vpop.permute.xlu0 %1533
        %1535 = vrot.lane.b32.xlu0 %v1206, 32
        %v1536 = vpop.permute.xlu0 %1535
        %1537 = vrot.lane.b32.xlu0 %v1212, 32
        %v1538 = vpop.permute.xlu0 %1537
        %1539 = vrot.lane.b32.xlu0 %v1216, 32
        %v1540 = vpop.permute.xlu0 %1539
        %1541 = vrot.lane.b32.xlu0 %v1204, 32
        %v1542 = vpop.permute.xlu0 %1541
        %1543 = vrot.lane.b32.xlu0 %v1208, 32
        %v1544 = vpop.permute.xlu0 %1543
        %1545 = vrot.lane.b32.xlu0 %v1214, 32
        %v1546 = vpop.permute.xlu0 %1545
        %1547 = vrot.lane.b32.xlu0 %v1218, 32
        %v1548 = vpop.permute.xlu0 %1547
        %1549 = vrot.lane.b32.xlu0 %v1255, 32
        %v1550 = vpop.permute.xlu0 %1549
        %1551 = vrot.lane.b32.xlu0 %v1259, 32
        %v1552 = vpop.permute.xlu0 %1551
        %1553 = vrot.lane.b32.xlu0 %v1265, 32
        %v1554 = vpop.permute.xlu0 %1553
        %1555 = vrot.lane.b32.xlu0 %v1269, 32
        %v1556 = vpop.permute.xlu0 %1555
        %1557 = vrot.lane.b32.xlu0 %v1257, 32
        %v1558 = vpop.permute.xlu0 %1557
        %1559 = vrot.lane.b32.xlu0 %v1261, 32
        %v1560 = vpop.permute.xlu0 %1559
        %1561 = vrot.lane.b32.xlu0 %v1267, 32
        %v1562 = vpop.permute.xlu0 %1561
        %1563 = vrot.lane.b32.xlu0 %v1271, 32
        %v1564 = vpop.permute.xlu0 %1563
        %1565 = vrot.lane.b32.xlu0 %v1308, 32
        %v1566 = vpop.permute.xlu0 %1565
        %1567 = vrot.lane.b32.xlu0 %v1312, 32
        %v1568 = vpop.permute.xlu0 %1567
        %1569 = vrot.lane.b32.xlu0 %v1318, 32
        %v1570 = vpop.permute.xlu0 %1569
        %1571 = vrot.lane.b32.xlu0 %v1322, 32
        %v1572 = vpop.permute.xlu0 %1571
        %1573 = vrot.lane.b32.xlu0 %v1310, 32
        %v1574 = vpop.permute.xlu0 %1573
        %1575 = vrot.lane.b32.xlu0 %v1314, 32
        %v1576 = vpop.permute.xlu0 %1575
        %1577 = vrot.lane.b32.xlu0 %v1320, 32
        %v1578 = vpop.permute.xlu0 %1577
        %1579 = vrot.lane.b32.xlu0 %v1324, 32
        %v1580 = vpop.permute.xlu0 %1579
        %vm1581 = vcmp.lt.s32.totalorder %v1391, 32
        %v1582 = vsel %vm1581, %v1566, %v1574
        %v1583 = vsel %vm1581, %v1568, %v1576
        %v1584 = vsel %vm1581, %v1570, %v1578
        %v1585 = vsel %vm1581, %v1572, %v1580
        %v1586 = vsel %vm1581, %v1558, %v1566
        %v1587 = vsel %vm1581, %v1560, %v1568
        %v1588 = vsel %vm1581, %v1562, %v1570
        %v1589 = vsel %vm1581, %v1564, %v1572
        %v1590 = vsel %vm1581, %v1550, %v1558
        %v1591 = vsel %vm1581, %v1552, %v1560
        %v1592 = vsel %vm1581, %v1554, %v1562
        %v1593 = vsel %vm1581, %v1556, %v1564
        %v1594 = vsel %vm1581, %v1542, %v1550
        %v1595 = vsel %vm1581, %v1544, %v1552
        %v1596 = vsel %vm1581, %v1546, %v1554
        %v1597 = vsel %vm1581, %v1548, %v1556
        %v1598 = vsel %vm1581, %v1534, %v1542
        %v1599 = vsel %vm1581, %v1536, %v1544
        %v1600 = vsel %vm1581, %v1538, %v1546
        %v1601 = vsel %vm1581, %v1540, %v1548
        %v1602 = vsel %vm1581, %v1526, %v1534
        %v1603 = vsel %vm1581, %v1528, %v1536
        %v1604 = vsel %vm1581, %v1530, %v1538
        %v1605 = vsel %vm1581, %v1532, %v1540
        %v1606 = vsel %vm1581, %v1518, %v1526
        %v1607 = vsel %vm1581, %v1520, %v1528
        %v1608 = vsel %vm1581, %v1522, %v1530
        %v1609 = vsel %vm1581, %v1524, %v1532
        %v1610 = vsel %vm1581, %v1574, %v1518
        %v1611 = vsel %vm1581, %v1576, %v1520
        %v1612 = vsel %vm1581, %v1578, %v1522
        %v1613 = vsel %vm1581, %v1580, %v1524
        %s1614 = scalar_lea.vmem [#allocation8], 8
        %v1615 = vld [vmem:[%s1614] sm:$0xff]
        %v1617 = vlaneseq
        %v1618 = vshrl.u32 %v1617, 7
        %v1619 = vsub.s32 0, %v1618
        %v1620 = vrot.slane %v1615, %v1619
        %v1621 = vlaneseq
        %v1622 = vshrl.u32 %v1621, 7
        %v1623 = vsub.s32 1, %v1622
        %v1624 = vrot.slane %v1615, %v1623
        %v1625 = vlaneseq
        %v1626 = vshrl.u32 %v1625, 7
        %v1627 = vsub.s32 2, %v1626
        %v1628 = vrot.slane %v1615, %v1627
        %v1629 = vlaneseq
        %v1630 = vshrl.u32 %v1629, 7
        %v1631 = vsub.s32 3, %v1630
        %v1632 = vrot.slane %v1615, %v1631
        %v1633 = vlaneseq
        %v1634 = vshrl.u32 %v1633, 7
        %v1635 = vsub.s32 4, %v1634
        %v1636 = vrot.slane %v1615, %v1635
        %v1637 = vlaneseq
        %v1638 = vshrl.u32 %v1637, 7
        %v1639 = vsub.s32 5, %v1638
        %v1640 = vrot.slane %v1615, %v1639
        %v1641 = vlaneseq
        %v1642 = vshrl.u32 %v1641, 7
        %v1643 = vsub.s32 6, %v1642
        %v1644 = vrot.slane %v1615, %v1643
        %v1645 = vlaneseq
        %v1646 = vshrl.u32 %v1645, 7
        %v1647 = vsub.s32 7, %v1646
        %v1648 = vrot.slane %v1615, %v1647
        %v1657 = vmul.f32 %v1610, %v1620
        %v1658 = vmul.f32 %v1606, %v1624
        %v1659 = vmul.f32 %v1602, %v1628
        %v1660 = vmul.f32 %v1598, %v1632
        %v1661 = vmul.f32 %v1594, %v1636
        %v1662 = vmul.f32 %v1590, %v1640
        %v1663 = vmul.f32 %v1586, %v1644
        %v1664 = vmul.f32 %v1582, %v1648
        %v1665 = vmul.f32 %v1611, %v1620
        %v1666 = vmul.f32 %v1607, %v1624
        %v1667 = vmul.f32 %v1603, %v1628
        %v1668 = vmul.f32 %v1599, %v1632
        %v1669 = vmul.f32 %v1595, %v1636
        %v1670 = vmul.f32 %v1591, %v1640
        %v1671 = vmul.f32 %v1587, %v1644
        %v1672 = vmul.f32 %v1583, %v1648
        %v1673 = vmul.f32 %v1612, %v1620
        %v1674 = vmul.f32 %v1608, %v1624
        %v1675 = vmul.f32 %v1604, %v1628
        %v1676 = vmul.f32 %v1600, %v1632
        %v1677 = vmul.f32 %v1596, %v1636
        %v1678 = vmul.f32 %v1592, %v1640
        %v1679 = vmul.f32 %v1588, %v1644
        %v1680 = vmul.f32 %v1584, %v1648
        %v1681 = vmul.f32 %v1613, %v1620
        %v1682 = vmul.f32 %v1609, %v1624
        %v1683 = vmul.f32 %v1605, %v1628
        %v1684 = vmul.f32 %v1601, %v1632
        %v1685 = vmul.f32 %v1597, %v1636
        %v1686 = vmul.f32 %v1593, %v1640
        %v1687 = vmul.f32 %v1589, %v1644
        %v1688 = vmul.f32 %v1585, %v1648
        %s1689 = scalar_lea.vmem [#allocation7], 8
        %v1690 = vld [vmem:[%s1689] sm:$0xf]
        %v1691 = vld [vmem:[%s1689 + $0x4] sm:$0xf]
        %v1692 = vpack.c.bf16 %v1665, %v1657
        %v1693 = vpack.c.bf16 %v1666, %v1658
        %v1694 = vpack.c.bf16 %v1667, %v1659
        %v1695 = vpack.c.bf16 %v1668, %v1660
        %v1696 = vpack.c.bf16 %v1669, %v1661
        %v1697 = vpack.c.bf16 %v1670, %v1662
        %v1698 = vpack.c.bf16 %v1671, %v1663
        %v1699 = vpack.c.bf16 %v1672, %v1664
        %v1700 = vpack.c.bf16 %v1681, %v1673
        %v1701 = vpack.c.bf16 %v1682, %v1674
        %v1702 = vpack.c.bf16 %v1683, %v1675
        %v1703 = vpack.c.bf16 %v1684, %v1676
        %v1704 = vpack.c.bf16 %v1685, %v1677
        %v1705 = vpack.c.bf16 %v1686, %v1678
        %v1706 = vpack.c.bf16 %v1687, %v1679
        %v1707 = vpack.c.bf16 %v1688, %v1680
        %v1710 = vunpack.c.l.b16 %v1690
        %v1711 = vunpack.c.l.b16 %v1691
        %v1712 = vpack.c.b16 %v1711, %v1710
        %vm1713 = vcmask 261120
        %v1715 = vsel %vm1713, %v1712, 0
        %1717 = vmatprep.subr.bf16.mxu0 %v1693
        %1718 = vmatpush1.bf16.msra.mxu0 %v1692
        %1719 = vmatprep.subr.bf16.mxu0 %v1701
        %1720 = vmatpush1.bf16.msra.mxu0 %v1700
        %1721 = vmatprep.subr.bf16.mxu0 0
        %1722 = vmatpush1.bf16.msra.mxu0 0
        %1723 = vmatprep.subr.bf16.mxu0 0
        %1724 = vmatpush1.bf16.msra.mxu0 0
        %1725 = vmatprep.subr.bf16.mxu0 0
        %1726 = vmatpush1.bf16.msra.mxu0 0
        %1727 = vmatprep.subr.bf16.mxu0 0
        %1728 = vmatpush1.bf16.msra.mxu0 0
        %1729 = vmatprep.subr.bf16.mxu0 0
        %1730 = vmatpush1.bf16.msra.mxu0 0
        %1731 = vmatprep.subr.bf16.mxu0 0
        %1732 = vmatpush1.bf16.msra.mxu0 0
        %1733 = vmatprep.subr.bf16.mxu0 0
        %1734 = vmatpush1.bf16.msra.mxu0 0
        %1735 = vmatprep.subr.bf16.mxu0 0
        %1736 = vmatpush1.bf16.msra.mxu0 0
        %1737 = vmatprep.subr.bf16.mxu0 0
        %1738 = vmatpush1.bf16.msra.mxu0 0
        %1739 = vmatprep.subr.bf16.mxu0 0
        %1740 = vmatpush1.bf16.msra.mxu0 0
        %1741 = vmatprep.subr.bf16.mxu0 0
        %1742 = vmatpush1.bf16.msra.mxu0 0
        %1743 = vmatprep.subr.bf16.mxu0 0
        %1744 = vmatpush1.bf16.msra.mxu0 0
        %1745 = vmatprep.subr.bf16.mxu0 0
        %1746 = vmatpush1.bf16.msra.mxu0 0
        %1747 = vmatprep.subr.bf16.mxu0 0
        %1748 = vmatpush1.bf16.msra.mxu0 0
        %1749 = vmatprep.mubr.bf16.mxu0 0
        %1750 = vmatmul.mubr.bf16.gmra.mrb[0].mxu0 %v1715
        %v1751 = vpop.f32.mrb[0].mxu0
        %v1752 = vadd.f32 0.0, %v1751
        %v1753 = vpop.f32.mrb[0].mxu0
        %v1754 = vadd.f32 0.0, %v1753
        %v1755 = vpop.f32.mrb[0].mxu0
        %v1756 = vadd.f32 0.0, %v1755
        %v1757 = vpop.f32.mrb[0].mxu0
        %v1758 = vadd.f32 0.0, %v1757
        %1759 = vdwg.mxu0
        %1760 = vmatprep.subr.bf16.mxu0 %v1695
        %1761 = vmatpush1.bf16.msra.mxu0 %v1694
        %1762 = vmatprep.subr.bf16.mxu0 %v1703
        %1763 = vmatpush1.bf16.msra.mxu0 %v1702
        %1764 = vmatprep.subr.bf16.mxu0 0
        %1765 = vmatpush1.bf16.msra.mxu0 0
        %1766 = vmatprep.subr.bf16.mxu0 0
        %1767 = vmatpush1.bf16.msra.mxu0 0
        %1768 = vmatprep.subr.bf16.mxu0 0
        %1769 = vmatpush1.bf16.msra.mxu0 0
        %1770 = vmatprep.subr.bf16.mxu0 0
        %1771 = vmatpush1.bf16.msra.mxu0 0
        %1772 = vmatprep.subr.bf16.mxu0 0
        %1773 = vmatpush1.bf16.msra.mxu0 0
        %1774 = vmatprep.subr.bf16.mxu0 0
        %1775 = vmatpush1.bf16.msra.mxu0 0
        %1776 = vmatprep.subr.bf16.mxu0 0
        %1777 = vmatpush1.bf16.msra.mxu0 0
        %1778 = vmatprep.subr.bf16.mxu0 0
        %1779 = vmatpush1.bf16.msra.mxu0 0
        %1780 = vmatprep.subr.bf16.mxu0 0
        %1781 = vmatpush1.bf16.msra.mxu0 0
        %1782 = vmatprep.subr.bf16.mxu0 0
        %1783 = vmatpush1.bf16.msra.mxu0 0
        %1784 = vmatprep.subr.bf16.mxu0 0
        %1785 = vmatpush1.bf16.msra.mxu0 0
        %1786 = vmatprep.subr.bf16.mxu0 0
        %1787 = vmatpush1.bf16.msra.mxu0 0
        %1788 = vmatprep.subr.bf16.mxu0 0
        %1789 = vmatpush1.bf16.msra.mxu0 0
        %1790 = vmatprep.subr.bf16.mxu0 0
        %1791 = vmatpush1.bf16.msra.mxu0 0
        %1792 = vmatprep.mubr.bf16.mxu0 0
        %1793 = vmatmul.mubr.bf16.gmra.mrb[0].mxu0 %v1715
        %v1794 = vpop.f32.mrb[0].mxu0
        %v1795 = vadd.f32 0.0, %v1794
        %v1796 = vpop.f32.mrb[0].mxu0
        %v1797 = vadd.f32 0.0, %v1796
        %v1798 = vpop.f32.mrb[0].mxu0
        %v1799 = vadd.f32 0.0, %v1798
        %v1800 = vpop.f32.mrb[0].mxu0
        %v1801 = vadd.f32 0.0, %v1800
        %1802 = vdwg.mxu0
        %1803 = vmatprep.subr.bf16.mxu0 %v1697
        %1804 = vmatpush1.bf16.msra.mxu0 %v1696
        %1805 = vmatprep.subr.bf16.mxu0 %v1705
        %1806 = vmatpush1.bf16.msra.mxu0 %v1704
        %1807 = vmatprep.subr.bf16.mxu0 0
        %1808 = vmatpush1.bf16.msra.mxu0 0
        %1809 = vmatprep.subr.bf16.mxu0 0
        %1810 = vmatpush1.bf16.msra.mxu0 0
        %1811 = vmatprep.subr.bf16.mxu0 0
        %1812 = vmatpush1.bf16.msra.mxu0 0
        %1813 = vmatprep.subr.bf16.mxu0 0
        %1814 = vmatpush1.bf16.msra.mxu0 0
        %1815 = vmatprep.subr.bf16.mxu0 0
        %1816 = vmatpush1.bf16.msra.mxu0 0
        %1817 = vmatprep.subr.bf16.mxu0 0
        %1818 = vmatpush1.bf16.msra.mxu0 0
        %1819 = vmatprep.subr.bf16.mxu0 0
        %1820 = vmatpush1.bf16.msra.mxu0 0
        %1821 = vmatprep.subr.bf16.mxu0 0
        %1822 = vmatpush1.bf16.msra.mxu0 0
        %1823 = vmatprep.subr.bf16.mxu0 0
        %1824 = vmatpush1.bf16.msra.mxu0 0
        %1825 = vmatprep.subr.bf16.mxu0 0
        %1826 = vmatpush1.bf16.msra.mxu0 0
        %1827 = vmatprep.subr.bf16.mxu0 0
        %1828 = vmatpush1.bf16.msra.mxu0 0
        %1829 = vmatprep.subr.bf16.mxu0 0
        %1830 = vmatpush1.bf16.msra.mxu0 0
        %1831 = vmatprep.subr.bf16.mxu0 0
        %1832 = vmatpush1.bf16.msra.mxu0 0
        %1833 = vmatprep.subr.bf16.mxu0 0
        %1834 = vmatpush1.bf16.msra.mxu0 0
        %1835 = vmatprep.mubr.bf16.mxu0 0
        %1836 = vmatmul.mubr.bf16.gmra.mrb[0].mxu0 %v1715
        %v1837 = vpop.f32.mrb[0].mxu0
        %v1838 = vadd.f32 0.0, %v1837
        %v1839 = vpop.f32.mrb[0].mxu0
        %v1840 = vadd.f32 0.0, %v1839
        %v1841 = vpop.f32.mrb[0].mxu0
        %v1842 = vadd.f32 0.0, %v1841
        %v1843 = vpop.f32.mrb[0].mxu0
        %v1844 = vadd.f32 0.0, %v1843
        %1845 = vdwg.mxu0
        %1846 = vmatprep.subr.bf16.mxu0 %v1699
        %1847 = vmatpush1.bf16.msra.mxu0 %v1698
        %1848 = vmatprep.subr.bf16.mxu0 %v1707
        %1849 = vmatpush1.bf16.msra.mxu0 %v1706
        %1850 = vmatprep.subr.bf16.mxu0 0
        %1851 = vmatpush1.bf16.msra.mxu0 0
        %1852 = vmatprep.subr.bf16.mxu0 0
        %1853 = vmatpush1.bf16.msra.mxu0 0
        %1854 = vmatprep.subr.bf16.mxu0 0
        %1855 = vmatpush1.bf16.msra.mxu0 0
        %1856 = vmatprep.subr.bf16.mxu0 0
        %1857 = vmatpush1.bf16.msra.mxu0 0
        %1858 = vmatprep.subr.bf16.mxu0 0
        %1859 = vmatpush1.bf16.msra.mxu0 0
        %1860 = vmatprep.subr.bf16.mxu0 0
        %1861 = vmatpush1.bf16.msra.mxu0 0
        %1862 = vmatprep.subr.bf16.mxu0 0
        %1863 = vmatpush1.bf16.msra.mxu0 0
        %1864 = vmatprep.subr.bf16.mxu0 0
        %1865 = vmatpush1.bf16.msra.mxu0 0
        %1866 = vmatprep.subr.bf16.mxu0 0
        %1867 = vmatpush1.bf16.msra.mxu0 0
        %1868 = vmatprep.subr.bf16.mxu0 0
        %1869 = vmatpush1.bf16.msra.mxu0 0
        %1870 = vmatprep.subr.bf16.mxu0 0
        %1871 = vmatpush1.bf16.msra.mxu0 0
        %1872 = vmatprep.subr.bf16.mxu0 0
        %1873 = vmatpush1.bf16.msra.mxu0 0
        %1874 = vmatprep.subr.bf16.mxu0 0
        %1875 = vmatpush1.bf16.msra.mxu0 0
        %1876 = vmatprep.subr.bf16.mxu0 0
        %1877 = vmatpush1.bf16.msra.mxu0 0
        %1878 = vmatprep.mubr.bf16.mxu0 0
        %1879 = vmatmul.mubr.bf16.gmra.mrb[0].mxu0 %v1715
        %v1880 = vpop.f32.mrb[0].mxu0
        %v1881 = vadd.f32 0.0, %v1880
        %v1882 = vpop.f32.mrb[0].mxu0
        %v1883 = vadd.f32 0.0, %v1882
        %v1884 = vpop.f32.mrb[0].mxu0
        %v1885 = vadd.f32 0.0, %v1884
        %v1886 = vpop.f32.mrb[0].mxu0
        %v1887 = vadd.f32 0.0, %v1886
        %1888 = vdwg.mxu0
        %v1891 = vunpack.c.l.b16 %v1499
        %v1892 = vunpack.c.l.b16 %v1500
        %v1893 = vpack.c.b16 %v1892, %v1891
        %v1895 = vsel %vm1713, %v1893, 0
        %1897 = vmatprep.subr.bf16.mxu0 %v1502
        %1898 = vmatpush1.bf16.msra.mxu0 %v1501
        %1899 = vmatprep.subr.bf16.mxu0 %v1510
        %1900 = vmatpush1.bf16.msra.mxu0 %v1509
        %1901 = vmatprep.subr.bf16.mxu0 0
        %1902 = vmatpush1.bf16.msra.mxu0 0
        %1903 = vmatprep.subr.bf16.mxu0 0
        %1904 = vmatpush1.bf16.msra.mxu0 0
        %1905 = vmatprep.subr.bf16.mxu0 0
        %1906 = vmatpush1.bf16.msra.mxu0 0
        %1907 = vmatprep.subr.bf16.mxu0 0
        %1908 = vmatpush1.bf16.msra.mxu0 0
        %1909 = vmatprep.subr.bf16.mxu0 0
        %1910 = vmatpush1.bf16.msra.mxu0 0
        %1911 = vmatprep.subr.bf16.mxu0 0
        %1912 = vmatpush1.bf16.msra.mxu0 0
        %1913 = vmatprep.subr.bf16.mxu0 0
        %1914 = vmatpush1.bf16.msra.mxu0 0
        %1915 = vmatprep.subr.bf16.mxu0 0
        %1916 = vmatpush1.bf16.msra.mxu0 0
        %1917 = vmatprep.subr.bf16.mxu0 0
        %1918 = vmatpush1.bf16.msra.mxu0 0
        %1919 = vmatprep.subr.bf16.mxu0 0
        %1920 = vmatpush1.bf16.msra.mxu0 0
        %1921 = vmatprep.subr.bf16.mxu0 0
        %1922 = vmatpush1.bf16.msra.mxu0 0
        %1923 = vmatprep.subr.bf16.mxu0 0
        %1924 = vmatpush1.bf16.msra.mxu0 0
        %1925 = vmatprep.subr.bf16.mxu0 0
        %1926 = vmatpush1.bf16.msra.mxu0 0
        %1927 = vmatprep.subr.bf16.mxu0 0
        %1928 = vmatpush1.bf16.msra.mxu0 0
        %1929 = vmatprep.mubr.bf16.mxu0 0
        %1930 = vmatmul.mubr.bf16.gmra.mrb[0].mxu0 %v1895
        %v1931 = vpop.f32.mrb[0].mxu0
        %v1932 = vadd.f32 %v1752, %v1931
        %v1933 = vpop.f32.mrb[0].mxu0
        %v1934 = vadd.f32 %v1754, %v1933
        %v1935 = vpop.f32.mrb[0].mxu0
        %v1936 = vadd.f32 %v1756, %v1935
        %v1937 = vpop.f32.mrb[0].mxu0
        %v1938 = vadd.f32 %v1758, %v1937
        %1939 = vdwg.mxu0
        %1940 = vmatprep.subr.bf16.mxu0 %v1504
        %1941 = vmatpush1.bf16.msra.mxu0 %v1503
        %1942 = vmatprep.subr.bf16.mxu0 %v1512
        %1943 = vmatpush1.bf16.msra.mxu0 %v1511
        %1944 = vmatprep.subr.bf16.mxu0 0
        %1945 = vmatpush1.bf16.msra.mxu0 0
        %1946 = vmatprep.subr.bf16.mxu0 0
        %1947 = vmatpush1.bf16.msra.mxu0 0
        %1948 = vmatprep.subr.bf16.mxu0 0
        %1949 = vmatpush1.bf16.msra.mxu0 0
        %1950 = vmatprep.subr.bf16.mxu0 0
        %1951 = vmatpush1.bf16.msra.mxu0 0
        %1952 = vmatprep.subr.bf16.mxu0 0
        %1953 = vmatpush1.bf16.msra.mxu0 0
        %1954 = vmatprep.subr.bf16.mxu0 0
        %1955 = vmatpush1.bf16.msra.mxu0 0
        %1956 = vmatprep.subr.bf16.mxu0 0
        %1957 = vmatpush1.bf16.msra.mxu0 0
        %1958 = vmatprep.subr.bf16.mxu0 0
        %1959 = vmatpush1.bf16.msra.mxu0 0
        %1960 = vmatprep.subr.bf16.mxu0 0
        %1961 = vmatpush1.bf16.msra.mxu0 0
        %1962 = vmatprep.subr.bf16.mxu0 0
        %1963 = vmatpush1.bf16.msra.mxu0 0
        %1964 = vmatprep.subr.bf16.mxu0 0
        %1965 = vmatpush1.bf16.msra.mxu0 0
        %1966 = vmatprep.subr.bf16.mxu0 0
        %1967 = vmatpush1.bf16.msra.mxu0 0
        %1968 = vmatprep.subr.bf16.mxu0 0
        %1969 = vmatpush1.bf16.msra.mxu0 0
        %1970 = vmatprep.subr.bf16.mxu0 0
        %1971 = vmatpush1.bf16.msra.mxu0 0
        %1972 = vmatprep.mubr.bf16.mxu0 0
        %1973 = vmatmul.mubr.bf16.gmra.mrb[0].mxu0 %v1895
        %v1974 = vpop.f32.mrb[0].mxu0
        %v1975 = vadd.f32 %v1795, %v1974
        %v1976 = vpop.f32.mrb[0].mxu0
        %v1977 = vadd.f32 %v1797, %v1976
        %v1978 = vpop.f32.mrb[0].mxu0
        %v1979 = vadd.f32 %v1799, %v1978
        %v1980 = vpop.f32.mrb[0].mxu0
        %v1981 = vadd.f32 %v1801, %v1980
        %1982 = vdwg.mxu0
        %1983 = vmatprep.subr.bf16.mxu0 %v1506
        %1984 = vmatpush1.bf16.msra.mxu0 %v1505
        %1985 = vmatprep.subr.bf16.mxu0 %v1514
        %1986 = vmatpush1.bf16.msra.mxu0 %v1513
        %1987 = vmatprep.subr.bf16.mxu0 0
        %1988 = vmatpush1.bf16.msra.mxu0 0
        %1989 = vmatprep.subr.bf16.mxu0 0
        %1990 = vmatpush1.bf16.msra.mxu0 0
        %1991 = vmatprep.subr.bf16.mxu0 0
        %1992 = vmatpush1.bf16.msra.mxu0 0
        %1993 = vmatprep.subr.bf16.mxu0 0
        %1994 = vmatpush1.bf16.msra.mxu0 0
        %1995 = vmatprep.subr.bf16.mxu0 0
        %1996 = vmatpush1.bf16.msra.mxu0 0
        %1997 = vmatprep.subr.bf16.mxu0 0
        %1998 = vmatpush1.bf16.msra.mxu0 0
        %1999 = vmatprep.subr.bf16.mxu0 0
        %2000 = vmatpush1.bf16.msra.mxu0 0
        %2001 = vmatprep.subr.bf16.mxu0 0
        %2002 = vmatpush1.bf16.msra.mxu0 0
        %2003 = vmatprep.subr.bf16.mxu0 0
        %2004 = vmatpush1.bf16.msra.mxu0 0
        %2005 = vmatprep.subr.bf16.mxu0 0
        %2006 = vmatpush1.bf16.msra.mxu0 0
        %2007 = vmatprep.subr.bf16.mxu0 0
        %2008 = vmatpush1.bf16.msra.mxu0 0
        %2009 = vmatprep.subr.bf16.mxu0 0
        %2010 = vmatpush1.bf16.msra.mxu0 0
        %2011 = vmatprep.subr.bf16.mxu0 0
        %2012 = vmatpush1.bf16.msra.mxu0 0
        %2013 = vmatprep.subr.bf16.mxu0 0
        %2014 = vmatpush1.bf16.msra.mxu0 0
        %2015 = vmatprep.mubr.bf16.mxu0 0
        %2016 = vmatmul.mubr.bf16.gmra.mrb[0].mxu0 %v1895
        %v2017 = vpop.f32.mrb[0].mxu0
        %v2018 = vadd.f32 %v1838, %v2017
        %v2019 = vpop.f32.mrb[0].mxu0
        %v2020 = vadd.f32 %v1840, %v2019
        %v2021 = vpop.f32.mrb[0].mxu0
        %v2022 = vadd.f32 %v1842, %v2021
        %v2023 = vpop.f32.mrb[0].mxu0
        %v2024 = vadd.f32 %v1844, %v2023
        %2025 = vdwg.mxu0
        %2026 = vmatprep.subr.bf16.mxu0 %v1508
        %2027 = vmatpush1.bf16.msra.mxu0 %v1507
        %2028 = vmatprep.subr.bf16.mxu0 %v1516
        %2029 = vmatpush1.bf16.msra.mxu0 %v1515
        %2030 = vmatprep.subr.bf16.mxu0 0
        %2031 = vmatpush1.bf16.msra.mxu0 0
        %2032 = vmatprep.subr.bf16.mxu0 0
        %2033 = vmatpush1.bf16.msra.mxu0 0
        %2034 = vmatprep.subr.bf16.mxu0 0
        %2035 = vmatpush1.bf16.msra.mxu0 0
        %2036 = vmatprep.subr.bf16.mxu0 0
        %2037 = vmatpush1.bf16.msra.mxu0 0
        %2038 = vmatprep.subr.bf16.mxu0 0
        %2039 = vmatpush1.bf16.msra.mxu0 0
        %2040 = vmatprep.subr.bf16.mxu0 0
        %2041 = vmatpush1.bf16.msra.mxu0 0
        %2042 = vmatprep.subr.bf16.mxu0 0
        %2043 = vmatpush1.bf16.msra.mxu0 0
        %2044 = vmatprep.subr.bf16.mxu0 0
        %2045 = vmatpush1.bf16.msra.mxu0 0
        %2046 = vmatprep.subr.bf16.mxu0 0
        %2047 = vmatpush1.bf16.msra.mxu0 0
        %2048 = vmatprep.subr.bf16.mxu0 0
        %2049 = vmatpush1.bf16.msra.mxu0 0
        %2050 = vmatprep.subr.bf16.mxu0 0
        %2051 = vmatpush1.bf16.msra.mxu0 0
        %2052 = vmatprep.subr.bf16.mxu0 0
        %2053 = vmatpush1.bf16.msra.mxu0 0
        %2054 = vmatprep.subr.bf16.mxu0 0
        %2055 = vmatpush1.bf16.msra.mxu0 0
        %2056 = vmatprep.subr.bf16.mxu0 0
        %2057 = vmatpush1.bf16.msra.mxu0 0
        %2058 = vmatprep.mubr.bf16.mxu0 0
        %2059 = vmatmul.mubr.bf16.gmra.mrb[0].mxu0 %v1895
        %v2060 = vpop.f32.mrb[0].mxu0
        %v2061 = vadd.f32 %v1881, %v2060
        %v2062 = vpop.f32.mrb[0].mxu0
        %v2063 = vadd.f32 %v1883, %v2062
        %v2064 = vpop.f32.mrb[0].mxu0
        %v2065 = vadd.f32 %v1885, %v2064
        %v2066 = vpop.f32.mrb[0].mxu0
        %v2067 = vadd.f32 %v1887, %v2066
        %2068 = vdwg.mxu0
        %2069 = vrot.lane.b32.xlu0 %v1149, 31
        %v2070 = vpop.permute.xlu0 %2069
        %2071 = vrot.lane.b32.xlu0 %v1153, 31
        %v2072 = vpop.permute.xlu0 %2071
        %2073 = vrot.lane.b32.xlu0 %v1159, 31
        %v2074 = vpop.permute.xlu0 %2073
        %2075 = vrot.lane.b32.xlu0 %v1163, 31
        %v2076 = vpop.permute.xlu0 %2075
        %2077 = vrot.lane.b32.xlu0 %v1151, 31
        %v2078 = vpop.permute.xlu0 %2077
        %2079 = vrot.lane.b32.xlu0 %v1155, 31
        %v2080 = vpop.permute.xlu0 %2079
        %2081 = vrot.lane.b32.xlu0 %v1161, 31
        %v2082 = vpop.permute.xlu0 %2081
        %2083 = vrot.lane.b32.xlu0 %v1165, 31
        %v2084 = vpop.permute.xlu0 %2083
        %2085 = vrot.lane.b32.xlu0 %v1202, 31
        %v2086 = vpop.permute.xlu0 %2085
        %2087 = vrot.lane.b32.xlu0 %v1206, 31
        %v2088 = vpop.permute.xlu0 %2087
        %2089 = vrot.lane.b32.xlu0 %v1212, 31
        %v2090 = vpop.permute.xlu0 %2089
        %2091 = vrot.lane.b32.xlu0 %v1216, 31
        %v2092 = vpop.permute.xlu0 %2091
        %2093 = vrot.lane.b32.xlu0 %v1204, 31
        %v2094 = vpop.permute.xlu0 %2093
        %2095 = vrot.lane.b32.xlu0 %v1208, 31
        %v2096 = vpop.permute.xlu0 %2095
        %2097 = vrot.lane.b32.xlu0 %v1214, 31
        %v2098 = vpop.permute.xlu0 %2097
        %2099 = vrot.lane.b32.xlu0 %v1218, 31
        %v2100 = vpop.permute.xlu0 %2099
        %2101 = vrot.lane.b32.xlu0 %v1255, 31
        %v2102 = vpop.permute.xlu0 %2101
        %2103 = vrot.lane.b32.xlu0 %v1259, 31
        %v2104 = vpop.permute.xlu0 %2103
        %2105 = vrot.lane.b32.xlu0 %v1265, 31
        %v2106 = vpop.permute.xlu0 %2105
        %2107 = vrot.lane.b32.xlu0 %v1269, 31
        %v2108 = vpop.permute.xlu0 %2107
        %2109 = vrot.lane.b32.xlu0 %v1257, 31
        %v2110 = vpop.permute.xlu0 %2109
        %2111 = vrot.lane.b32.xlu0 %v1261, 31
        %v2112 = vpop.permute.xlu0 %2111
        %2113 = vrot.lane.b32.xlu0 %v1267, 31
        %v2114 = vpop.permute.xlu0 %2113
        %2115 = vrot.lane.b32.xlu0 %v1271, 31
        %v2116 = vpop.permute.xlu0 %2115
        %2117 = vrot.lane.b32.xlu0 %v1308, 31
        %v2118 = vpop.permute.xlu0 %2117
        %2119 = vrot.lane.b32.xlu0 %v1312, 31
        %v2120 = vpop.permute.xlu0 %2119
        %2121 = vrot.lane.b32.xlu0 %v1318, 31
        %v2122 = vpop.permute.xlu0 %2121
        %2123 = vrot.lane.b32.xlu0 %v1322, 31
        %v2124 = vpop.permute.xlu0 %2123
        %2125 = vrot.lane.b32.xlu0 %v1310, 31
        %v2126 = vpop.permute.xlu0 %2125
        %2127 = vrot.lane.b32.xlu0 %v1314, 31
        %v2128 = vpop.permute.xlu0 %2127
        %2129 = vrot.lane.b32.xlu0 %v1320, 31
        %v2130 = vpop.permute.xlu0 %2129
        %2131 = vrot.lane.b32.xlu0 %v1324, 31
        %v2132 = vpop.permute.xlu0 %2131
        %vm2133 = vcmp.lt.s32.totalorder %v1391, 31
        %v2134 = vsel %vm2133, %v2118, %v2126
        %v2135 = vsel %vm2133, %v2120, %v2128
        %v2136 = vsel %vm2133, %v2122, %v2130
        %v2137 = vsel %vm2133, %v2124, %v2132
        %v2138 = vsel %vm2133, %v2110, %v2118
        %v2139 = vsel %vm2133, %v2112, %v2120
        %v2140 = vsel %vm2133, %v2114, %v2122
        %v2141 = vsel %vm2133, %v2116, %v2124
        %v2142 = vsel %vm2133, %v2102, %v2110
        %v2143 = vsel %vm2133, %v2104, %v2112
        %v2144 = vsel %vm2133, %v2106, %v2114
        %v2145 = vsel %vm2133, %v2108, %v2116
        %v2146 = vsel %vm2133, %v2094, %v2102
        %v2147 = vsel %vm2133, %v2096, %v2104
        %v2148 = vsel %vm2133, %v2098, %v2106
        %v2149 = vsel %vm2133, %v2100, %v2108
        %v2150 = vsel %vm2133, %v2086, %v2094
        %v2151 = vsel %vm2133, %v2088, %v2096
        %v2152 = vsel %vm2133, %v2090, %v2098
        %v2153 = vsel %vm2133, %v2092, %v2100
        %v2154 = vsel %vm2133, %v2078, %v2086
        %v2155 = vsel %vm2133, %v2080, %v2088
        %v2156 = vsel %vm2133, %v2082, %v2090
        %v2157 = vsel %vm2133, %v2084, %v2092
        %v2158 = vsel %vm2133, %v2070, %v2078
        %v2159 = vsel %vm2133, %v2072, %v2080
        %v2160 = vsel %vm2133, %v2074, %v2082
        %v2161 = vsel %vm2133, %v2076, %v2084
        %v2162 = vsel %vm2133, %v2126, %v2070
        %v2163 = vsel %vm2133, %v2128, %v2072
        %v2164 = vsel %vm2133, %v2130, %v2074
        %v2165 = vsel %vm2133, %v2132, %v2076
        %s2166 = scalar_lea.vmem [#allocation8], 16
        %v2167 = vld [vmem:[%s2166] sm:$0xff]
        %v2169 = vlaneseq
        %v2170 = vshrl.u32 %v2169, 7
        %v2171 = vsub.s32 0, %v2170
        %v2172 = vrot.slane %v2167, %v2171
        %v2173 = vlaneseq
        %v2174 = vshrl.u32 %v2173, 7
        %v2175 = vsub.s32 1, %v2174
        %v2176 = vrot.slane %v2167, %v2175
        %v2177 = vlaneseq
        %v2178 = vshrl.u32 %v2177, 7
        %v2179 = vsub.s32 2, %v2178
        %v2180 = vrot.slane %v2167, %v2179
        %v2181 = vlaneseq
        %v2182 = vshrl.u32 %v2181, 7
        %v2183 = vsub.s32 3, %v2182
        %v2184 = vrot.slane %v2167, %v2183
        %v2185 = vlaneseq
        %v2186 = vshrl.u32 %v2185, 7
        %v2187 = vsub.s32 4, %v2186
        %v2188 = vrot.slane %v2167, %v2187
        %v2189 = vlaneseq
        %v2190 = vshrl.u32 %v2189, 7
        %v2191 = vsub.s32 5, %v2190
        %v2192 = vrot.slane %v2167, %v2191
        %v2193 = vlaneseq
        %v2194 = vshrl.u32 %v2193, 7
        %v2195 = vsub.s32 6, %v2194
        %v2196 = vrot.slane %v2167, %v2195
        %v2197 = vlaneseq
        %v2198 = vshrl.u32 %v2197, 7
        %v2199 = vsub.s32 7, %v2198
        %v2200 = vrot.slane %v2167, %v2199
        %v2209 = vmul.f32 %v2162, %v2172
        %v2210 = vmul.f32 %v2158, %v2176
        %v2211 = vmul.f32 %v2154, %v2180
        %v2212 = vmul.f32 %v2150, %v2184
        %v2213 = vmul.f32 %v2146, %v2188
        %v2214 = vmul.f32 %v2142, %v2192
        %v2215 = vmul.f32 %v2138, %v2196
        %v2216 = vmul.f32 %v2134, %v2200
        %v2217 = vmul.f32 %v2163, %v2172
        %v2218 = vmul.f32 %v2159, %v2176
        %v2219 = vmul.f32 %v2155, %v2180
        %v2220 = vmul.f32 %v2151, %v2184
        %v2221 = vmul.f32 %v2147, %v2188
        %v2222 = vmul.f32 %v2143, %v2192
        %v2223 = vmul.f32 %v2139, %v2196
        %v2224 = vmul.f32 %v2135, %v2200
        %v2225 = vmul.f32 %v2164, %v2172
        %v2226 = vmul.f32 %v2160, %v2176
        %v2227 = vmul.f32 %v2156, %v2180
        %v2228 = vmul.f32 %v2152, %v2184
        %v2229 = vmul.f32 %v2148, %v2188
        %v2230 = vmul.f32 %v2144, %v2192
        %v2231 = vmul.f32 %v2140, %v2196
        %v2232 = vmul.f32 %v2136, %v2200
        %v2233 = vmul.f32 %v2165, %v2172
        %v2234 = vmul.f32 %v2161, %v2176
        %v2235 = vmul.f32 %v2157, %v2180
        %v2236 = vmul.f32 %v2153, %v2184
        %v2237 = vmul.f32 %v2149, %v2188
        %v2238 = vmul.f32 %v2145, %v2192
        %v2239 = vmul.f32 %v2141, %v2196
        %v2240 = vmul.f32 %v2137, %v2200
        %s2241 = scalar_lea.vmem [#allocation7], 16
        %v2242 = vld [vmem:[%s2241] sm:$0xf]
        %v2243 = vld [vmem:[%s2241 + $0x4] sm:$0xf]
        %v2244 = vpack.c.bf16 %v2217, %v2209
        %v2245 = vpack.c.bf16 %v2218, %v2210
        %v2246 = vpack.c.bf16 %v2219, %v2211
        %v2247 = vpack.c.bf16 %v2220, %v2212
        %v2248 = vpack.c.bf16 %v2221, %v2213
        %v2249 = vpack.c.bf16 %v2222, %v2214
        %v2250 = vpack.c.bf16 %v2223, %v2215
        %v2251 = vpack.c.bf16 %v2224, %v2216
        %v2252 = vpack.c.bf16 %v2233, %v2225
        %v2253 = vpack.c.bf16 %v2234, %v2226
        %v2254 = vpack.c.bf16 %v2235, %v2227
        %v2255 = vpack.c.bf16 %v2236, %v2228
        %v2256 = vpack.c.bf16 %v2237, %v2229
        %v2257 = vpack.c.bf16 %v2238, %v2230
        %v2258 = vpack.c.bf16 %v2239, %v2231
        %v2259 = vpack.c.bf16 %v2240, %v2232
        %v2262 = vunpack.c.l.b16 %v2242
        %v2263 = vunpack.c.l.b16 %v2243
        %v2264 = vpack.c.b16 %v2263, %v2262
        %v2266 = vsel %vm1713, %v2264, 0
        %2268 = vmatprep.subr.bf16.mxu0 %v2245
        %2269 = vmatpush1.bf16.msra.mxu0 %v2244
        %2270 = vmatprep.subr.bf16.mxu0 %v2253
        %2271 = vmatpush1.bf16.msra.mxu0 %v2252
        %2272 = vmatprep.subr.bf16.mxu0 0
        %2273 = vmatpush1.bf16.msra.mxu0 0
        %2274 = vmatprep.subr.bf16.mxu0 0
        %2275 = vmatpush1.bf16.msra.mxu0 0
        %2276 = vmatprep.subr.bf16.mxu0 0
        %2277 = vmatpush1.bf16.msra.mxu0 0
        %2278 = vmatprep.subr.bf16.mxu0 0
        %2279 = vmatpush1.bf16.msra.mxu0 0
        %2280 = vmatprep.subr.bf16.mxu0 0
        %2281 = vmatpush1.bf16.msra.mxu0 0
        %2282 = vmatprep.subr.bf16.mxu0 0
        %2283 = vmatpush1.bf16.msra.mxu0 0
        %2284 = vmatprep.subr.bf16.mxu0 0
        %2285 = vmatpush1.bf16.msra.mxu0 0
        %2286 = vmatprep.subr.bf16.mxu0 0
        %2287 = vmatpush1.bf16.msra.mxu0 0
        %2288 = vmatprep.subr.bf16.mxu0 0
        %2289 = vmatpush1.bf16.msra.mxu0 0
        %2290 = vmatprep.subr.bf16.mxu0 0
        %2291 = vmatpush1.bf16.msra.mxu0 0
        %2292 = vmatprep.subr.bf16.mxu0 0
        %2293 = vmatpush1.bf16.msra.mxu0 0
        %2294 = vmatprep.subr.bf16.mxu0 0
        %2295 = vmatpush1.bf16.msra.mxu0 0
        %2296 = vmatprep.subr.bf16.mxu0 0
        %2297 = vmatpush1.bf16.msra.mxu0 0
        %2298 = vmatprep.subr.bf16.mxu0 0
        %2299 = vmatpush1.bf16.msra.mxu0 0
        %2300 = vmatprep.mubr.bf16.mxu0 0
        %2301 = vmatmul.mubr.bf16.gmra.mrb[0].mxu0 %v2266
        %v2302 = vpop.f32.mrb[0].mxu0
        %v2303 = vadd.f32 0.0, %v2302
        %v2304 = vpop.f32.mrb[0].mxu0
        %v2305 = vadd.f32 0.0, %v2304
        %v2306 = vpop.f32.mrb[0].mxu0
        %v2307 = vadd.f32 0.0, %v2306
        %v2308 = vpop.f32.mrb[0].mxu0
        %v2309 = vadd.f32 0.0, %v2308
        %2310 = vdwg.mxu0
        %2311 = vmatprep.subr.bf16.mxu0 %v2247
        %2312 = vmatpush1.bf16.msra.mxu0 %v2246
        %2313 = vmatprep.subr.bf16.mxu0 %v2255
        %2314 = vmatpush1.bf16.msra.mxu0 %v2254
        %2315 = vmatprep.subr.bf16.mxu0 0
        %2316 = vmatpush1.bf16.msra.mxu0 0
        %2317 = vmatprep.subr.bf16.mxu0 0
        %2318 = vmatpush1.bf16.msra.mxu0 0
        %2319 = vmatprep.subr.bf16.mxu0 0
        %2320 = vmatpush1.bf16.msra.mxu0 0
        %2321 = vmatprep.subr.bf16.mxu0 0
        %2322 = vmatpush1.bf16.msra.mxu0 0
        %2323 = vmatprep.subr.bf16.mxu0 0
        %2324 = vmatpush1.bf16.msra.mxu0 0
        %2325 = vmatprep.subr.bf16.mxu0 0
        %2326 = vmatpush1.bf16.msra.mxu0 0
        %2327 = vmatprep.subr.bf16.mxu0 0
        %2328 = vmatpush1.bf16.msra.mxu0 0
        %2329 = vmatprep.subr.bf16.mxu0 0
        %2330 = vmatpush1.bf16.msra.mxu0 0
        %2331 = vmatprep.subr.bf16.mxu0 0
        %2332 = vmatpush1.bf16.msra.mxu0 0
        %2333 = vmatprep.subr.bf16.mxu0 0
        %2334 = vmatpush1.bf16.msra.mxu0 0
        %2335 = vmatprep.subr.bf16.mxu0 0
        %2336 = vmatpush1.bf16.msra.mxu0 0
        %2337 = vmatprep.subr.bf16.mxu0 0
        %2338 = vmatpush1.bf16.msra.mxu0 0
        %2339 = vmatprep.subr.bf16.mxu0 0
        %2340 = vmatpush1.bf16.msra.mxu0 0
        %2341 = vmatprep.subr.bf16.mxu0 0
        %2342 = vmatpush1.bf16.msra.mxu0 0
        %2343 = vmatprep.mubr.bf16.mxu0 0
        %2344 = vmatmul.mubr.bf16.gmra.mrb[0].mxu0 %v2266
        %v2345 = vpop.f32.mrb[0].mxu0
        %v2346 = vadd.f32 0.0, %v2345
        %v2347 = vpop.f32.mrb[0].mxu0
        %v2348 = vadd.f32 0.0, %v2347
        %v2349 = vpop.f32.mrb[0].mxu0
        %v2350 = vadd.f32 0.0, %v2349
        %v2351 = vpop.f32.mrb[0].mxu0
        %v2352 = vadd.f32 0.0, %v2351
        %2353 = vdwg.mxu0
        %2354 = vmatprep.subr.bf16.mxu0 %v2249
        %2355 = vmatpush1.bf16.msra.mxu0 %v2248
        %2356 = vmatprep.subr.bf16.mxu0 %v2257
        %2357 = vmatpush1.bf16.msra.mxu0 %v2256
        %2358 = vmatprep.subr.bf16.mxu0 0
        %2359 = vmatpush1.bf16.msra.mxu0 0
        %2360 = vmatprep.subr.bf16.mxu0 0
        %2361 = vmatpush1.bf16.msra.mxu0 0
        %2362 = vmatprep.subr.bf16.mxu0 0
        %2363 = vmatpush1.bf16.msra.mxu0 0
        %2364 = vmatprep.subr.bf16.mxu0 0
        %2365 = vmatpush1.bf16.msra.mxu0 0
        %2366 = vmatprep.subr.bf16.mxu0 0
        %2367 = vmatpush1.bf16.msra.mxu0 0
        %2368 = vmatprep.subr.bf16.mxu0 0
        %2369 = vmatpush1.bf16.msra.mxu0 0
        %2370 = vmatprep.subr.bf16.mxu0 0
        %2371 = vmatpush1.bf16.msra.mxu0 0
        %2372 = vmatprep.subr.bf16.mxu0 0
        %2373 = vmatpush1.bf16.msra.mxu0 0
        %2374 = vmatprep.subr.bf16.mxu0 0
        %2375 = vmatpush1.bf16.msra.mxu0 0
        %2376 = vmatprep.subr.bf16.mxu0 0
        %2377 = vmatpush1.bf16.msra.mxu0 0
        %2378 = vmatprep.subr.bf16.mxu0 0
        %2379 = vmatpush1.bf16.msra.mxu0 0
        %2380 = vmatprep.subr.bf16.mxu0 0
        %2381 = vmatpush1.bf16.msra.mxu0 0
        %2382 = vmatprep.subr.bf16.mxu0 0
        %2383 = vmatpush1.bf16.msra.mxu0 0
        %2384 = vmatprep.subr.bf16.mxu0 0
        %2385 = vmatpush1.bf16.msra.mxu0 0
        %2386 = vmatprep.mubr.bf16.mxu0 0
        %2387 = vmatmul.mubr.bf16.gmra.mrb[0].mxu0 %v2266
        %v2388 = vpop.f32.mrb[0].mxu0
        %v2389 = vadd.f32 0.0, %v2388
        %v2390 = vpop.f32.mrb[0].mxu0
        %v2391 = vadd.f32 0.0, %v2390
        %v2392 = vpop.f32.mrb[0].mxu0
        %v2393 = vadd.f32 0.0, %v2392
        %v2394 = vpop.f32.mrb[0].mxu0
        %v2395 = vadd.f32 0.0, %v2394
        %2396 = vdwg.mxu0
        %2397 = vmatprep.subr.bf16.mxu0 %v2251
        %2398 = vmatpush1.bf16.msra.mxu0 %v2250
        %2399 = vmatprep.subr.bf16.mxu0 %v2259
        %2400 = vmatpush1.bf16.msra.mxu0 %v2258
        %2401 = vmatprep.subr.bf16.mxu0 0
        %2402 = vmatpush1.bf16.msra.mxu0 0
        %2403 = vmatprep.subr.bf16.mxu0 0
        %2404 = vmatpush1.bf16.msra.mxu0 0
        %2405 = vmatprep.subr.bf16.mxu0 0
        %2406 = vmatpush1.bf16.msra.mxu0 0
        %2407 = vmatprep.subr.bf16.mxu0 0
        %2408 = vmatpush1.bf16.msra.mxu0 0
        %2409 = vmatprep.subr.bf16.mxu0 0
        %2410 = vmatpush1.bf16.msra.mxu0 0
        %2411 = vmatprep.subr.bf16.mxu0 0
        %2412 = vmatpush1.bf16.msra.mxu0 0
        %2413 = vmatprep.subr.bf16.mxu0 0
        %2414 = vmatpush1.bf16.msra.mxu0 0
        %2415 = vmatprep.subr.bf16.mxu0 0
        %2416 = vmatpush1.bf16.msra.mxu0 0
        %2417 = vmatprep.subr.bf16.mxu0 0
        %2418 = vmatpush1.bf16.msra.mxu0 0
        %2419 = vmatprep.subr.bf16.mxu0 0
        %2420 = vmatpush1.bf16.msra.mxu0 0
        %2421 = vmatprep.subr.bf16.mxu0 0
        %2422 = vmatpush1.bf16.msra.mxu0 0
        %2423 = vmatprep.subr.bf16.mxu0 0
        %2424 = vmatpush1.bf16.msra.mxu0 0
        %2425 = vmatprep.subr.bf16.mxu0 0
        %2426 = vmatpush1.bf16.msra.mxu0 0
        %2427 = vmatprep.subr.bf16.mxu0 0
        %2428 = vmatpush1.bf16.msra.mxu0 0
        %2429 = vmatprep.mubr.bf16.mxu0 0
        %2430 = vmatmul.mubr.bf16.gmra.mrb[0].mxu0 %v2266
        %v2431 = vpop.f32.mrb[0].mxu0
        %v2432 = vadd.f32 0.0, %v2431
        %v2433 = vpop.f32.mrb[0].mxu0
        %v2434 = vadd.f32 0.0, %v2433
        %v2435 = vpop.f32.mrb[0].mxu0
        %v2436 = vadd.f32 0.0, %v2435
        %v2437 = vpop.f32.mrb[0].mxu0
        %v2438 = vadd.f32 0.0, %v2437
        %2439 = vdwg.mxu0
        %v2440 = vadd.f32 %v1932, %v2303
        %v2441 = vadd.f32 %v1934, %v2305
        %v2442 = vadd.f32 %v1975, %v2346
        %v2443 = vadd.f32 %v1977, %v2348
        %v2444 = vadd.f32 %v2018, %v2389
        %v2445 = vadd.f32 %v2020, %v2391
        %v2446 = vadd.f32 %v2061, %v2432
        %v2447 = vadd.f32 %v2063, %v2434
        %v2448 = vadd.f32 %v1936, %v2307
        %v2449 = vadd.f32 %v1938, %v2309
        %v2450 = vadd.f32 %v1979, %v2350
        %v2451 = vadd.f32 %v1981, %v2352
        %v2452 = vadd.f32 %v2022, %v2393
        %v2453 = vadd.f32 %v2024, %v2395
        %v2454 = vadd.f32 %v2065, %v2436
        %v2455 = vadd.f32 %v2067, %v2438
        %2456 = vrot.lane.b32.xlu0 %v1149, 1
        %v2457 = vpop.permute.xlu0 %2456
        %2458 = vrot.lane.b32.xlu0 %v1153, 1
        %v2459 = vpop.permute.xlu0 %2458
        %2460 = vrot.lane.b32.xlu0 %v1159, 1
        %v2461 = vpop.permute.xlu0 %2460
        %2462 = vrot.lane.b32.xlu0 %v1163, 1
        %v2463 = vpop.permute.xlu0 %2462
        %2464 = vrot.lane.b32.xlu0 %v1151, 1
        %v2465 = vpop.permute.xlu0 %2464
        %2466 = vrot.lane.b32.xlu0 %v1155, 1
        %v2467 = vpop.permute.xlu0 %2466
        %2468 = vrot.lane.b32.xlu0 %v1161, 1
        %v2469 = vpop.permute.xlu0 %2468
        %2470 = vrot.lane.b32.xlu0 %v1165, 1
        %v2471 = vpop.permute.xlu0 %2470
        %2472 = vrot.lane.b32.xlu0 %v1202, 1
        %v2473 = vpop.permute.xlu0 %2472
        %2474 = vrot.lane.b32.xlu0 %v1206, 1
        %v2475 = vpop.permute.xlu0 %2474
        %2476 = vrot.lane.b32.xlu0 %v1212, 1
        %v2477 = vpop.permute.xlu0 %2476
        %2478 = vrot.lane.b32.xlu0 %v1216, 1
        %v2479 = vpop.permute.xlu0 %2478
        %2480 = vrot.lane.b32.xlu0 %v1204, 1
        %v2481 = vpop.permute.xlu0 %2480
        %2482 = vrot.lane.b32.xlu0 %v1208, 1
        %v2483 = vpop.permute.xlu0 %2482
        %2484 = vrot.lane.b32.xlu0 %v1214, 1
        %v2485 = vpop.permute.xlu0 %2484
        %2486 = vrot.lane.b32.xlu0 %v1218, 1
        %v2487 = vpop.permute.xlu0 %2486
        %2488 = vrot.lane.b32.xlu0 %v1255, 1
        %v2489 = vpop.permute.xlu0 %2488
        %2490 = vrot.lane.b32.xlu0 %v1259, 1
        %v2491 = vpop.permute.xlu0 %2490
        %2492 = vrot.lane.b32.xlu0 %v1265, 1
        %v2493 = vpop.permute.xlu0 %2492
        %2494 = vrot.lane.b32.xlu0 %v1269, 1
        %v2495 = vpop.permute.xlu0 %2494
        %2496 = vrot.lane.b32.xlu0 %v1257, 1
        %v2497 = vpop.permute.xlu0 %2496
        %2498 = vrot.lane.b32.xlu0 %v1261, 1
        %v2499 = vpop.permute.xlu0 %2498
        %2500 = vrot.lane.b32.xlu0 %v1267, 1
        %v2501 = vpop.permute.xlu0 %2500
        %2502 = vrot.lane.b32.xlu0 %v1271, 1
        %v2503 = vpop.permute.xlu0 %2502
        %2504 = vrot.lane.b32.xlu0 %v1308, 1
        %v2505 = vpop.permute.xlu0 %2504
        %2506 = vrot.lane.b32.xlu0 %v1312, 1
        %v2507 = vpop.permute.xlu0 %2506
        %2508 = vrot.lane.b32.xlu0 %v1318, 1
        %v2509 = vpop.permute.xlu0 %2508
        %2510 = vrot.lane.b32.xlu0 %v1322, 1
        %v2511 = vpop.permute.xlu0 %2510
        %2512 = vrot.lane.b32.xlu0 %v1310, 1
        %v2513 = vpop.permute.xlu0 %2512
        %2514 = vrot.lane.b32.xlu0 %v1314, 1
        %v2515 = vpop.permute.xlu0 %2514
        %2516 = vrot.lane.b32.xlu0 %v1320, 1
        %v2517 = vpop.permute.xlu0 %2516
        %2518 = vrot.lane.b32.xlu0 %v1324, 1
        %v2519 = vpop.permute.xlu0 %2518
        %vm2520 = vcmp.lt.s32.totalorder %v1391, 1
        %v2521 = vsel %vm2520, %v2505, %v2513
        %v2522 = vsel %vm2520, %v2507, %v2515
        %v2523 = vsel %vm2520, %v2509, %v2517
        %v2524 = vsel %vm2520, %v2511, %v2519
        %v2525 = vsel %vm2520, %v2497, %v2505
        %v2526 = vsel %vm2520, %v2499, %v2507
        %v2527 = vsel %vm2520, %v2501, %v2509
        %v2528 = vsel %vm2520, %v2503, %v2511
        %v2529 = vsel %vm2520, %v2489, %v2497
        %v2530 = vsel %vm2520, %v2491, %v2499
        %v2531 = vsel %vm2520, %v2493, %v2501
        %v2532 = vsel %vm2520, %v2495, %v2503
        %v2533 = vsel %vm2520, %v2481, %v2489
        %v2534 = vsel %vm2520, %v2483, %v2491
        %v2535 = vsel %vm2520, %v2485, %v2493
        %v2536 = vsel %vm2520, %v2487, %v2495
        %v2537 = vsel %vm2520, %v2473, %v2481
        %v2538 = vsel %vm2520, %v2475, %v2483
        %v2539 = vsel %vm2520, %v2477, %v2485
        %v2540 = vsel %vm2520, %v2479, %v2487
        %v2541 = vsel %vm2520, %v2465, %v2473
        %v2542 = vsel %vm2520, %v2467, %v2475
        %v2543 = vsel %vm2520, %v2469, %v2477
        %v2544 = vsel %vm2520, %v2471, %v2479
        %v2545 = vsel %vm2520, %v2457, %v2465
        %v2546 = vsel %vm2520, %v2459, %v2467
        %v2547 = vsel %vm2520, %v2461, %v2469
        %v2548 = vsel %vm2520, %v2463, %v2471
        %v2549 = vsel %vm2520, %v2513, %v2457
        %v2550 = vsel %vm2520, %v2515, %v2459
        %v2551 = vsel %vm2520, %v2517, %v2461
        %v2552 = vsel %vm2520, %v2519, %v2463
        %s2553 = scalar_lea.vmem [#allocation8], 24
        %v2554 = vld [vmem:[%s2553] sm:$0xff]
        %v2556 = vlaneseq
        %v2557 = vshrl.u32 %v2556, 7
        %v2558 = vsub.s32 0, %v2557
        %v2559 = vrot.slane %v2554, %v2558
        %v2560 = vlaneseq
        %v2561 = vshrl.u32 %v2560, 7
        %v2562 = vsub.s32 1, %v2561
        %v2563 = vrot.slane %v2554, %v2562
        %v2564 = vlaneseq
        %v2565 = vshrl.u32 %v2564, 7
        %v2566 = vsub.s32 2, %v2565
        %v2567 = vrot.slane %v2554, %v2566
        %v2568 = vlaneseq
        %v2569 = vshrl.u32 %v2568, 7
        %v2570 = vsub.s32 3, %v2569
        %v2571 = vrot.slane %v2554, %v2570
        %v2572 = vlaneseq
        %v2573 = vshrl.u32 %v2572, 7
        %v2574 = vsub.s32 4, %v2573
        %v2575 = vrot.slane %v2554, %v2574
        %v2576 = vlaneseq
        %v2577 = vshrl.u32 %v2576, 7
        %v2578 = vsub.s32 5, %v2577
        %v2579 = vrot.slane %v2554, %v2578
        %v2580 = vlaneseq
        %v2581 = vshrl.u32 %v2580, 7
        %v2582 = vsub.s32 6, %v2581
        %v2583 = vrot.slane %v2554, %v2582
        %v2584 = vlaneseq
        %v2585 = vshrl.u32 %v2584, 7
        %v2586 = vsub.s32 7, %v2585
        %v2587 = vrot.slane %v2554, %v2586
        %v2596 = vmul.f32 %v2549, %v2559
        %v2597 = vmul.f32 %v2545, %v2563
        %v2598 = vmul.f32 %v2541, %v2567
        %v2599 = vmul.f32 %v2537, %v2571
        %v2600 = vmul.f32 %v2533, %v2575
        %v2601 = vmul.f32 %v2529, %v2579
        %v2602 = vmul.f32 %v2525, %v2583
        %v2603 = vmul.f32 %v2521, %v2587
        %v2604 = vmul.f32 %v2550, %v2559
        %v2605 = vmul.f32 %v2546, %v2563
        %v2606 = vmul.f32 %v2542, %v2567
        %v2607 = vmul.f32 %v2538, %v2571
        %v2608 = vmul.f32 %v2534, %v2575
        %v2609 = vmul.f32 %v2530, %v2579
        %v2610 = vmul.f32 %v2526, %v2583
        %v2611 = vmul.f32 %v2522, %v2587
        %v2612 = vmul.f32 %v2551, %v2559
        %v2613 = vmul.f32 %v2547, %v2563
        %v2614 = vmul.f32 %v2543, %v2567
        %v2615 = vmul.f32 %v2539, %v2571
        %v2616 = vmul.f32 %v2535, %v2575
        %v2617 = vmul.f32 %v2531, %v2579
        %v2618 = vmul.f32 %v2527, %v2583
        %v2619 = vmul.f32 %v2523, %v2587
        %v2620 = vmul.f32 %v2552, %v2559
        %v2621 = vmul.f32 %v2548, %v2563
        %v2622 = vmul.f32 %v2544, %v2567
        %v2623 = vmul.f32 %v2540, %v2571
        %v2624 = vmul.f32 %v2536, %v2575
        %v2625 = vmul.f32 %v2532, %v2579
        %v2626 = vmul.f32 %v2528, %v2583
        %v2627 = vmul.f32 %v2524, %v2587
        %s2628 = scalar_lea.vmem [#allocation7], 24
        %v2629 = vld [vmem:[%s2628] sm:$0xf]
        %v2630 = vld [vmem:[%s2628 + $0x4] sm:$0xf]
        %v2631 = vpack.c.bf16 %v2604, %v2596
        %v2632 = vpack.c.bf16 %v2605, %v2597
        %v2633 = vpack.c.bf16 %v2606, %v2598
        %v2634 = vpack.c.bf16 %v2607, %v2599
        %v2635 = vpack.c.bf16 %v2608, %v2600
        %v2636 = vpack.c.bf16 %v2609, %v2601
        %v2637 = vpack.c.bf16 %v2610, %v2602
        %v2638 = vpack.c.bf16 %v2611, %v2603
        %v2639 = vpack.c.bf16 %v2620, %v2612
        %v2640 = vpack.c.bf16 %v2621, %v2613
        %v2641 = vpack.c.bf16 %v2622, %v2614
        %v2642 = vpack.c.bf16 %v2623, %v2615
        %v2643 = vpack.c.bf16 %v2624, %v2616
        %v2644 = vpack.c.bf16 %v2625, %v2617
        %v2645 = vpack.c.bf16 %v2626, %v2618
        %v2646 = vpack.c.bf16 %v2627, %v2619
        %v2649 = vunpack.c.l.b16 %v2629
        %v2650 = vunpack.c.l.b16 %v2630
        %v2651 = vpack.c.b16 %v2650, %v2649
        %v2653 = vsel %vm1713, %v2651, 0
        %2655 = vmatprep.subr.bf16.mxu0 %v2632
        %2656 = vmatpush1.bf16.msra.mxu0 %v2631
        %2657 = vmatprep.subr.bf16.mxu0 %v2640
        %2658 = vmatpush1.bf16.msra.mxu0 %v2639
        %2659 = vmatprep.subr.bf16.mxu0 0
        %2660 = vmatpush1.bf16.msra.mxu0 0
        %2661 = vmatprep.subr.bf16.mxu0 0
        %2662 = vmatpush1.bf16.msra.mxu0 0
        %2663 = vmatprep.subr.bf16.mxu0 0
        %2664 = vmatpush1.bf16.msra.mxu0 0
        %2665 = vmatprep.subr.bf16.mxu0 0
        %2666 = vmatpush1.bf16.msra.mxu0 0
        %2667 = vmatprep.subr.bf16.mxu0 0
        %2668 = vmatpush1.bf16.msra.mxu0 0
        %2669 = vmatprep.subr.bf16.mxu0 0
        %2670 = vmatpush1.bf16.msra.mxu0 0
        %2671 = vmatprep.subr.bf16.mxu0 0
        %2672 = vmatpush1.bf16.msra.mxu0 0
        %2673 = vmatprep.subr.bf16.mxu0 0
        %2674 = vmatpush1.bf16.msra.mxu0 0
        %2675 = vmatprep.subr.bf16.mxu0 0
        %2676 = vmatpush1.bf16.msra.mxu0 0
        %2677 = vmatprep.subr.bf16.mxu0 0
        %2678 = vmatpush1.bf16.msra.mxu0 0
        %2679 = vmatprep.subr.bf16.mxu0 0
        %2680 = vmatpush1.bf16.msra.mxu0 0
        %2681 = vmatprep.subr.bf16.mxu0 0
        %2682 = vmatpush1.bf16.msra.mxu0 0
        %2683 = vmatprep.subr.bf16.mxu0 0
        %2684 = vmatpush1.bf16.msra.mxu0 0
        %2685 = vmatprep.subr.bf16.mxu0 0
        %2686 = vmatpush1.bf16.msra.mxu0 0
        %2687 = vmatprep.mubr.bf16.mxu0 0
        %2688 = vmatmul.mubr.bf16.gmra.mrb[0].mxu0 %v2653
        %v2689 = vpop.f32.mrb[0].mxu0
        %v2690 = vadd.f32 0.0, %v2689
        %v2691 = vpop.f32.mrb[0].mxu0
        %v2692 = vadd.f32 0.0, %v2691
        %v2693 = vpop.f32.mrb[0].mxu0
        %v2694 = vadd.f32 0.0, %v2693
        %v2695 = vpop.f32.mrb[0].mxu0
        %v2696 = vadd.f32 0.0, %v2695
        %2697 = vdwg.mxu0
        %2698 = vmatprep.subr.bf16.mxu0 %v2634
        %2699 = vmatpush1.bf16.msra.mxu0 %v2633
        %2700 = vmatprep.subr.bf16.mxu0 %v2642
        %2701 = vmatpush1.bf16.msra.mxu0 %v2641
        %2702 = vmatprep.subr.bf16.mxu0 0
        %2703 = vmatpush1.bf16.msra.mxu0 0
        %2704 = vmatprep.subr.bf16.mxu0 0
        %2705 = vmatpush1.bf16.msra.mxu0 0
        %2706 = vmatprep.subr.bf16.mxu0 0
        %2707 = vmatpush1.bf16.msra.mxu0 0
        %2708 = vmatprep.subr.bf16.mxu0 0
        %2709 = vmatpush1.bf16.msra.mxu0 0
        %2710 = vmatprep.subr.bf16.mxu0 0
        %2711 = vmatpush1.bf16.msra.mxu0 0
        %2712 = vmatprep.subr.bf16.mxu0 0
        %2713 = vmatpush1.bf16.msra.mxu0 0
        %2714 = vmatprep.subr.bf16.mxu0 0
        %2715 = vmatpush1.bf16.msra.mxu0 0
        %2716 = vmatprep.subr.bf16.mxu0 0
        %2717 = vmatpush1.bf16.msra.mxu0 0
        %2718 = vmatprep.subr.bf16.mxu0 0
        %2719 = vmatpush1.bf16.msra.mxu0 0
        %2720 = vmatprep.subr.bf16.mxu0 0
        %2721 = vmatpush1.bf16.msra.mxu0 0
        %2722 = vmatprep.subr.bf16.mxu0 0
        %2723 = vmatpush1.bf16.msra.mxu0 0
        %2724 = vmatprep.subr.bf16.mxu0 0
        %2725 = vmatpush1.bf16.msra.mxu0 0
        %2726 = vmatprep.subr.bf16.mxu0 0
        %2727 = vmatpush1.bf16.msra.mxu0 0
        %2728 = vmatprep.subr.bf16.mxu0 0
        %2729 = vmatpush1.bf16.msra.mxu0 0
        %2730 = vmatprep.mubr.bf16.mxu0 0
        %2731 = vmatmul.mubr.bf16.gmra.mrb[0].mxu0 %v2653
        %v2732 = vpop.f32.mrb[0].mxu0
        %v2733 = vadd.f32 0.0, %v2732
        %v2734 = vpop.f32.mrb[0].mxu0
        %v2735 = vadd.f32 0.0, %v2734
        %v2736 = vpop.f32.mrb[0].mxu0
        %v2737 = vadd.f32 0.0, %v2736
        %v2738 = vpop.f32.mrb[0].mxu0
        %v2739 = vadd.f32 0.0, %v2738
        %2740 = vdwg.mxu0
        %2741 = vmatprep.subr.bf16.mxu0 %v2636
        %2742 = vmatpush1.bf16.msra.mxu0 %v2635
        %2743 = vmatprep.subr.bf16.mxu0 %v2644
        %2744 = vmatpush1.bf16.msra.mxu0 %v2643
        %2745 = vmatprep.subr.bf16.mxu0 0
        %2746 = vmatpush1.bf16.msra.mxu0 0
        %2747 = vmatprep.subr.bf16.mxu0 0
        %2748 = vmatpush1.bf16.msra.mxu0 0
        %2749 = vmatprep.subr.bf16.mxu0 0
        %2750 = vmatpush1.bf16.msra.mxu0 0
        %2751 = vmatprep.subr.bf16.mxu0 0
        %2752 = vmatpush1.bf16.msra.mxu0 0
        %2753 = vmatprep.subr.bf16.mxu0 0
        %2754 = vmatpush1.bf16.msra.mxu0 0
        %2755 = vmatprep.subr.bf16.mxu0 0
        %2756 = vmatpush1.bf16.msra.mxu0 0
        %2757 = vmatprep.subr.bf16.mxu0 0
        %2758 = vmatpush1.bf16.msra.mxu0 0
        %2759 = vmatprep.subr.bf16.mxu0 0
        %2760 = vmatpush1.bf16.msra.mxu0 0
        %2761 = vmatprep.subr.bf16.mxu0 0
        %2762 = vmatpush1.bf16.msra.mxu0 0
        %2763 = vmatprep.subr.bf16.mxu0 0
        %2764 = vmatpush1.bf16.msra.mxu0 0
        %2765 = vmatprep.subr.bf16.mxu0 0
        %2766 = vmatpush1.bf16.msra.mxu0 0
        %2767 = vmatprep.subr.bf16.mxu0 0
        %2768 = vmatpush1.bf16.msra.mxu0 0
        %2769 = vmatprep.subr.bf16.mxu0 0
        %2770 = vmatpush1.bf16.msra.mxu0 0
        %2771 = vmatprep.subr.bf16.mxu0 0
        %2772 = vmatpush1.bf16.msra.mxu0 0
        %2773 = vmatprep.mubr.bf16.mxu0 0
        %2774 = vmatmul.mubr.bf16.gmra.mrb[0].mxu0 %v2653
        %v2775 = vpop.f32.mrb[0].mxu0
        %v2776 = vadd.f32 0.0, %v2775
        %v2777 = vpop.f32.mrb[0].mxu0
        %v2778 = vadd.f32 0.0, %v2777
        %v2779 = vpop.f32.mrb[0].mxu0
        %v2780 = vadd.f32 0.0, %v2779
        %v2781 = vpop.f32.mrb[0].mxu0
        %v2782 = vadd.f32 0.0, %v2781
        %2783 = vdwg.mxu0
        %2784 = vmatprep.subr.bf16.mxu0 %v2638
        %2785 = vmatpush1.bf16.msra.mxu0 %v2637
        %2786 = vmatprep.subr.bf16.mxu0 %v2646
        %2787 = vmatpush1.bf16.msra.mxu0 %v2645
        %2788 = vmatprep.subr.bf16.mxu0 0
        %2789 = vmatpush1.bf16.msra.mxu0 0
        %2790 = vmatprep.subr.bf16.mxu0 0
        %2791 = vmatpush1.bf16.msra.mxu0 0
        %2792 = vmatprep.subr.bf16.mxu0 0
        %2793 = vmatpush1.bf16.msra.mxu0 0
        %2794 = vmatprep.subr.bf16.mxu0 0
        %2795 = vmatpush1.bf16.msra.mxu0 0
        %2796 = vmatprep.subr.bf16.mxu0 0
        %2797 = vmatpush1.bf16.msra.mxu0 0
        %2798 = vmatprep.subr.bf16.mxu0 0
        %2799 = vmatpush1.bf16.msra.mxu0 0
        %2800 = vmatprep.subr.bf16.mxu0 0
        %2801 = vmatpush1.bf16.msra.mxu0 0
        %2802 = vmatprep.subr.bf16.mxu0 0
        %2803 = vmatpush1.bf16.msra.mxu0 0
        %2804 = vmatprep.subr.bf16.mxu0 0
        %2805 = vmatpush1.bf16.msra.mxu0 0
        %2806 = vmatprep.subr.bf16.mxu0 0
        %2807 = vmatpush1.bf16.msra.mxu0 0
        %2808 = vmatprep.subr.bf16.mxu0 0
        %2809 = vmatpush1.bf16.msra.mxu0 0
        %2810 = vmatprep.subr.bf16.mxu0 0
        %2811 = vmatpush1.bf16.msra.mxu0 0
        %2812 = vmatprep.subr.bf16.mxu0 0
        %2813 = vmatpush1.bf16.msra.mxu0 0
        %2814 = vmatprep.subr.bf16.mxu0 0
        %2815 = vmatpush1.bf16.msra.mxu0 0
        %2816 = vmatprep.mubr.bf16.mxu0 0
        %2817 = vmatmul.mubr.bf16.gmra.mrb[0].mxu0 %v2653
        %v2818 = vpop.f32.mrb[0].mxu0
        %v2819 = vadd.f32 0.0, %v2818
        %v2820 = vpop.f32.mrb[0].mxu0
        %v2821 = vadd.f32 0.0, %v2820
        %v2822 = vpop.f32.mrb[0].mxu0
        %v2823 = vadd.f32 0.0, %v2822
        %v2824 = vpop.f32.mrb[0].mxu0
        %v2825 = vadd.f32 0.0, %v2824
        %2826 = vdwg.mxu0
        %v2827 = vadd.f32 %v2440, %v2690
        %v2828 = vadd.f32 %v2441, %v2692
        %v2829 = vadd.f32 %v2442, %v2733
        %v2830 = vadd.f32 %v2443, %v2735
        %v2831 = vadd.f32 %v2444, %v2776
        %v2832 = vadd.f32 %v2445, %v2778
        %v2833 = vadd.f32 %v2446, %v2819
        %v2834 = vadd.f32 %v2447, %v2821
        %v2835 = vadd.f32 %v2448, %v2694
        %v2836 = vadd.f32 %v2449, %v2696
        %v2837 = vadd.f32 %v2450, %v2737
        %v2838 = vadd.f32 %v2451, %v2739
        %v2839 = vadd.f32 %v2452, %v2780
        %v2840 = vadd.f32 %v2453, %v2782
        %v2841 = vadd.f32 %v2454, %v2823
        %v2842 = vadd.f32 %v2455, %v2825
        %s2843 = scalar_lea.vmem [#allocation7], 32
        %v2844 = vld [vmem:[%s2843] sm:$0xf]
        %v2845 = vld [vmem:[%s2843 + $0x4] sm:$0xf]
        %v2846 = vpack.c.bf16 %v1153, %v1149
        %v2847 = vpack.c.bf16 %v1155, %v1151
        %v2848 = vpack.c.bf16 %v1206, %v1202
        %v2849 = vpack.c.bf16 %v1208, %v1204
        %v2850 = vpack.c.bf16 %v1259, %v1255
        %v2851 = vpack.c.bf16 %v1261, %v1257
        %v2852 = vpack.c.bf16 %v1312, %v1308
        %v2853 = vpack.c.bf16 %v1314, %v1310
        %v2854 = vpack.c.bf16 %v1163, %v1159
        %v2855 = vpack.c.bf16 %v1165, %v1161
        %v2856 = vpack.c.bf16 %v1216, %v1212
        %v2857 = vpack.c.bf16 %v1218, %v1214
        %v2858 = vpack.c.bf16 %v1269, %v1265
        %v2859 = vpack.c.bf16 %v1271, %v1267
        %v2860 = vpack.c.bf16 %v1322, %v1318
        %v2861 = vpack.c.bf16 %v1324, %v1320
        %v2864 = vunpack.c.l.b16 %v2844
        %v2865 = vunpack.c.l.b16 %v2845
        %v2866 = vpack.c.b16 %v2865, %v2864
        %v2868 = vsel %vm1713, %v2866, 0
        %2870 = vmatprep.subr.bf16.mxu0 %v2847
        %2871 = vmatpush1.bf16.msra.mxu0 %v2846
        %2872 = vmatprep.subr.bf16.mxu0 %v2855
        %2873 = vmatpush1.bf16.msra.mxu0 %v2854
        %2874 = vmatprep.subr.bf16.mxu0 0
        %2875 = vmatpush1.bf16.msra.mxu0 0
        %2876 = vmatprep.subr.bf16.mxu0 0
        %2877 = vmatpush1.bf16.msra.mxu0 0
        %2878 = vmatprep.subr.bf16.mxu0 0
        %2879 = vmatpush1.bf16.msra.mxu0 0
        %2880 = vmatprep.subr.bf16.mxu0 0
        %2881 = vmatpush1.bf16.msra.mxu0 0
        %2882 = vmatprep.subr.bf16.mxu0 0
        %2883 = vmatpush1.bf16.msra.mxu0 0
        %2884 = vmatprep.subr.bf16.mxu0 0
        %2885 = vmatpush1.bf16.msra.mxu0 0
        %2886 = vmatprep.subr.bf16.mxu0 0
        %2887 = vmatpush1.bf16.msra.mxu0 0
        %2888 = vmatprep.subr.bf16.mxu0 0
        %2889 = vmatpush1.bf16.msra.mxu0 0
        %2890 = vmatprep.subr.bf16.mxu0 0
        %2891 = vmatpush1.bf16.msra.mxu0 0
        %2892 = vmatprep.subr.bf16.mxu0 0
        %2893 = vmatpush1.bf16.msra.mxu0 0
        %2894 = vmatprep.subr.bf16.mxu0 0
        %2895 = vmatpush1.bf16.msra.mxu0 0
        %2896 = vmatprep.subr.bf16.mxu0 0
        %2897 = vmatpush1.bf16.msra.mxu0 0
        %2898 = vmatprep.subr.bf16.mxu0 0
        %2899 = vmatpush1.bf16.msra.mxu0 0
        %2900 = vmatprep.subr.bf16.mxu0 0
        %2901 = vmatpush1.bf16.msra.mxu0 0
        %2902 = vmatprep.mubr.bf16.mxu0 0
        %2903 = vmatmul.mubr.bf16.gmra.mrb[0].mxu0 %v2868
        %v2904 = vpop.f32.mrb[0].mxu0
        %v2905 = vadd.f32 0.0, %v2904
        %v2906 = vpop.f32.mrb[0].mxu0
        %v2907 = vadd.f32 0.0, %v2906
        %v2908 = vpop.f32.mrb[0].mxu0
        %v2909 = vadd.f32 0.0, %v2908
        %v2910 = vpop.f32.mrb[0].mxu0
        %v2911 = vadd.f32 0.0, %v2910
        %2912 = vdwg.mxu0
        %2913 = vmatprep.subr.bf16.mxu0 %v2849
        %2914 = vmatpush1.bf16.msra.mxu0 %v2848
        %2915 = vmatprep.subr.bf16.mxu0 %v2857
        %2916 = vmatpush1.bf16.msra.mxu0 %v2856
        %2917 = vmatprep.subr.bf16.mxu0 0
        %2918 = vmatpush1.bf16.msra.mxu0 0
        %2919 = vmatprep.subr.bf16.mxu0 0
        %2920 = vmatpush1.bf16.msra.mxu0 0
        %2921 = vmatprep.subr.bf16.mxu0 0
        %2922 = vmatpush1.bf16.msra.mxu0 0
        %2923 = vmatprep.subr.bf16.mxu0 0
        %2924 = vmatpush1.bf16.msra.mxu0 0
        %2925 = vmatprep.subr.bf16.mxu0 0
        %2926 = vmatpush1.bf16.msra.mxu0 0
        %2927 = vmatprep.subr.bf16.mxu0 0
        %2928 = vmatpush1.bf16.msra.mxu0 0
        %2929 = vmatprep.subr.bf16.mxu0 0
        %2930 = vmatpush1.bf16.msra.mxu0 0
        %2931 = vmatprep.subr.bf16.mxu0 0
        %2932 = vmatpush1.bf16.msra.mxu0 0
        %2933 = vmatprep.subr.bf16.mxu0 0
        %2934 = vmatpush1.bf16.msra.mxu0 0
        %2935 = vmatprep.subr.bf16.mxu0 0
        %2936 = vmatpush1.bf16.msra.mxu0 0
        %2937 = vmatprep.subr.bf16.mxu0 0
        %2938 = vmatpush1.bf16.msra.mxu0 0
        %2939 = vmatprep.subr.bf16.mxu0 0
        %2940 = vmatpush1.bf16.msra.mxu0 0
        %2941 = vmatprep.subr.bf16.mxu0 0
        %2942 = vmatpush1.bf16.msra.mxu0 0
        %2943 = vmatprep.subr.bf16.mxu0 0
        %2944 = vmatpush1.bf16.msra.mxu0 0
        %2945 = vmatprep.mubr.bf16.mxu0 0
        %2946 = vmatmul.mubr.bf16.gmra.mrb[0].mxu0 %v2868
        %v2947 = vpop.f32.mrb[0].mxu0
        %v2948 = vadd.f32 0.0, %v2947
        %v2949 = vpop.f32.mrb[0].mxu0
        %v2950 = vadd.f32 0.0, %v2949
        %v2951 = vpop.f32.mrb[0].mxu0
        %v2952 = vadd.f32 0.0, %v2951
        %v2953 = vpop.f32.mrb[0].mxu0
        %v2954 = vadd.f32 0.0, %v2953
        %2955 = vdwg.mxu0
        %2956 = vmatprep.subr.bf16.mxu0 %v2851
        %2957 = vmatpush1.bf16.msra.mxu0 %v2850
        %2958 = vmatprep.subr.bf16.mxu0 %v2859
        %2959 = vmatpush1.bf16.msra.mxu0 %v2858
        %2960 = vmatprep.subr.bf16.mxu0 0
        %2961 = vmatpush1.bf16.msra.mxu0 0
        %2962 = vmatprep.subr.bf16.mxu0 0
        %2963 = vmatpush1.bf16.msra.mxu0 0
        %2964 = vmatprep.subr.bf16.mxu0 0
        %2965 = vmatpush1.bf16.msra.mxu0 0
        %2966 = vmatprep.subr.bf16.mxu0 0
        %2967 = vmatpush1.bf16.msra.mxu0 0
        %2968 = vmatprep.subr.bf16.mxu0 0
        %2969 = vmatpush1.bf16.msra.mxu0 0
        %2970 = vmatprep.subr.bf16.mxu0 0
        %2971 = vmatpush1.bf16.msra.mxu0 0
        %2972 = vmatprep.subr.bf16.mxu0 0
        %2973 = vmatpush1.bf16.msra.mxu0 0
        %2974 = vmatprep.subr.bf16.mxu0 0
        %2975 = vmatpush1.bf16.msra.mxu0 0
        %2976 = vmatprep.subr.bf16.mxu0 0
        %2977 = vmatpush1.bf16.msra.mxu0 0
        %2978 = vmatprep.subr.bf16.mxu0 0
        %2979 = vmatpush1.bf16.msra.mxu0 0
        %2980 = vmatprep.subr.bf16.mxu0 0
        %2981 = vmatpush1.bf16.msra.mxu0 0
        %2982 = vmatprep.subr.bf16.mxu0 0
        %2983 = vmatpush1.bf16.msra.mxu0 0
        %2984 = vmatprep.subr.bf16.mxu0 0
        %2985 = vmatpush1.bf16.msra.mxu0 0
        %2986 = vmatprep.subr.bf16.mxu0 0
        %2987 = vmatpush1.bf16.msra.mxu0 0
        %2988 = vmatprep.mubr.bf16.mxu0 0
        %2989 = vmatmul.mubr.bf16.gmra.mrb[0].mxu0 %v2868
        %v2990 = vpop.f32.mrb[0].mxu0
        %v2991 = vadd.f32 0.0, %v2990
        %v2992 = vpop.f32.mrb[0].mxu0
        %v2993 = vadd.f32 0.0, %v2992
        %v2994 = vpop.f32.mrb[0].mxu0
        %v2995 = vadd.f32 0.0, %v2994
        %v2996 = vpop.f32.mrb[0].mxu0
        %v2997 = vadd.f32 0.0, %v2996
        %2998 = vdwg.mxu0
        %2999 = vmatprep.subr.bf16.mxu0 %v2853
        %3000 = vmatpush1.bf16.msra.mxu0 %v2852
        %3001 = vmatprep.subr.bf16.mxu0 %v2861
        %3002 = vmatpush1.bf16.msra.mxu0 %v2860
        %3003 = vmatprep.subr.bf16.mxu0 0
        %3004 = vmatpush1.bf16.msra.mxu0 0
        %3005 = vmatprep.subr.bf16.mxu0 0
        %3006 = vmatpush1.bf16.msra.mxu0 0
        %3007 = vmatprep.subr.bf16.mxu0 0
        %3008 = vmatpush1.bf16.msra.mxu0 0
        %3009 = vmatprep.subr.bf16.mxu0 0
        %3010 = vmatpush1.bf16.msra.mxu0 0
        %3011 = vmatprep.subr.bf16.mxu0 0
        %3012 = vmatpush1.bf16.msra.mxu0 0
        %3013 = vmatprep.subr.bf16.mxu0 0
        %3014 = vmatpush1.bf16.msra.mxu0 0
        %3015 = vmatprep.subr.bf16.mxu0 0
        %3016 = vmatpush1.bf16.msra.mxu0 0
        %3017 = vmatprep.subr.bf16.mxu0 0
        %3018 = vmatpush1.bf16.msra.mxu0 0
        %3019 = vmatprep.subr.bf16.mxu0 0
        %3020 = vmatpush1.bf16.msra.mxu0 0
        %3021 = vmatprep.subr.bf16.mxu0 0
        %3022 = vmatpush1.bf16.msra.mxu0 0
        %3023 = vmatprep.subr.bf16.mxu0 0
        %3024 = vmatpush1.bf16.msra.mxu0 0
        %3025 = vmatprep.subr.bf16.mxu0 0
        %3026 = vmatpush1.bf16.msra.mxu0 0
        %3027 = vmatprep.subr.bf16.mxu0 0
        %3028 = vmatpush1.bf16.msra.mxu0 0
        %3029 = vmatprep.subr.bf16.mxu0 0
        %3030 = vmatpush1.bf16.msra.mxu0 0
        %3031 = vmatprep.mubr.bf16.mxu0 0
        %3032 = vmatmul.mubr.bf16.gmra.mrb[0].mxu0 %v2868
        %v3033 = vpop.f32.mrb[0].mxu0
        %v3034 = vadd.f32 0.0, %v3033
        %v3035 = vpop.f32.mrb[0].mxu0
        %v3036 = vadd.f32 0.0, %v3035
        %v3037 = vpop.f32.mrb[0].mxu0
        %v3038 = vadd.f32 0.0, %v3037
        %v3039 = vpop.f32.mrb[0].mxu0
        %v3040 = vadd.f32 0.0, %v3039
        %3041 = vdwg.mxu0
        %v3042 = vadd.f32 %v2827, %v2905
        %v3043 = vadd.f32 %v2828, %v2907
        %v3044 = vadd.f32 %v2829, %v2948
        %v3045 = vadd.f32 %v2830, %v2950
        %v3046 = vadd.f32 %v2831, %v2991
        %v3047 = vadd.f32 %v2832, %v2993
        %v3048 = vadd.f32 %v2833, %v3034
        %v3049 = vadd.f32 %v2834, %v3036
        %v3050 = vadd.f32 %v2835, %v2909
        %v3051 = vadd.f32 %v2836, %v2911
        %v3052 = vadd.f32 %v2837, %v2952
        %v3053 = vadd.f32 %v2838, %v2954
        %v3054 = vadd.f32 %v2839, %v2995
        %v3055 = vadd.f32 %v2840, %v2997
        %v3056 = vadd.f32 %v2841, %v3038
        %v3057 = vadd.f32 %v2842, %v3040
        %3058 = vrot.lane.b32.xlu0 %v1149, 127
        %v3059 = vpop.permute.xlu0 %3058
        %3060 = vrot.lane.b32.xlu0 %v1153, 127
        %v3061 = vpop.permute.xlu0 %3060
        %3062 = vrot.lane.b32.xlu0 %v1159, 127
        %v3063 = vpop.permute.xlu0 %3062
        %3064 = vrot.lane.b32.xlu0 %v1163, 127
        %v3065 = vpop.permute.xlu0 %3064
        %3066 = vrot.lane.b32.xlu0 %v1151, 127
        %v3067 = vpop.permute.xlu0 %3066
        %3068 = vrot.lane.b32.xlu0 %v1155, 127
        %v3069 = vpop.permute.xlu0 %3068
        %3070 = vrot.lane.b32.xlu0 %v1161, 127
        %v3071 = vpop.permute.xlu0 %3070
        %3072 = vrot.lane.b32.xlu0 %v1165, 127
        %v3073 = vpop.permute.xlu0 %3072
        %3074 = vrot.lane.b32.xlu0 %v1202, 127
        %v3075 = vpop.permute.xlu0 %3074
        %3076 = vrot.lane.b32.xlu0 %v1206, 127
        %v3077 = vpop.permute.xlu0 %3076
        %3078 = vrot.lane.b32.xlu0 %v1212, 127
        %v3079 = vpop.permute.xlu0 %3078
        %3080 = vrot.lane.b32.xlu0 %v1216, 127
        %v3081 = vpop.permute.xlu0 %3080
        %3082 = vrot.lane.b32.xlu0 %v1204, 127
        %v3083 = vpop.permute.xlu0 %3082
        %3084 = vrot.lane.b32.xlu0 %v1208, 127
        %v3085 = vpop.permute.xlu0 %3084
        %3086 = vrot.lane.b32.xlu0 %v1214, 127
        %v3087 = vpop.permute.xlu0 %3086
        %3088 = vrot.lane.b32.xlu0 %v1218, 127
        %v3089 = vpop.permute.xlu0 %3088
        %3090 = vrot.lane.b32.xlu0 %v1255, 127
        %v3091 = vpop.permute.xlu0 %3090
        %3092 = vrot.lane.b32.xlu0 %v1259, 127
        %v3093 = vpop.permute.xlu0 %3092
        %3094 = vrot.lane.b32.xlu0 %v1265, 127
        %v3095 = vpop.permute.xlu0 %3094
        %3096 = vrot.lane.b32.xlu0 %v1269, 127
        %v3097 = vpop.permute.xlu0 %3096
        %3098 = vrot.lane.b32.xlu0 %v1257, 127
        %v3099 = vpop.permute.xlu0 %3098
        %3100 = vrot.lane.b32.xlu0 %v1261, 127
        %v3101 = vpop.permute.xlu0 %3100
        %3102 = vrot.lane.b32.xlu0 %v1267, 127
        %v3103 = vpop.permute.xlu0 %3102
        %3104 = vrot.lane.b32.xlu0 %v1271, 127
        %v3105 = vpop.permute.xlu0 %3104
        %3106 = vrot.lane.b32.xlu0 %v1308, 127
        %v3107 = vpop.permute.xlu0 %3106
        %3108 = vrot.lane.b32.xlu0 %v1312, 127
        %v3109 = vpop.permute.xlu0 %3108
        %3110 = vrot.lane.b32.xlu0 %v1318, 127
        %v3111 = vpop.permute.xlu0 %3110
        %3112 = vrot.lane.b32.xlu0 %v1322, 127
        %v3113 = vpop.permute.xlu0 %3112
        %3114 = vrot.lane.b32.xlu0 %v1310, 127
        %v3115 = vpop.permute.xlu0 %3114
        %3116 = vrot.lane.b32.xlu0 %v1314, 127
        %v3117 = vpop.permute.xlu0 %3116
        %3118 = vrot.lane.b32.xlu0 %v1320, 127
        %v3119 = vpop.permute.xlu0 %3118
        %3120 = vrot.lane.b32.xlu0 %v1324, 127
        %v3121 = vpop.permute.xlu0 %3120
        %vm3122 = vcmp.lt.s32.totalorder %v1391, 127
        %v3123 = vsel %vm3122, %v3107, %v3115
        %v3124 = vsel %vm3122, %v3109, %v3117
        %v3125 = vsel %vm3122, %v3111, %v3119
        %v3126 = vsel %vm3122, %v3113, %v3121
        %v3127 = vsel %vm3122, %v3099, %v3107
        %v3128 = vsel %vm3122, %v3101, %v3109
        %v3129 = vsel %vm3122, %v3103, %v3111
        %v3130 = vsel %vm3122, %v3105, %v3113
        %v3131 = vsel %vm3122, %v3091, %v3099
        %v3132 = vsel %vm3122, %v3093, %v3101
        %v3133 = vsel %vm3122, %v3095, %v3103
        %v3134 = vsel %vm3122, %v3097, %v3105
        %v3135 = vsel %vm3122, %v3083, %v3091
        %v3136 = vsel %vm3122, %v3085, %v3093
        %v3137 = vsel %vm3122, %v3087, %v3095
        %v3138 = vsel %vm3122, %v3089, %v3097
        %v3139 = vsel %vm3122, %v3075, %v3083
        %v3140 = vsel %vm3122, %v3077, %v3085
        %v3141 = vsel %vm3122, %v3079, %v3087
        %v3142 = vsel %vm3122, %v3081, %v3089
        %v3143 = vsel %vm3122, %v3067, %v3075
        %v3144 = vsel %vm3122, %v3069, %v3077
        %v3145 = vsel %vm3122, %v3071, %v3079
        %v3146 = vsel %vm3122, %v3073, %v3081
        %v3147 = vsel %vm3122, %v3059, %v3067
        %v3148 = vsel %vm3122, %v3061, %v3069
        %v3149 = vsel %vm3122, %v3063, %v3071
        %v3150 = vsel %vm3122, %v3065, %v3073
        %v3151 = vsel %vm3122, %v3115, %v3059
        %v3152 = vsel %vm3122, %v3117, %v3061
        %v3153 = vsel %vm3122, %v3119, %v3063
        %v3154 = vsel %vm3122, %v3121, %v3065
        %s3155 = scalar_lea.vmem [#allocation8], 40
        %v3156 = vld [vmem:[%s3155] sm:$0xff]
        %v3158 = vlaneseq
        %v3159 = vshrl.u32 %v3158, 7
        %v3160 = vsub.s32 0, %v3159
        %v3161 = vrot.slane %v3156, %v3160
        %v3162 = vlaneseq
        %v3163 = vshrl.u32 %v3162, 7
        %v3164 = vsub.s32 1, %v3163
        %v3165 = vrot.slane %v3156, %v3164
        %v3166 = vlaneseq
        %v3167 = vshrl.u32 %v3166, 7
        %v3168 = vsub.s32 2, %v3167
        %v3169 = vrot.slane %v3156, %v3168
        %v3170 = vlaneseq
        %v3171 = vshrl.u32 %v3170, 7
        %v3172 = vsub.s32 3, %v3171
        %v3173 = vrot.slane %v3156, %v3172
        %v3174 = vlaneseq
        %v3175 = vshrl.u32 %v3174, 7
        %v3176 = vsub.s32 4, %v3175
        %v3177 = vrot.slane %v3156, %v3176
        %v3178 = vlaneseq
        %v3179 = vshrl.u32 %v3178, 7
        %v3180 = vsub.s32 5, %v3179
        %v3181 = vrot.slane %v3156, %v3180
        %v3182 = vlaneseq
        %v3183 = vshrl.u32 %v3182, 7
        %v3184 = vsub.s32 6, %v3183
        %v3185 = vrot.slane %v3156, %v3184
        %v3186 = vlaneseq
        %v3187 = vshrl.u32 %v3186, 7
        %v3188 = vsub.s32 7, %v3187
        %v3189 = vrot.slane %v3156, %v3188
        %v3198 = vmul.f32 %v3147, %v3161
        %v3199 = vmul.f32 %v3143, %v3165
        %v3200 = vmul.f32 %v3139, %v3169
        %v3201 = vmul.f32 %v3135, %v3173
        %v3202 = vmul.f32 %v3131, %v3177
        %v3203 = vmul.f32 %v3127, %v3181
        %v3204 = vmul.f32 %v3123, %v3185
        %v3205 = vmul.f32 %v3151, %v3189
        %v3206 = vmul.f32 %v3148, %v3161
        %v3207 = vmul.f32 %v3144, %v3165
        %v3208 = vmul.f32 %v3140, %v3169
        %v3209 = vmul.f32 %v3136, %v3173
        %v3210 = vmul.f32 %v3132, %v3177
        %v3211 = vmul.f32 %v3128, %v3181
        %v3212 = vmul.f32 %v3124, %v3185
        %v3213 = vmul.f32 %v3152, %v3189
        %v3214 = vmul.f32 %v3149, %v3161
        %v3215 = vmul.f32 %v3145, %v3165
        %v3216 = vmul.f32 %v3141, %v3169
        %v3217 = vmul.f32 %v3137, %v3173
        %v3218 = vmul.f32 %v3133, %v3177
        %v3219 = vmul.f32 %v3129, %v3181
        %v3220 = vmul.f32 %v3125, %v3185
        %v3221 = vmul.f32 %v3153, %v3189
        %v3222 = vmul.f32 %v3150, %v3161
        %v3223 = vmul.f32 %v3146, %v3165
        %v3224 = vmul.f32 %v3142, %v3169
        %v3225 = vmul.f32 %v3138, %v3173
        %v3226 = vmul.f32 %v3134, %v3177
        %v3227 = vmul.f32 %v3130, %v3181
        %v3228 = vmul.f32 %v3126, %v3185
        %v3229 = vmul.f32 %v3154, %v3189
        %s3230 = scalar_lea.vmem [#allocation7], 40
        %v3231 = vld [vmem:[%s3230] sm:$0xf]
        %v3232 = vld [vmem:[%s3230 + $0x4] sm:$0xf]
        %v3233 = vpack.c.bf16 %v3206, %v3198
        %v3234 = vpack.c.bf16 %v3207, %v3199
        %v3235 = vpack.c.bf16 %v3208, %v3200
        %v3236 = vpack.c.bf16 %v3209, %v3201
        %v3237 = vpack.c.bf16 %v3210, %v3202
        %v3238 = vpack.c.bf16 %v3211, %v3203
        %v3239 = vpack.c.bf16 %v3212, %v3204
        %v3240 = vpack.c.bf16 %v3213, %v3205
        %v3241 = vpack.c.bf16 %v3222, %v3214
        %v3242 = vpack.c.bf16 %v3223, %v3215
        %v3243 = vpack.c.bf16 %v3224, %v3216
        %v3244 = vpack.c.bf16 %v3225, %v3217
        %v3245 = vpack.c.bf16 %v3226, %v3218
        %v3246 = vpack.c.bf16 %v3227, %v3219
        %v3247 = vpack.c.bf16 %v3228, %v3220
        %v3248 = vpack.c.bf16 %v3229, %v3221
        %v3251 = vunpack.c.l.b16 %v3231
        %v3252 = vunpack.c.l.b16 %v3232
        %v3253 = vpack.c.b16 %v3252, %v3251
        %v3255 = vsel %vm1713, %v3253, 0
        %3257 = vmatprep.subr.bf16.mxu0 %v3234
        %3258 = vmatpush1.bf16.msra.mxu0 %v3233
        %3259 = vmatprep.subr.bf16.mxu0 %v3242
        %3260 = vmatpush1.bf16.msra.mxu0 %v3241
        %3261 = vmatprep.subr.bf16.mxu0 0
        %3262 = vmatpush1.bf16.msra.mxu0 0
        %3263 = vmatprep.subr.bf16.mxu0 0
        %3264 = vmatpush1.bf16.msra.mxu0 0
        %3265 = vmatprep.subr.bf16.mxu0 0
        %3266 = vmatpush1.bf16.msra.mxu0 0
        %3267 = vmatprep.subr.bf16.mxu0 0
        %3268 = vmatpush1.bf16.msra.mxu0 0
        %3269 = vmatprep.subr.bf16.mxu0 0
        %3270 = vmatpush1.bf16.msra.mxu0 0
        %3271 = vmatprep.subr.bf16.mxu0 0
        %3272 = vmatpush1.bf16.msra.mxu0 0
        %3273 = vmatprep.subr.bf16.mxu0 0
        %3274 = vmatpush1.bf16.msra.mxu0 0
        %3275 = vmatprep.subr.bf16.mxu0 0
        %3276 = vmatpush1.bf16.msra.mxu0 0
        %3277 = vmatprep.subr.bf16.mxu0 0
        %3278 = vmatpush1.bf16.msra.mxu0 0
        %3279 = vmatprep.subr.bf16.mxu0 0
        %3280 = vmatpush1.bf16.msra.mxu0 0
        %3281 = vmatprep.subr.bf16.mxu0 0
        %3282 = vmatpush1.bf16.msra.mxu0 0
        %3283 = vmatprep.subr.bf16.mxu0 0
        %3284 = vmatpush1.bf16.msra.mxu0 0
        %3285 = vmatprep.subr.bf16.mxu0 0
        %3286 = vmatpush1.bf16.msra.mxu0 0
        %3287 = vmatprep.subr.bf16.mxu0 0
        %3288 = vmatpush1.bf16.msra.mxu0 0
        %3289 = vmatprep.mubr.bf16.mxu0 0
        %3290 = vmatmul.mubr.bf16.gmra.mrb[0].mxu0 %v3255
        %v3291 = vpop.f32.mrb[0].mxu0
        %v3292 = vadd.f32 0.0, %v3291
        %v3293 = vpop.f32.mrb[0].mxu0
        %v3294 = vadd.f32 0.0, %v3293
        %v3295 = vpop.f32.mrb[0].mxu0
        %v3296 = vadd.f32 0.0, %v3295
        %v3297 = vpop.f32.mrb[0].mxu0
        %v3298 = vadd.f32 0.0, %v3297
        %3299 = vdwg.mxu0
        %3300 = vmatprep.subr.bf16.mxu0 %v3236
        %3301 = vmatpush1.bf16.msra.mxu0 %v3235
        %3302 = vmatprep.subr.bf16.mxu0 %v3244
        %3303 = vmatpush1.bf16.msra.mxu0 %v3243
        %3304 = vmatprep.subr.bf16.mxu0 0
        %3305 = vmatpush1.bf16.msra.mxu0 0
        %3306 = vmatprep.subr.bf16.mxu0 0
        %3307 = vmatpush1.bf16.msra.mxu0 0
        %3308 = vmatprep.subr.bf16.mxu0 0
        %3309 = vmatpush1.bf16.msra.mxu0 0
        %3310 = vmatprep.subr.bf16.mxu0 0
        %3311 = vmatpush1.bf16.msra.mxu0 0
        %3312 = vmatprep.subr.bf16.mxu0 0
        %3313 = vmatpush1.bf16.msra.mxu0 0
        %3314 = vmatprep.subr.bf16.mxu0 0
        %3315 = vmatpush1.bf16.msra.mxu0 0
        %3316 = vmatprep.subr.bf16.mxu0 0
        %3317 = vmatpush1.bf16.msra.mxu0 0
        %3318 = vmatprep.subr.bf16.mxu0 0
        %3319 = vmatpush1.bf16.msra.mxu0 0
        %3320 = vmatprep.subr.bf16.mxu0 0
        %3321 = vmatpush1.bf16.msra.mxu0 0
        %3322 = vmatprep.subr.bf16.mxu0 0
        %3323 = vmatpush1.bf16.msra.mxu0 0
        %3324 = vmatprep.subr.bf16.mxu0 0
        %3325 = vmatpush1.bf16.msra.mxu0 0
        %3326 = vmatprep.subr.bf16.mxu0 0
        %3327 = vmatpush1.bf16.msra.mxu0 0
        %3328 = vmatprep.subr.bf16.mxu0 0
        %3329 = vmatpush1.bf16.msra.mxu0 0
        %3330 = vmatprep.subr.bf16.mxu0 0
        %3331 = vmatpush1.bf16.msra.mxu0 0
        %3332 = vmatprep.mubr.bf16.mxu0 0
        %3333 = vmatmul.mubr.bf16.gmra.mrb[0].mxu0 %v3255
        %v3334 = vpop.f32.mrb[0].mxu0
        %v3335 = vadd.f32 0.0, %v3334
        %v3336 = vpop.f32.mrb[0].mxu0
        %v3337 = vadd.f32 0.0, %v3336
        %v3338 = vpop.f32.mrb[0].mxu0
        %v3339 = vadd.f32 0.0, %v3338
        %v3340 = vpop.f32.mrb[0].mxu0
        %v3341 = vadd.f32 0.0, %v3340
        %3342 = vdwg.mxu0
        %3343 = vmatprep.subr.bf16.mxu0 %v3238
        %3344 = vmatpush1.bf16.msra.mxu0 %v3237
        %3345 = vmatprep.subr.bf16.mxu0 %v3246
        %3346 = vmatpush1.bf16.msra.mxu0 %v3245
        %3347 = vmatprep.subr.bf16.mxu0 0
        %3348 = vmatpush1.bf16.msra.mxu0 0
        %3349 = vmatprep.subr.bf16.mxu0 0
        %3350 = vmatpush1.bf16.msra.mxu0 0
        %3351 = vmatprep.subr.bf16.mxu0 0
        %3352 = vmatpush1.bf16.msra.mxu0 0
        %3353 = vmatprep.subr.bf16.mxu0 0
        %3354 = vmatpush1.bf16.msra.mxu0 0
        %3355 = vmatprep.subr.bf16.mxu0 0
        %3356 = vmatpush1.bf16.msra.mxu0 0
        %3357 = vmatprep.subr.bf16.mxu0 0
        %3358 = vmatpush1.bf16.msra.mxu0 0
        %3359 = vmatprep.subr.bf16.mxu0 0
        %3360 = vmatpush1.bf16.msra.mxu0 0
        %3361 = vmatprep.subr.bf16.mxu0 0
        %3362 = vmatpush1.bf16.msra.mxu0 0
        %3363 = vmatprep.subr.bf16.mxu0 0
        %3364 = vmatpush1.bf16.msra.mxu0 0
        %3365 = vmatprep.subr.bf16.mxu0 0
        %3366 = vmatpush1.bf16.msra.mxu0 0
        %3367 = vmatprep.subr.bf16.mxu0 0
        %3368 = vmatpush1.bf16.msra.mxu0 0
        %3369 = vmatprep.subr.bf16.mxu0 0
        %3370 = vmatpush1.bf16.msra.mxu0 0
        %3371 = vmatprep.subr.bf16.mxu0 0
        %3372 = vmatpush1.bf16.msra.mxu0 0
        %3373 = vmatprep.subr.bf16.mxu0 0
        %3374 = vmatpush1.bf16.msra.mxu0 0
        %3375 = vmatprep.mubr.bf16.mxu0 0
        %3376 = vmatmul.mubr.bf16.gmra.mrb[0].mxu0 %v3255
        %v3377 = vpop.f32.mrb[0].mxu0
        %v3378 = vadd.f32 0.0, %v3377
        %v3379 = vpop.f32.mrb[0].mxu0
        %v3380 = vadd.f32 0.0, %v3379
        %v3381 = vpop.f32.mrb[0].mxu0
        %v3382 = vadd.f32 0.0, %v3381
        %v3383 = vpop.f32.mrb[0].mxu0
        %v3384 = vadd.f32 0.0, %v3383
        %3385 = vdwg.mxu0
        %3386 = vmatprep.subr.bf16.mxu0 %v3240
        %3387 = vmatpush1.bf16.msra.mxu0 %v3239
        %3388 = vmatprep.subr.bf16.mxu0 %v3248
        %3389 = vmatpush1.bf16.msra.mxu0 %v3247
        %3390 = vmatprep.subr.bf16.mxu0 0
        %3391 = vmatpush1.bf16.msra.mxu0 0
        %3392 = vmatprep.subr.bf16.mxu0 0
        %3393 = vmatpush1.bf16.msra.mxu0 0
        %3394 = vmatprep.subr.bf16.mxu0 0
        %3395 = vmatpush1.bf16.msra.mxu0 0
        %3396 = vmatprep.subr.bf16.mxu0 0
        %3397 = vmatpush1.bf16.msra.mxu0 0
        %3398 = vmatprep.subr.bf16.mxu0 0
        %3399 = vmatpush1.bf16.msra.mxu0 0
        %3400 = vmatprep.subr.bf16.mxu0 0
        %3401 = vmatpush1.bf16.msra.mxu0 0
        %3402 = vmatprep.subr.bf16.mxu0 0
        %3403 = vmatpush1.bf16.msra.mxu0 0
        %3404 = vmatprep.subr.bf16.mxu0 0
        %3405 = vmatpush1.bf16.msra.mxu0 0
        %3406 = vmatprep.subr.bf16.mxu0 0
        %3407 = vmatpush1.bf16.msra.mxu0 0
        %3408 = vmatprep.subr.bf16.mxu0 0
        %3409 = vmatpush1.bf16.msra.mxu0 0
        %3410 = vmatprep.subr.bf16.mxu0 0
        %3411 = vmatpush1.bf16.msra.mxu0 0
        %3412 = vmatprep.subr.bf16.mxu0 0
        %3413 = vmatpush1.bf16.msra.mxu0 0
        %3414 = vmatprep.subr.bf16.mxu0 0
        %3415 = vmatpush1.bf16.msra.mxu0 0
        %3416 = vmatprep.subr.bf16.mxu0 0
        %3417 = vmatpush1.bf16.msra.mxu0 0
        %3418 = vmatprep.mubr.bf16.mxu0 0
        %3419 = vmatmul.mubr.bf16.gmra.mrb[0].mxu0 %v3255
        %v3420 = vpop.f32.mrb[0].mxu0
        %v3421 = vadd.f32 0.0, %v3420
        %v3422 = vpop.f32.mrb[0].mxu0
        %v3423 = vadd.f32 0.0, %v3422
        %v3424 = vpop.f32.mrb[0].mxu0
        %v3425 = vadd.f32 0.0, %v3424
        %v3426 = vpop.f32.mrb[0].mxu0
        %v3427 = vadd.f32 0.0, %v3426
        %3428 = vdwg.mxu0
        %v3429 = vadd.f32 %v3042, %v3292
        %v3430 = vadd.f32 %v3043, %v3294
        %v3431 = vadd.f32 %v3044, %v3335
        %v3432 = vadd.f32 %v3045, %v3337
        %v3433 = vadd.f32 %v3046, %v3378
        %v3434 = vadd.f32 %v3047, %v3380
        %v3435 = vadd.f32 %v3048, %v3421
        %v3436 = vadd.f32 %v3049, %v3423
        %v3437 = vadd.f32 %v3050, %v3296
        %v3438 = vadd.f32 %v3051, %v3298
        %v3439 = vadd.f32 %v3052, %v3339
        %v3440 = vadd.f32 %v3053, %v3341
        %v3441 = vadd.f32 %v3054, %v3382
        %v3442 = vadd.f32 %v3055, %v3384
        %v3443 = vadd.f32 %v3056, %v3425
        %v3444 = vadd.f32 %v3057, %v3427
        %3445 = vrot.lane.b32.xlu0 %v1149, 97
        %v3446 = vpop.permute.xlu0 %3445
        %3447 = vrot.lane.b32.xlu0 %v1153, 97
        %v3448 = vpop.permute.xlu0 %3447
        %3449 = vrot.lane.b32.xlu0 %v1159, 97
        %v3450 = vpop.permute.xlu0 %3449
        %3451 = vrot.lane.b32.xlu0 %v1163, 97
        %v3452 = vpop.permute.xlu0 %3451
        %3453 = vrot.lane.b32.xlu0 %v1151, 97
        %v3454 = vpop.permute.xlu0 %3453
        %3455 = vrot.lane.b32.xlu0 %v1155, 97
        %v3456 = vpop.permute.xlu0 %3455
        %3457 = vrot.lane.b32.xlu0 %v1161, 97
        %v3458 = vpop.permute.xlu0 %3457
        %3459 = vrot.lane.b32.xlu0 %v1165, 97
        %v3460 = vpop.permute.xlu0 %3459
        %3461 = vrot.lane.b32.xlu0 %v1202, 97
        %v3462 = vpop.permute.xlu0 %3461
        %3463 = vrot.lane.b32.xlu0 %v1206, 97
        %v3464 = vpop.permute.xlu0 %3463
        %3465 = vrot.lane.b32.xlu0 %v1212, 97
        %v3466 = vpop.permute.xlu0 %3465
        %3467 = vrot.lane.b32.xlu0 %v1216, 97
        %v3468 = vpop.permute.xlu0 %3467
        %3469 = vrot.lane.b32.xlu0 %v1204, 97
        %v3470 = vpop.permute.xlu0 %3469
        %3471 = vrot.lane.b32.xlu0 %v1208, 97
        %v3472 = vpop.permute.xlu0 %3471
        %3473 = vrot.lane.b32.xlu0 %v1214, 97
        %v3474 = vpop.permute.xlu0 %3473
        %3475 = vrot.lane.b32.xlu0 %v1218, 97
        %v3476 = vpop.permute.xlu0 %3475
        %3477 = vrot.lane.b32.xlu0 %v1255, 97
        %v3478 = vpop.permute.xlu0 %3477
        %3479 = vrot.lane.b32.xlu0 %v1259, 97
        %v3480 = vpop.permute.xlu0 %3479
        %3481 = vrot.lane.b32.xlu0 %v1265, 97
        %v3482 = vpop.permute.xlu0 %3481
        %3483 = vrot.lane.b32.xlu0 %v1269, 97
        %v3484 = vpop.permute.xlu0 %3483
        %3485 = vrot.lane.b32.xlu0 %v1257, 97
        %v3486 = vpop.permute.xlu0 %3485
        %3487 = vrot.lane.b32.xlu0 %v1261, 97
        %v3488 = vpop.permute.xlu0 %3487
        %3489 = vrot.lane.b32.xlu0 %v1267, 97
        %v3490 = vpop.permute.xlu0 %3489
        %3491 = vrot.lane.b32.xlu0 %v1271, 97
        %v3492 = vpop.permute.xlu0 %3491
        %3493 = vrot.lane.b32.xlu0 %v1308, 97
        %v3494 = vpop.permute.xlu0 %3493
        %3495 = vrot.lane.b32.xlu0 %v1312, 97
        %v3496 = vpop.permute.xlu0 %3495
        %3497 = vrot.lane.b32.xlu0 %v1318, 97
        %v3498 = vpop.permute.xlu0 %3497
        %3499 = vrot.lane.b32.xlu0 %v1322, 97
        %v3500 = vpop.permute.xlu0 %3499
        %3501 = vrot.lane.b32.xlu0 %v1310, 97
        %v3502 = vpop.permute.xlu0 %3501
        %3503 = vrot.lane.b32.xlu0 %v1314, 97
        %v3504 = vpop.permute.xlu0 %3503
        %3505 = vrot.lane.b32.xlu0 %v1320, 97
        %v3506 = vpop.permute.xlu0 %3505
        %3507 = vrot.lane.b32.xlu0 %v1324, 97
        %v3508 = vpop.permute.xlu0 %3507
        %vm3509 = vcmp.lt.s32.totalorder %v1391, 97
        %v3510 = vsel %vm3509, %v3494, %v3502
        %v3511 = vsel %vm3509, %v3496, %v3504
        %v3512 = vsel %vm3509, %v3498, %v3506
        %v3513 = vsel %vm3509, %v3500, %v3508
        %v3514 = vsel %vm3509, %v3486, %v3494
        %v3515 = vsel %vm3509, %v3488, %v3496
        %v3516 = vsel %vm3509, %v3490, %v3498
        %v3517 = vsel %vm3509, %v3492, %v3500
        %v3518 = vsel %vm3509, %v3478, %v3486
        %v3519 = vsel %vm3509, %v3480, %v3488
        %v3520 = vsel %vm3509, %v3482, %v3490
        %v3521 = vsel %vm3509, %v3484, %v3492
        %v3522 = vsel %vm3509, %v3470, %v3478
        %v3523 = vsel %vm3509, %v3472, %v3480
        %v3524 = vsel %vm3509, %v3474, %v3482
        %v3525 = vsel %vm3509, %v3476, %v3484
        %v3526 = vsel %vm3509, %v3462, %v3470
        %v3527 = vsel %vm3509, %v3464, %v3472
        %v3528 = vsel %vm3509, %v3466, %v3474
        %v3529 = vsel %vm3509, %v3468, %v3476
        %v3530 = vsel %vm3509, %v3454, %v3462
        %v3531 = vsel %vm3509, %v3456, %v3464
        %v3532 = vsel %vm3509, %v3458, %v3466
        %v3533 = vsel %vm3509, %v3460, %v3468
        %v3534 = vsel %vm3509, %v3446, %v3454
        %v3535 = vsel %vm3509, %v3448, %v3456
        %v3536 = vsel %vm3509, %v3450, %v3458
        %v3537 = vsel %vm3509, %v3452, %v3460
        %v3538 = vsel %vm3509, %v3502, %v3446
        %v3539 = vsel %vm3509, %v3504, %v3448
        %v3540 = vsel %vm3509, %v3506, %v3450
        %v3541 = vsel %vm3509, %v3508, %v3452
        %s3542 = scalar_lea.vmem [#allocation8], 48
        %v3543 = vld [vmem:[%s3542] sm:$0xff]
        %v3545 = vlaneseq
        %v3546 = vshrl.u32 %v3545, 7
        %v3547 = vsub.s32 0, %v3546
        %v3548 = vrot.slane %v3543, %v3547
        %v3549 = vlaneseq
        %v3550 = vshrl.u32 %v3549, 7
        %v3551 = vsub.s32 1, %v3550
        %v3552 = vrot.slane %v3543, %v3551
        %v3553 = vlaneseq
        %v3554 = vshrl.u32 %v3553, 7
        %v3555 = vsub.s32 2, %v3554
        %v3556 = vrot.slane %v3543, %v3555
        %v3557 = vlaneseq
        %v3558 = vshrl.u32 %v3557, 7
        %v3559 = vsub.s32 3, %v3558
        %v3560 = vrot.slane %v3543, %v3559
        %v3561 = vlaneseq
        %v3562 = vshrl.u32 %v3561, 7
        %v3563 = vsub.s32 4, %v3562
        %v3564 = vrot.slane %v3543, %v3563
        %v3565 = vlaneseq
        %v3566 = vshrl.u32 %v3565, 7
        %v3567 = vsub.s32 5, %v3566
        %v3568 = vrot.slane %v3543, %v3567
        %v3569 = vlaneseq
        %v3570 = vshrl.u32 %v3569, 7
        %v3571 = vsub.s32 6, %v3570
        %v3572 = vrot.slane %v3543, %v3571
        %v3573 = vlaneseq
        %v3574 = vshrl.u32 %v3573, 7
        %v3575 = vsub.s32 7, %v3574
        %v3576 = vrot.slane %v3543, %v3575
        %v3585 = vmul.f32 %v3534, %v3548
        %v3586 = vmul.f32 %v3530, %v3552
        %v3587 = vmul.f32 %v3526, %v3556
        %v3588 = vmul.f32 %v3522, %v3560
        %v3589 = vmul.f32 %v3518, %v3564
        %v3590 = vmul.f32 %v3514, %v3568
        %v3591 = vmul.f32 %v3510, %v3572
        %v3592 = vmul.f32 %v3538, %v3576
        %v3593 = vmul.f32 %v3535, %v3548
        %v3594 = vmul.f32 %v3531, %v3552
        %v3595 = vmul.f32 %v3527, %v3556
        %v3596 = vmul.f32 %v3523, %v3560
        %v3597 = vmul.f32 %v3519, %v3564
        %v3598 = vmul.f32 %v3515, %v3568
        %v3599 = vmul.f32 %v3511, %v3572
        %v3600 = vmul.f32 %v3539, %v3576
        %v3601 = vmul.f32 %v3536, %v3548
        %v3602 = vmul.f32 %v3532, %v3552
        %v3603 = vmul.f32 %v3528, %v3556
        %v3604 = vmul.f32 %v3524, %v3560
        %v3605 = vmul.f32 %v3520, %v3564
        %v3606 = vmul.f32 %v3516, %v3568
        %v3607 = vmul.f32 %v3512, %v3572
        %v3608 = vmul.f32 %v3540, %v3576
        %v3609 = vmul.f32 %v3537, %v3548
        %v3610 = vmul.f32 %v3533, %v3552
        %v3611 = vmul.f32 %v3529, %v3556
        %v3612 = vmul.f32 %v3525, %v3560
        %v3613 = vmul.f32 %v3521, %v3564
        %v3614 = vmul.f32 %v3517, %v3568
        %v3615 = vmul.f32 %v3513, %v3572
        %v3616 = vmul.f32 %v3541, %v3576
        %s3617 = scalar_lea.vmem [#allocation7], 48
        %v3618 = vld [vmem:[%s3617] sm:$0xf]
        %v3619 = vld [vmem:[%s3617 + $0x4] sm:$0xf]
        %v3620 = vpack.c.bf16 %v3593, %v3585
        %v3621 = vpack.c.bf16 %v3594, %v3586
        %v3622 = vpack.c.bf16 %v3595, %v3587
        %v3623 = vpack.c.bf16 %v3596, %v3588
        %v3624 = vpack.c.bf16 %v3597, %v3589
        %v3625 = vpack.c.bf16 %v3598, %v3590
        %v3626 = vpack.c.bf16 %v3599, %v3591
        %v3627 = vpack.c.bf16 %v3600, %v3592
        %v3628 = vpack.c.bf16 %v3609, %v3601
        %v3629 = vpack.c.bf16 %v3610, %v3602
        %v3630 = vpack.c.bf16 %v3611, %v3603
        %v3631 = vpack.c.bf16 %v3612, %v3604
        %v3632 = vpack.c.bf16 %v3613, %v3605
        %v3633 = vpack.c.bf16 %v3614, %v3606
        %v3634 = vpack.c.bf16 %v3615, %v3607
        %v3635 = vpack.c.bf16 %v3616, %v3608
        %v3638 = vunpack.c.l.b16 %v3618
        %v3639 = vunpack.c.l.b16 %v3619
        %v3640 = vpack.c.b16 %v3639, %v3638
        %v3642 = vsel %vm1713, %v3640, 0
        %3644 = vmatprep.subr.bf16.mxu0 %v3621
        %3645 = vmatpush1.bf16.msra.mxu0 %v3620
        %3646 = vmatprep.subr.bf16.mxu0 %v3629
        %3647 = vmatpush1.bf16.msra.mxu0 %v3628
        %3648 = vmatprep.subr.bf16.mxu0 0
        %3649 = vmatpush1.bf16.msra.mxu0 0
        %3650 = vmatprep.subr.bf16.mxu0 0
        %3651 = vmatpush1.bf16.msra.mxu0 0
        %3652 = vmatprep.subr.bf16.mxu0 0
        %3653 = vmatpush1.bf16.msra.mxu0 0
        %3654 = vmatprep.subr.bf16.mxu0 0
        %3655 = vmatpush1.bf16.msra.mxu0 0
        %3656 = vmatprep.subr.bf16.mxu0 0
        %3657 = vmatpush1.bf16.msra.mxu0 0
        %3658 = vmatprep.subr.bf16.mxu0 0
        %3659 = vmatpush1.bf16.msra.mxu0 0
        %3660 = vmatprep.subr.bf16.mxu0 0
        %3661 = vmatpush1.bf16.msra.mxu0 0
        %3662 = vmatprep.subr.bf16.mxu0 0
        %3663 = vmatpush1.bf16.msra.mxu0 0
        %3664 = vmatprep.subr.bf16.mxu0 0
        %3665 = vmatpush1.bf16.msra.mxu0 0
        %3666 = vmatprep.subr.bf16.mxu0 0
        %3667 = vmatpush1.bf16.msra.mxu0 0
        %3668 = vmatprep.subr.bf16.mxu0 0
        %3669 = vmatpush1.bf16.msra.mxu0 0
        %3670 = vmatprep.subr.bf16.mxu0 0
        %3671 = vmatpush1.bf16.msra.mxu0 0
        %3672 = vmatprep.subr.bf16.mxu0 0
        %3673 = vmatpush1.bf16.msra.mxu0 0
        %3674 = vmatprep.subr.bf16.mxu0 0
        %3675 = vmatpush1.bf16.msra.mxu0 0
        %3676 = vmatprep.mubr.bf16.mxu0 0
        %3677 = vmatmul.mubr.bf16.gmra.mrb[0].mxu0 %v3642
        %v3678 = vpop.f32.mrb[0].mxu0
        %v3679 = vadd.f32 0.0, %v3678
        %v3680 = vpop.f32.mrb[0].mxu0
        %v3681 = vadd.f32 0.0, %v3680
        %v3682 = vpop.f32.mrb[0].mxu0
        %v3683 = vadd.f32 0.0, %v3682
        %v3684 = vpop.f32.mrb[0].mxu0
        %v3685 = vadd.f32 0.0, %v3684
        %3686 = vdwg.mxu0
        %3687 = vmatprep.subr.bf16.mxu0 %v3623
        %3688 = vmatpush1.bf16.msra.mxu0 %v3622
        %3689 = vmatprep.subr.bf16.mxu0 %v3631
        %3690 = vmatpush1.bf16.msra.mxu0 %v3630
        %3691 = vmatprep.subr.bf16.mxu0 0
        %3692 = vmatpush1.bf16.msra.mxu0 0
        %3693 = vmatprep.subr.bf16.mxu0 0
        %3694 = vmatpush1.bf16.msra.mxu0 0
        %3695 = vmatprep.subr.bf16.mxu0 0
        %3696 = vmatpush1.bf16.msra.mxu0 0
        %3697 = vmatprep.subr.bf16.mxu0 0
        %3698 = vmatpush1.bf16.msra.mxu0 0
        %3699 = vmatprep.subr.bf16.mxu0 0
        %3700 = vmatpush1.bf16.msra.mxu0 0
        %3701 = vmatprep.subr.bf16.mxu0 0
        %3702 = vmatpush1.bf16.msra.mxu0 0
        %3703 = vmatprep.subr.bf16.mxu0 0
        %3704 = vmatpush1.bf16.msra.mxu0 0
        %3705 = vmatprep.subr.bf16.mxu0 0
        %3706 = vmatpush1.bf16.msra.mxu0 0
        %3707 = vmatprep.subr.bf16.mxu0 0
        %3708 = vmatpush1.bf16.msra.mxu0 0
        %3709 = vmatprep.subr.bf16.mxu0 0
        %3710 = vmatpush1.bf16.msra.mxu0 0
        %3711 = vmatprep.subr.bf16.mxu0 0
        %3712 = vmatpush1.bf16.msra.mxu0 0
        %3713 = vmatprep.subr.bf16.mxu0 0
        %3714 = vmatpush1.bf16.msra.mxu0 0
        %3715 = vmatprep.subr.bf16.mxu0 0
        %3716 = vmatpush1.bf16.msra.mxu0 0
        %3717 = vmatprep.subr.bf16.mxu0 0
        %3718 = vmatpush1.bf16.msra.mxu0 0
        %3719 = vmatprep.mubr.bf16.mxu0 0
        %3720 = vmatmul.mubr.bf16.gmra.mrb[0].mxu0 %v3642
        %v3721 = vpop.f32.mrb[0].mxu0
        %v3722 = vadd.f32 0.0, %v3721
        %v3723 = vpop.f32.mrb[0].mxu0
        %v3724 = vadd.f32 0.0, %v3723
        %v3725 = vpop.f32.mrb[0].mxu0
        %v3726 = vadd.f32 0.0, %v3725
        %v3727 = vpop.f32.mrb[0].mxu0
        %v3728 = vadd.f32 0.0, %v3727
        %3729 = vdwg.mxu0
        %3730 = vmatprep.subr.bf16.mxu0 %v3625
        %3731 = vmatpush1.bf16.msra.mxu0 %v3624
        %3732 = vmatprep.subr.bf16.mxu0 %v3633
        %3733 = vmatpush1.bf16.msra.mxu0 %v3632
        %3734 = vmatprep.subr.bf16.mxu0 0
        %3735 = vmatpush1.bf16.msra.mxu0 0
        %3736 = vmatprep.subr.bf16.mxu0 0
        %3737 = vmatpush1.bf16.msra.mxu0 0
        %3738 = vmatprep.subr.bf16.mxu0 0
        %3739 = vmatpush1.bf16.msra.mxu0 0
        %3740 = vmatprep.subr.bf16.mxu0 0
        %3741 = vmatpush1.bf16.msra.mxu0 0
        %3742 = vmatprep.subr.bf16.mxu0 0
        %3743 = vmatpush1.bf16.msra.mxu0 0
        %3744 = vmatprep.subr.bf16.mxu0 0
        %3745 = vmatpush1.bf16.msra.mxu0 0
        %3746 = vmatprep.subr.bf16.mxu0 0
        %3747 = vmatpush1.bf16.msra.mxu0 0
        %3748 = vmatprep.subr.bf16.mxu0 0
        %3749 = vmatpush1.bf16.msra.mxu0 0
        %3750 = vmatprep.subr.bf16.mxu0 0
        %3751 = vmatpush1.bf16.msra.mxu0 0
        %3752 = vmatprep.subr.bf16.mxu0 0
        %3753 = vmatpush1.bf16.msra.mxu0 0
        %3754 = vmatprep.subr.bf16.mxu0 0
        %3755 = vmatpush1.bf16.msra.mxu0 0
        %3756 = vmatprep.subr.bf16.mxu0 0
        %3757 = vmatpush1.bf16.msra.mxu0 0
        %3758 = vmatprep.subr.bf16.mxu0 0
        %3759 = vmatpush1.bf16.msra.mxu0 0
        %3760 = vmatprep.subr.bf16.mxu0 0
        %3761 = vmatpush1.bf16.msra.mxu0 0
        %3762 = vmatprep.mubr.bf16.mxu0 0
        %3763 = vmatmul.mubr.bf16.gmra.mrb[0].mxu0 %v3642
        %v3764 = vpop.f32.mrb[0].mxu0
        %v3765 = vadd.f32 0.0, %v3764
        %v3766 = vpop.f32.mrb[0].mxu0
        %v3767 = vadd.f32 0.0, %v3766
        %v3768 = vpop.f32.mrb[0].mxu0
        %v3769 = vadd.f32 0.0, %v3768
        %v3770 = vpop.f32.mrb[0].mxu0
        %v3771 = vadd.f32 0.0, %v3770
        %3772 = vdwg.mxu0
        %3773 = vmatprep.subr.bf16.mxu0 %v3627
        %3774 = vmatpush1.bf16.msra.mxu0 %v3626
        %3775 = vmatprep.subr.bf16.mxu0 %v3635
        %3776 = vmatpush1.bf16.msra.mxu0 %v3634
        %3777 = vmatprep.subr.bf16.mxu0 0
        %3778 = vmatpush1.bf16.msra.mxu0 0
        %3779 = vmatprep.subr.bf16.mxu0 0
        %3780 = vmatpush1.bf16.msra.mxu0 0
        %3781 = vmatprep.subr.bf16.mxu0 0
        %3782 = vmatpush1.bf16.msra.mxu0 0
        %3783 = vmatprep.subr.bf16.mxu0 0
        %3784 = vmatpush1.bf16.msra.mxu0 0
        %3785 = vmatprep.subr.bf16.mxu0 0
        %3786 = vmatpush1.bf16.msra.mxu0 0
        %3787 = vmatprep.subr.bf16.mxu0 0
        %3788 = vmatpush1.bf16.msra.mxu0 0
        %3789 = vmatprep.subr.bf16.mxu0 0
        %3790 = vmatpush1.bf16.msra.mxu0 0
        %3791 = vmatprep.subr.bf16.mxu0 0
        %3792 = vmatpush1.bf16.msra.mxu0 0
        %3793 = vmatprep.subr.bf16.mxu0 0
        %3794 = vmatpush1.bf16.msra.mxu0 0
        %3795 = vmatprep.subr.bf16.mxu0 0
        %3796 = vmatpush1.bf16.msra.mxu0 0
        %3797 = vmatprep.subr.bf16.mxu0 0
        %3798 = vmatpush1.bf16.msra.mxu0 0
        %3799 = vmatprep.subr.bf16.mxu0 0
        %3800 = vmatpush1.bf16.msra.mxu0 0
        %3801 = vmatprep.subr.bf16.mxu0 0
        %3802 = vmatpush1.bf16.msra.mxu0 0
        %3803 = vmatprep.subr.bf16.mxu0 0
        %3804 = vmatpush1.bf16.msra.mxu0 0
        %3805 = vmatprep.mubr.bf16.mxu0 0
        %3806 = vmatmul.mubr.bf16.gmra.mrb[0].mxu0 %v3642
        %v3807 = vpop.f32.mrb[0].mxu0
        %v3808 = vadd.f32 0.0, %v3807
        %v3809 = vpop.f32.mrb[0].mxu0
        %v3810 = vadd.f32 0.0, %v3809
        %v3811 = vpop.f32.mrb[0].mxu0
        %v3812 = vadd.f32 0.0, %v3811
        %v3813 = vpop.f32.mrb[0].mxu0
        %v3814 = vadd.f32 0.0, %v3813
        %3815 = vdwg.mxu0
        %v3816 = vadd.f32 %v3429, %v3679
        %v3817 = vadd.f32 %v3430, %v3681
        %v3818 = vadd.f32 %v3431, %v3722
        %v3819 = vadd.f32 %v3432, %v3724
        %v3820 = vadd.f32 %v3433, %v3765
        %v3821 = vadd.f32 %v3434, %v3767
        %v3822 = vadd.f32 %v3435, %v3808
        %v3823 = vadd.f32 %v3436, %v3810
        %v3824 = vadd.f32 %v3437, %v3683
        %v3825 = vadd.f32 %v3438, %v3685
        %v3826 = vadd.f32 %v3439, %v3726
        %v3827 = vadd.f32 %v3440, %v3728
        %v3828 = vadd.f32 %v3441, %v3769
        %v3829 = vadd.f32 %v3442, %v3771
        %v3830 = vadd.f32 %v3443, %v3812
        %v3831 = vadd.f32 %v3444, %v3814
        %3832 = vrot.lane.b32.xlu0 %v1149, 96
        %v3833 = vpop.permute.xlu0 %3832
        %3834 = vrot.lane.b32.xlu0 %v1153, 96
        %v3835 = vpop.permute.xlu0 %3834
        %3836 = vrot.lane.b32.xlu0 %v1159, 96
        %v3837 = vpop.permute.xlu0 %3836
        %3838 = vrot.lane.b32.xlu0 %v1163, 96
        %v3839 = vpop.permute.xlu0 %3838
        %3840 = vrot.lane.b32.xlu0 %v1151, 96
        %v3841 = vpop.permute.xlu0 %3840
        %3842 = vrot.lane.b32.xlu0 %v1155, 96
        %v3843 = vpop.permute.xlu0 %3842
        %3844 = vrot.lane.b32.xlu0 %v1161, 96
        %v3845 = vpop.permute.xlu0 %3844
        %3846 = vrot.lane.b32.xlu0 %v1165, 96
        %v3847 = vpop.permute.xlu0 %3846
        %3848 = vrot.lane.b32.xlu0 %v1202, 96
        %v3849 = vpop.permute.xlu0 %3848
        %3850 = vrot.lane.b32.xlu0 %v1206, 96
        %v3851 = vpop.permute.xlu0 %3850
        %3852 = vrot.lane.b32.xlu0 %v1212, 96
        %v3853 = vpop.permute.xlu0 %3852
        %3854 = vrot.lane.b32.xlu0 %v1216, 96
        %v3855 = vpop.permute.xlu0 %3854
        %3856 = vrot.lane.b32.xlu0 %v1204, 96
        %v3857 = vpop.permute.xlu0 %3856
        %3858 = vrot.lane.b32.xlu0 %v1208, 96
        %v3859 = vpop.permute.xlu0 %3858
        %3860 = vrot.lane.b32.xlu0 %v1214, 96
        %v3861 = vpop.permute.xlu0 %3860
        %3862 = vrot.lane.b32.xlu0 %v1218, 96
        %v3863 = vpop.permute.xlu0 %3862
        %3864 = vrot.lane.b32.xlu0 %v1255, 96
        %v3865 = vpop.permute.xlu0 %3864
        %3866 = vrot.lane.b32.xlu0 %v1259, 96
        %v3867 = vpop.permute.xlu0 %3866
        %3868 = vrot.lane.b32.xlu0 %v1265, 96
        %v3869 = vpop.permute.xlu0 %3868
        %3870 = vrot.lane.b32.xlu0 %v1269, 96
        %v3871 = vpop.permute.xlu0 %3870
        %3872 = vrot.lane.b32.xlu0 %v1257, 96
        %v3873 = vpop.permute.xlu0 %3872
        %3874 = vrot.lane.b32.xlu0 %v1261, 96
        %v3875 = vpop.permute.xlu0 %3874
        %3876 = vrot.lane.b32.xlu0 %v1267, 96
        %v3877 = vpop.permute.xlu0 %3876
        %3878 = vrot.lane.b32.xlu0 %v1271, 96
        %v3879 = vpop.permute.xlu0 %3878
        %3880 = vrot.lane.b32.xlu0 %v1308, 96
        %v3881 = vpop.permute.xlu0 %3880
        %3882 = vrot.lane.b32.xlu0 %v1312, 96
        %v3883 = vpop.permute.xlu0 %3882
        %3884 = vrot.lane.b32.xlu0 %v1318, 96
        %v3885 = vpop.permute.xlu0 %3884
        %3886 = vrot.lane.b32.xlu0 %v1322, 96
        %v3887 = vpop.permute.xlu0 %3886
        %3888 = vrot.lane.b32.xlu0 %v1310, 96
        %v3889 = vpop.permute.xlu0 %3888
        %3890 = vrot.lane.b32.xlu0 %v1314, 96
        %v3891 = vpop.permute.xlu0 %3890
        %3892 = vrot.lane.b32.xlu0 %v1320, 96
        %v3893 = vpop.permute.xlu0 %3892
        %3894 = vrot.lane.b32.xlu0 %v1324, 96
        %v3895 = vpop.permute.xlu0 %3894
        %vm3896 = vcmp.lt.s32.totalorder %v1391, 96
        %v3897 = vsel %vm3896, %v3881, %v3889
        %v3898 = vsel %vm3896, %v3883, %v3891
        %v3899 = vsel %vm3896, %v3885, %v3893
        %v3900 = vsel %vm3896, %v3887, %v3895
        %v3901 = vsel %vm3896, %v3873, %v3881
        %v3902 = vsel %vm3896, %v3875, %v3883
        %v3903 = vsel %vm3896, %v3877, %v3885
        %v3904 = vsel %vm3896, %v3879, %v3887
        %v3905 = vsel %vm3896, %v3865, %v3873
        %v3906 = vsel %vm3896, %v3867, %v3875
        %v3907 = vsel %vm3896, %v3869, %v3877
        %v3908 = vsel %vm3896, %v3871, %v3879
        %v3909 = vsel %vm3896, %v3857, %v3865
        %v3910 = vsel %vm3896, %v3859, %v3867
        %v3911 = vsel %vm3896, %v3861, %v3869
        %v3912 = vsel %vm3896, %v3863, %v3871
        %v3913 = vsel %vm3896, %v3849, %v3857
        %v3914 = vsel %vm3896, %v3851, %v3859
        %v3915 = vsel %vm3896, %v3853, %v3861
        %v3916 = vsel %vm3896, %v3855, %v3863
        %v3917 = vsel %vm3896, %v3841, %v3849
        %v3918 = vsel %vm3896, %v3843, %v3851
        %v3919 = vsel %vm3896, %v3845, %v3853
        %v3920 = vsel %vm3896, %v3847, %v3855
        %v3921 = vsel %vm3896, %v3833, %v3841
        %v3922 = vsel %vm3896, %v3835, %v3843
        %v3923 = vsel %vm3896, %v3837, %v3845
        %v3924 = vsel %vm3896, %v3839, %v3847
        %v3925 = vsel %vm3896, %v3889, %v3833
        %v3926 = vsel %vm3896, %v3891, %v3835
        %v3927 = vsel %vm3896, %v3893, %v3837
        %v3928 = vsel %vm3896, %v3895, %v3839
        %s3929 = scalar_lea.vmem [#allocation8], 56
        %v3930 = vld [vmem:[%s3929] sm:$0xff]
        %v3932 = vlaneseq
        %v3933 = vshrl.u32 %v3932, 7
        %v3934 = vsub.s32 0, %v3933
        %v3935 = vrot.slane %v3930, %v3934
        %v3936 = vlaneseq
        %v3937 = vshrl.u32 %v3936, 7
        %v3938 = vsub.s32 1, %v3937
        %v3939 = vrot.slane %v3930, %v3938
        %v3940 = vlaneseq
        %v3941 = vshrl.u32 %v3940, 7
        %v3942 = vsub.s32 2, %v3941
        %v3943 = vrot.slane %v3930, %v3942
        %v3944 = vlaneseq
        %v3945 = vshrl.u32 %v3944, 7
        %v3946 = vsub.s32 3, %v3945
        %v3947 = vrot.slane %v3930, %v3946
        %v3948 = vlaneseq
        %v3949 = vshrl.u32 %v3948, 7
        %v3950 = vsub.s32 4, %v3949
        %v3951 = vrot.slane %v3930, %v3950
        %v3952 = vlaneseq
        %v3953 = vshrl.u32 %v3952, 7
        %v3954 = vsub.s32 5, %v3953
        %v3955 = vrot.slane %v3930, %v3954
        %v3956 = vlaneseq
        %v3957 = vshrl.u32 %v3956, 7
        %v3958 = vsub.s32 6, %v3957
        %v3959 = vrot.slane %v3930, %v3958
        %v3960 = vlaneseq
        %v3961 = vshrl.u32 %v3960, 7
        %v3962 = vsub.s32 7, %v3961
        %v3963 = vrot.slane %v3930, %v3962
        %v3972 = vmul.f32 %v3921, %v3935
        %v3973 = vmul.f32 %v3917, %v3939
        %v3974 = vmul.f32 %v3913, %v3943
        %v3975 = vmul.f32 %v3909, %v3947
        %v3976 = vmul.f32 %v3905, %v3951
        %v3977 = vmul.f32 %v3901, %v3955
        %v3978 = vmul.f32 %v3897, %v3959
        %v3979 = vmul.f32 %v3925, %v3963
        %v3980 = vmul.f32 %v3922, %v3935
        %v3981 = vmul.f32 %v3918, %v3939
        %v3982 = vmul.f32 %v3914, %v3943
        %v3983 = vmul.f32 %v3910, %v3947
        %v3984 = vmul.f32 %v3906, %v3951
        %v3985 = vmul.f32 %v3902, %v3955
        %v3986 = vmul.f32 %v3898, %v3959
        %v3987 = vmul.f32 %v3926, %v3963
        %v3988 = vmul.f32 %v3923, %v3935
        %v3989 = vmul.f32 %v3919, %v3939
        %v3990 = vmul.f32 %v3915, %v3943
        %v3991 = vmul.f32 %v3911, %v3947
        %v3992 = vmul.f32 %v3907, %v3951
        %v3993 = vmul.f32 %v3903, %v3955
        %v3994 = vmul.f32 %v3899, %v3959
        %v3995 = vmul.f32 %v3927, %v3963
        %v3996 = vmul.f32 %v3924, %v3935
        %v3997 = vmul.f32 %v3920, %v3939
        %v3998 = vmul.f32 %v3916, %v3943
        %v3999 = vmul.f32 %v3912, %v3947
        %v4000 = vmul.f32 %v3908, %v3951
        %v4001 = vmul.f32 %v3904, %v3955
        %v4002 = vmul.f32 %v3900, %v3959
        %v4003 = vmul.f32 %v3928, %v3963
        %s4004 = scalar_lea.vmem [#allocation7], 56
        %v4005 = vld [vmem:[%s4004] sm:$0xf]
        %v4006 = vld [vmem:[%s4004 + $0x4] sm:$0xf]
        %v4007 = vpack.c.bf16 %v3980, %v3972
        %v4008 = vpack.c.bf16 %v3981, %v3973
        %v4009 = vpack.c.bf16 %v3982, %v3974
        %v4010 = vpack.c.bf16 %v3983, %v3975
        %v4011 = vpack.c.bf16 %v3984, %v3976
        %v4012 = vpack.c.bf16 %v3985, %v3977
        %v4013 = vpack.c.bf16 %v3986, %v3978
        %v4014 = vpack.c.bf16 %v3987, %v3979
        %v4015 = vpack.c.bf16 %v3996, %v3988
        %v4016 = vpack.c.bf16 %v3997, %v3989
        %v4017 = vpack.c.bf16 %v3998, %v3990
        %v4018 = vpack.c.bf16 %v3999, %v3991
        %v4019 = vpack.c.bf16 %v4000, %v3992
        %v4020 = vpack.c.bf16 %v4001, %v3993
        %v4021 = vpack.c.bf16 %v4002, %v3994
        %v4022 = vpack.c.bf16 %v4003, %v3995
        %v4025 = vunpack.c.l.b16 %v4005
        %v4026 = vunpack.c.l.b16 %v4006
        %v4027 = vpack.c.b16 %v4026, %v4025
        %v4029 = vsel %vm1713, %v4027, 0
        %4031 = vmatprep.subr.bf16.mxu0 %v4008
        %4032 = vmatpush1.bf16.msra.mxu0 %v4007
        %4033 = vmatprep.subr.bf16.mxu0 %v4016
        %4034 = vmatpush1.bf16.msra.mxu0 %v4015
        %4035 = vmatprep.subr.bf16.mxu0 0
        %4036 = vmatpush1.bf16.msra.mxu0 0
        %4037 = vmatprep.subr.bf16.mxu0 0
        %4038 = vmatpush1.bf16.msra.mxu0 0
        %4039 = vmatprep.subr.bf16.mxu0 0
        %4040 = vmatpush1.bf16.msra.mxu0 0
        %4041 = vmatprep.subr.bf16.mxu0 0
        %4042 = vmatpush1.bf16.msra.mxu0 0
        %4043 = vmatprep.subr.bf16.mxu0 0
        %4044 = vmatpush1.bf16.msra.mxu0 0
        %4045 = vmatprep.subr.bf16.mxu0 0
        %4046 = vmatpush1.bf16.msra.mxu0 0
        %4047 = vmatprep.subr.bf16.mxu0 0
        %4048 = vmatpush1.bf16.msra.mxu0 0
        %4049 = vmatprep.subr.bf16.mxu0 0
        %4050 = vmatpush1.bf16.msra.mxu0 0
        %4051 = vmatprep.subr.bf16.mxu0 0
        %4052 = vmatpush1.bf16.msra.mxu0 0
        %4053 = vmatprep.subr.bf16.mxu0 0
        %4054 = vmatpush1.bf16.msra.mxu0 0
        %4055 = vmatprep.subr.bf16.mxu0 0
        %4056 = vmatpush1.bf16.msra.mxu0 0
        %4057 = vmatprep.subr.bf16.mxu0 0
        %4058 = vmatpush1.bf16.msra.mxu0 0
        %4059 = vmatprep.subr.bf16.mxu0 0
        %4060 = vmatpush1.bf16.msra.mxu0 0
        %4061 = vmatprep.subr.bf16.mxu0 0
        %4062 = vmatpush1.bf16.msra.mxu0 0
        %4063 = vmatprep.mubr.bf16.mxu0 0
        %4064 = vmatmul.mubr.bf16.gmra.mrb[0].mxu0 %v4029
        %v4065 = vpop.f32.mrb[0].mxu0
        %v4066 = vadd.f32 0.0, %v4065
        %v4067 = vpop.f32.mrb[0].mxu0
        %v4068 = vadd.f32 0.0, %v4067
        %v4069 = vpop.f32.mrb[0].mxu0
        %v4070 = vadd.f32 0.0, %v4069
        %v4071 = vpop.f32.mrb[0].mxu0
        %v4072 = vadd.f32 0.0, %v4071
        %4073 = vdwg.mxu0
        %4074 = vmatprep.subr.bf16.mxu0 %v4010
        %4075 = vmatpush1.bf16.msra.mxu0 %v4009
        %4076 = vmatprep.subr.bf16.mxu0 %v4018
        %4077 = vmatpush1.bf16.msra.mxu0 %v4017
        %4078 = vmatprep.subr.bf16.mxu0 0
        %4079 = vmatpush1.bf16.msra.mxu0 0
        %4080 = vmatprep.subr.bf16.mxu0 0
        %4081 = vmatpush1.bf16.msra.mxu0 0
        %4082 = vmatprep.subr.bf16.mxu0 0
        %4083 = vmatpush1.bf16.msra.mxu0 0
        %4084 = vmatprep.subr.bf16.mxu0 0
        %4085 = vmatpush1.bf16.msra.mxu0 0
        %4086 = vmatprep.subr.bf16.mxu0 0
        %4087 = vmatpush1.bf16.msra.mxu0 0
        %4088 = vmatprep.subr.bf16.mxu0 0
        %4089 = vmatpush1.bf16.msra.mxu0 0
        %4090 = vmatprep.subr.bf16.mxu0 0
        %4091 = vmatpush1.bf16.msra.mxu0 0
        %4092 = vmatprep.subr.bf16.mxu0 0
        %4093 = vmatpush1.bf16.msra.mxu0 0
        %4094 = vmatprep.subr.bf16.mxu0 0
        %4095 = vmatpush1.bf16.msra.mxu0 0
        %4096 = vmatprep.subr.bf16.mxu0 0
        %4097 = vmatpush1.bf16.msra.mxu0 0
        %4098 = vmatprep.subr.bf16.mxu0 0
        %4099 = vmatpush1.bf16.msra.mxu0 0
        %4100 = vmatprep.subr.bf16.mxu0 0
        %4101 = vmatpush1.bf16.msra.mxu0 0
        %4102 = vmatprep.subr.bf16.mxu0 0
        %4103 = vmatpush1.bf16.msra.mxu0 0
        %4104 = vmatprep.subr.bf16.mxu0 0
        %4105 = vmatpush1.bf16.msra.mxu0 0
        %4106 = vmatprep.mubr.bf16.mxu0 0
        %4107 = vmatmul.mubr.bf16.gmra.mrb[0].mxu0 %v4029
        %v4108 = vpop.f32.mrb[0].mxu0
        %v4109 = vadd.f32 0.0, %v4108
        %v4110 = vpop.f32.mrb[0].mxu0
        %v4111 = vadd.f32 0.0, %v4110
        %v4112 = vpop.f32.mrb[0].mxu0
        %v4113 = vadd.f32 0.0, %v4112
        %v4114 = vpop.f32.mrb[0].mxu0
        %v4115 = vadd.f32 0.0, %v4114
        %4116 = vdwg.mxu0
        %4117 = vmatprep.subr.bf16.mxu0 %v4012
        %4118 = vmatpush1.bf16.msra.mxu0 %v4011
        %4119 = vmatprep.subr.bf16.mxu0 %v4020
        %4120 = vmatpush1.bf16.msra.mxu0 %v4019
        %4121 = vmatprep.subr.bf16.mxu0 0
        %4122 = vmatpush1.bf16.msra.mxu0 0
        %4123 = vmatprep.subr.bf16.mxu0 0
        %4124 = vmatpush1.bf16.msra.mxu0 0
        %4125 = vmatprep.subr.bf16.mxu0 0
        %4126 = vmatpush1.bf16.msra.mxu0 0
        %4127 = vmatprep.subr.bf16.mxu0 0
        %4128 = vmatpush1.bf16.msra.mxu0 0
        %4129 = vmatprep.subr.bf16.mxu0 0
        %4130 = vmatpush1.bf16.msra.mxu0 0
        %4131 = vmatprep.subr.bf16.mxu0 0
        %4132 = vmatpush1.bf16.msra.mxu0 0
        %4133 = vmatprep.subr.bf16.mxu0 0
        %4134 = vmatpush1.bf16.msra.mxu0 0
        %4135 = vmatprep.subr.bf16.mxu0 0
        %4136 = vmatpush1.bf16.msra.mxu0 0
        %4137 = vmatprep.subr.bf16.mxu0 0
        %4138 = vmatpush1.bf16.msra.mxu0 0
        %4139 = vmatprep.subr.bf16.mxu0 0
        %4140 = vmatpush1.bf16.msra.mxu0 0
        %4141 = vmatprep.subr.bf16.mxu0 0
        %4142 = vmatpush1.bf16.msra.mxu0 0
        %4143 = vmatprep.subr.bf16.mxu0 0
        %4144 = vmatpush1.bf16.msra.mxu0 0
        %4145 = vmatprep.subr.bf16.mxu0 0
        %4146 = vmatpush1.bf16.msra.mxu0 0
        %4147 = vmatprep.subr.bf16.mxu0 0
        %4148 = vmatpush1.bf16.msra.mxu0 0
        %4149 = vmatprep.mubr.bf16.mxu0 0
        %4150 = vmatmul.mubr.bf16.gmra.mrb[0].mxu0 %v4029
        %v4151 = vpop.f32.mrb[0].mxu0
        %v4152 = vadd.f32 0.0, %v4151
        %v4153 = vpop.f32.mrb[0].mxu0
        %v4154 = vadd.f32 0.0, %v4153
        %v4155 = vpop.f32.mrb[0].mxu0
        %v4156 = vadd.f32 0.0, %v4155
        %v4157 = vpop.f32.mrb[0].mxu0
        %v4158 = vadd.f32 0.0, %v4157
        %4159 = vdwg.mxu0
        %4160 = vmatprep.subr.bf16.mxu0 %v4014
        %4161 = vmatpush1.bf16.msra.mxu0 %v4013
        %4162 = vmatprep.subr.bf16.mxu0 %v4022
        %4163 = vmatpush1.bf16.msra.mxu0 %v4021
        %4164 = vmatprep.subr.bf16.mxu0 0
        %4165 = vmatpush1.bf16.msra.mxu0 0
        %4166 = vmatprep.subr.bf16.mxu0 0
        %4167 = vmatpush1.bf16.msra.mxu0 0
        %4168 = vmatprep.subr.bf16.mxu0 0
        %4169 = vmatpush1.bf16.msra.mxu0 0
        %4170 = vmatprep.subr.bf16.mxu0 0
        %4171 = vmatpush1.bf16.msra.mxu0 0
        %4172 = vmatprep.subr.bf16.mxu0 0
        %4173 = vmatpush1.bf16.msra.mxu0 0
        %4174 = vmatprep.subr.bf16.mxu0 0
        %4175 = vmatpush1.bf16.msra.mxu0 0
        %4176 = vmatprep.subr.bf16.mxu0 0
        %4177 = vmatpush1.bf16.msra.mxu0 0
        %4178 = vmatprep.subr.bf16.mxu0 0
        %4179 = vmatpush1.bf16.msra.mxu0 0
        %4180 = vmatprep.subr.bf16.mxu0 0
        %4181 = vmatpush1.bf16.msra.mxu0 0
        %4182 = vmatprep.subr.bf16.mxu0 0
        %4183 = vmatpush1.bf16.msra.mxu0 0
        %4184 = vmatprep.subr.bf16.mxu0 0
        %4185 = vmatpush1.bf16.msra.mxu0 0
        %4186 = vmatprep.subr.bf16.mxu0 0
        %4187 = vmatpush1.bf16.msra.mxu0 0
        %4188 = vmatprep.subr.bf16.mxu0 0
        %4189 = vmatpush1.bf16.msra.mxu0 0
        %4190 = vmatprep.subr.bf16.mxu0 0
        %4191 = vmatpush1.bf16.msra.mxu0 0
        %4192 = vmatprep.mubr.bf16.mxu0 0
        %4193 = vmatmul.mubr.bf16.gmra.mrb[0].mxu0 %v4029
        %v4194 = vpop.f32.mrb[0].mxu0
        %v4195 = vadd.f32 0.0, %v4194
        %v4196 = vpop.f32.mrb[0].mxu0
        %v4197 = vadd.f32 0.0, %v4196
        %v4198 = vpop.f32.mrb[0].mxu0
        %v4199 = vadd.f32 0.0, %v4198
        %v4200 = vpop.f32.mrb[0].mxu0
        %v4201 = vadd.f32 0.0, %v4200
        %4202 = vdwg.mxu0
        %v4203 = vadd.f32 %v3816, %v4066
        %v4204 = vadd.f32 %v3817, %v4068
        %v4205 = vadd.f32 %v3818, %v4109
        %v4206 = vadd.f32 %v3819, %v4111
        %v4207 = vadd.f32 %v3820, %v4152
        %v4208 = vadd.f32 %v3821, %v4154
        %v4209 = vadd.f32 %v3822, %v4195
        %v4210 = vadd.f32 %v3823, %v4197
        %v4211 = vadd.f32 %v3824, %v4070
        %v4212 = vadd.f32 %v3825, %v4072
        %v4213 = vadd.f32 %v3826, %v4113
        %v4214 = vadd.f32 %v3827, %v4115
        %v4215 = vadd.f32 %v3828, %v4156
        %v4216 = vadd.f32 %v3829, %v4158
        %v4217 = vadd.f32 %v3830, %v4199
        %v4218 = vadd.f32 %v3831, %v4201
        %4219 = vrot.lane.b32.xlu0 %v1149, 95
        %v4220 = vpop.permute.xlu0 %4219
        %4221 = vrot.lane.b32.xlu0 %v1153, 95
        %v4222 = vpop.permute.xlu0 %4221
        %4223 = vrot.lane.b32.xlu0 %v1159, 95
        %v4224 = vpop.permute.xlu0 %4223
        %4225 = vrot.lane.b32.xlu0 %v1163, 95
        %v4226 = vpop.permute.xlu0 %4225
        %4227 = vrot.lane.b32.xlu0 %v1151, 95
        %v4228 = vpop.permute.xlu0 %4227
        %4229 = vrot.lane.b32.xlu0 %v1155, 95
        %v4230 = vpop.permute.xlu0 %4229
        %4231 = vrot.lane.b32.xlu0 %v1161, 95
        %v4232 = vpop.permute.xlu0 %4231
        %4233 = vrot.lane.b32.xlu0 %v1165, 95
        %v4234 = vpop.permute.xlu0 %4233
        %4235 = vrot.lane.b32.xlu0 %v1202, 95
        %v4236 = vpop.permute.xlu0 %4235
        %4237 = vrot.lane.b32.xlu0 %v1206, 95
        %v4238 = vpop.permute.xlu0 %4237
        %4239 = vrot.lane.b32.xlu0 %v1212, 95
        %v4240 = vpop.permute.xlu0 %4239
        %4241 = vrot.lane.b32.xlu0 %v1216, 95
        %v4242 = vpop.permute.xlu0 %4241
        %4243 = vrot.lane.b32.xlu0 %v1204, 95
        %v4244 = vpop.permute.xlu0 %4243
        %4245 = vrot.lane.b32.xlu0 %v1208, 95
        %v4246 = vpop.permute.xlu0 %4245
        %4247 = vrot.lane.b32.xlu0 %v1214, 95
        %v4248 = vpop.permute.xlu0 %4247
        %4249 = vrot.lane.b32.xlu0 %v1218, 95
        %v4250 = vpop.permute.xlu0 %4249
        %4251 = vrot.lane.b32.xlu0 %v1255, 95
        %v4252 = vpop.permute.xlu0 %4251
        %4253 = vrot.lane.b32.xlu0 %v1259, 95
        %v4254 = vpop.permute.xlu0 %4253
        %4255 = vrot.lane.b32.xlu0 %v1265, 95
        %v4256 = vpop.permute.xlu0 %4255
        %4257 = vrot.lane.b32.xlu0 %v1269, 95
        %v4258 = vpop.permute.xlu0 %4257
        %4259 = vrot.lane.b32.xlu0 %v1257, 95
        %v4260 = vpop.permute.xlu0 %4259
        %4261 = vrot.lane.b32.xlu0 %v1261, 95
        %v4262 = vpop.permute.xlu0 %4261
        %4263 = vrot.lane.b32.xlu0 %v1267, 95
        %v4264 = vpop.permute.xlu0 %4263
        %4265 = vrot.lane.b32.xlu0 %v1271, 95
        %v4266 = vpop.permute.xlu0 %4265
        %4267 = vrot.lane.b32.xlu0 %v1308, 95
        %v4268 = vpop.permute.xlu0 %4267
        %4269 = vrot.lane.b32.xlu0 %v1312, 95
        %v4270 = vpop.permute.xlu0 %4269
        %4271 = vrot.lane.b32.xlu0 %v1318, 95
        %v4272 = vpop.permute.xlu0 %4271
        %4273 = vrot.lane.b32.xlu0 %v1322, 95
        %v4274 = vpop.permute.xlu0 %4273
        %4275 = vrot.lane.b32.xlu0 %v1310, 95
        %v4276 = vpop.permute.xlu0 %4275
        %4277 = vrot.lane.b32.xlu0 %v1314, 95
        %v4278 = vpop.permute.xlu0 %4277
        %4279 = vrot.lane.b32.xlu0 %v1320, 95
        %v4280 = vpop.permute.xlu0 %4279
        %4281 = vrot.lane.b32.xlu0 %v1324, 95
        %v4282 = vpop.permute.xlu0 %4281
        %vm4283 = vcmp.lt.s32.totalorder %v1391, 95
        %v4284 = vsel %vm4283, %v4268, %v4276
        %v4285 = vsel %vm4283, %v4270, %v4278
        %v4286 = vsel %vm4283, %v4272, %v4280
        %v4287 = vsel %vm4283, %v4274, %v4282
        %v4288 = vsel %vm4283, %v4260, %v4268
        %v4289 = vsel %vm4283, %v4262, %v4270
        %v4290 = vsel %vm4283, %v4264, %v4272
        %v4291 = vsel %vm4283, %v4266, %v4274
        %v4292 = vsel %vm4283, %v4252, %v4260
        %v4293 = vsel %vm4283, %v4254, %v4262
        %v4294 = vsel %vm4283, %v4256, %v4264
        %v4295 = vsel %vm4283, %v4258, %v4266
        %v4296 = vsel %vm4283, %v4244, %v4252
        %v4297 = vsel %vm4283, %v4246, %v4254
        %v4298 = vsel %vm4283, %v4248, %v4256
        %v4299 = vsel %vm4283, %v4250, %v4258
        %v4300 = vsel %vm4283, %v4236, %v4244
        %v4301 = vsel %vm4283, %v4238, %v4246
        %v4302 = vsel %vm4283, %v4240, %v4248
        %v4303 = vsel %vm4283, %v4242, %v4250
        %v4304 = vsel %vm4283, %v4228, %v4236
        %v4305 = vsel %vm4283, %v4230, %v4238
        %v4306 = vsel %vm4283, %v4232, %v4240
        %v4307 = vsel %vm4283, %v4234, %v4242
        %v4308 = vsel %vm4283, %v4220, %v4228
        %v4309 = vsel %vm4283, %v4222, %v4230
        %v4310 = vsel %vm4283, %v4224, %v4232
        %v4311 = vsel %vm4283, %v4226, %v4234
        %v4312 = vsel %vm4283, %v4276, %v4220
        %v4313 = vsel %vm4283, %v4278, %v4222
        %v4314 = vsel %vm4283, %v4280, %v4224
        %v4315 = vsel %vm4283, %v4282, %v4226
        %s4316 = scalar_lea.vmem [#allocation8], 64
        %v4317 = vld [vmem:[%s4316] sm:$0xff]
        %v4319 = vlaneseq
        %v4320 = vshrl.u32 %v4319, 7
        %v4321 = vsub.s32 0, %v4320
        %v4322 = vrot.slane %v4317, %v4321
        %v4323 = vlaneseq
        %v4324 = vshrl.u32 %v4323, 7
        %v4325 = vsub.s32 1, %v4324
        %v4326 = vrot.slane %v4317, %v4325
        %v4327 = vlaneseq
        %v4328 = vshrl.u32 %v4327, 7
        %v4329 = vsub.s32 2, %v4328
        %v4330 = vrot.slane %v4317, %v4329
        %v4331 = vlaneseq
        %v4332 = vshrl.u32 %v4331, 7
        %v4333 = vsub.s32 3, %v4332
        %v4334 = vrot.slane %v4317, %v4333
        %v4335 = vlaneseq
        %v4336 = vshrl.u32 %v4335, 7
        %v4337 = vsub.s32 4, %v4336
        %v4338 = vrot.slane %v4317, %v4337
        %v4339 = vlaneseq
        %v4340 = vshrl.u32 %v4339, 7
        %v4341 = vsub.s32 5, %v4340
        %v4342 = vrot.slane %v4317, %v4341
        %v4343 = vlaneseq
        %v4344 = vshrl.u32 %v4343, 7
        %v4345 = vsub.s32 6, %v4344
        %v4346 = vrot.slane %v4317, %v4345
        %v4347 = vlaneseq
        %v4348 = vshrl.u32 %v4347, 7
        %v4349 = vsub.s32 7, %v4348
        %v4350 = vrot.slane %v4317, %v4349
        %v4359 = vmul.f32 %v4308, %v4322
        %v4360 = vmul.f32 %v4304, %v4326
        %v4361 = vmul.f32 %v4300, %v4330
        %v4362 = vmul.f32 %v4296, %v4334
        %v4363 = vmul.f32 %v4292, %v4338
        %v4364 = vmul.f32 %v4288, %v4342
        %v4365 = vmul.f32 %v4284, %v4346
        %v4366 = vmul.f32 %v4312, %v4350
        %v4367 = vmul.f32 %v4309, %v4322
        %v4368 = vmul.f32 %v4305, %v4326
        %v4369 = vmul.f32 %v4301, %v4330
        %v4370 = vmul.f32 %v4297, %v4334
        %v4371 = vmul.f32 %v4293, %v4338
        %v4372 = vmul.f32 %v4289, %v4342
        %v4373 = vmul.f32 %v4285, %v4346
        %v4374 = vmul.f32 %v4313, %v4350
        %v4375 = vmul.f32 %v4310, %v4322
        %v4376 = vmul.f32 %v4306, %v4326
        %v4377 = vmul.f32 %v4302, %v4330
        %v4378 = vmul.f32 %v4298, %v4334
        %v4379 = vmul.f32 %v4294, %v4338
        %v4380 = vmul.f32 %v4290, %v4342
        %v4381 = vmul.f32 %v4286, %v4346
        %v4382 = vmul.f32 %v4314, %v4350
        %v4383 = vmul.f32 %v4311, %v4322
        %v4384 = vmul.f32 %v4307, %v4326
        %v4385 = vmul.f32 %v4303, %v4330
        %v4386 = vmul.f32 %v4299, %v4334
        %v4387 = vmul.f32 %v4295, %v4338
        %v4388 = vmul.f32 %v4291, %v4342
        %v4389 = vmul.f32 %v4287, %v4346
        %v4390 = vmul.f32 %v4315, %v4350
        %s4391 = scalar_lea.vmem [#allocation7], 64
        %v4392 = vld [vmem:[%s4391] sm:$0xf]
        %v4393 = vld [vmem:[%s4391 + $0x4] sm:$0xf]
        %v4394 = vpack.c.bf16 %v4367, %v4359
        %v4395 = vpack.c.bf16 %v4368, %v4360
        %v4396 = vpack.c.bf16 %v4369, %v4361
        %v4397 = vpack.c.bf16 %v4370, %v4362
        %v4398 = vpack.c.bf16 %v4371, %v4363
        %v4399 = vpack.c.bf16 %v4372, %v4364
        %v4400 = vpack.c.bf16 %v4373, %v4365
        %v4401 = vpack.c.bf16 %v4374, %v4366
        %v4402 = vpack.c.bf16 %v4383, %v4375
        %v4403 = vpack.c.bf16 %v4384, %v4376
        %v4404 = vpack.c.bf16 %v4385, %v4377
        %v4405 = vpack.c.bf16 %v4386, %v4378
        %v4406 = vpack.c.bf16 %v4387, %v4379
        %v4407 = vpack.c.bf16 %v4388, %v4380
        %v4408 = vpack.c.bf16 %v4389, %v4381
        %v4409 = vpack.c.bf16 %v4390, %v4382
        %v4412 = vunpack.c.l.b16 %v4392
        %v4413 = vunpack.c.l.b16 %v4393
        %v4414 = vpack.c.b16 %v4413, %v4412
        %v4416 = vsel %vm1713, %v4414, 0
        %4418 = vmatprep.subr.bf16.mxu0 %v4395
        %4419 = vmatpush1.bf16.msra.mxu0 %v4394
        %4420 = vmatprep.subr.bf16.mxu0 %v4403
        %4421 = vmatpush1.bf16.msra.mxu0 %v4402
        %4422 = vmatprep.subr.bf16.mxu0 0
        %4423 = vmatpush1.bf16.msra.mxu0 0
        %4424 = vmatprep.subr.bf16.mxu0 0
        %4425 = vmatpush1.bf16.msra.mxu0 0
        %4426 = vmatprep.subr.bf16.mxu0 0
        %4427 = vmatpush1.bf16.msra.mxu0 0
        %4428 = vmatprep.subr.bf16.mxu0 0
        %4429 = vmatpush1.bf16.msra.mxu0 0
        %4430 = vmatprep.subr.bf16.mxu0 0
        %4431 = vmatpush1.bf16.msra.mxu0 0
        %4432 = vmatprep.subr.bf16.mxu0 0
        %4433 = vmatpush1.bf16.msra.mxu0 0
        %4434 = vmatprep.subr.bf16.mxu0 0
        %4435 = vmatpush1.bf16.msra.mxu0 0
        %4436 = vmatprep.subr.bf16.mxu0 0
        %4437 = vmatpush1.bf16.msra.mxu0 0
        %4438 = vmatprep.subr.bf16.mxu0 0
        %4439 = vmatpush1.bf16.msra.mxu0 0
        %4440 = vmatprep.subr.bf16.mxu0 0
        %4441 = vmatpush1.bf16.msra.mxu0 0
        %4442 = vmatprep.subr.bf16.mxu0 0
        %4443 = vmatpush1.bf16.msra.mxu0 0
        %4444 = vmatprep.subr.bf16.mxu0 0
        %4445 = vmatpush1.bf16.msra.mxu0 0
        %4446 = vmatprep.subr.bf16.mxu0 0
        %4447 = vmatpush1.bf16.msra.mxu0 0
        %4448 = vmatprep.subr.bf16.mxu0 0
        %4449 = vmatpush1.bf16.msra.mxu0 0
        %4450 = vmatprep.mubr.bf16.mxu0 0
        %4451 = vmatmul.mubr.bf16.gmra.mrb[0].mxu0 %v4416
        %v4452 = vpop.f32.mrb[0].mxu0
        %v4453 = vadd.f32 0.0, %v4452
        %v4454 = vpop.f32.mrb[0].mxu0
        %v4455 = vadd.f32 0.0, %v4454
        %v4456 = vpop.f32.mrb[0].mxu0
        %v4457 = vadd.f32 0.0, %v4456
        %v4458 = vpop.f32.mrb[0].mxu0
        %v4459 = vadd.f32 0.0, %v4458
        %4460 = vdwg.mxu0
        %4461 = vmatprep.subr.bf16.mxu0 %v4397
        %4462 = vmatpush1.bf16.msra.mxu0 %v4396
        %4463 = vmatprep.subr.bf16.mxu0 %v4405
        %4464 = vmatpush1.bf16.msra.mxu0 %v4404
        %4465 = vmatprep.subr.bf16.mxu0 0
        %4466 = vmatpush1.bf16.msra.mxu0 0
        %4467 = vmatprep.subr.bf16.mxu0 0
        %4468 = vmatpush1.bf16.msra.mxu0 0
        %4469 = vmatprep.subr.bf16.mxu0 0
        %4470 = vmatpush1.bf16.msra.mxu0 0
        %4471 = vmatprep.subr.bf16.mxu0 0
        %4472 = vmatpush1.bf16.msra.mxu0 0
        %4473 = vmatprep.subr.bf16.mxu0 0
        %4474 = vmatpush1.bf16.msra.mxu0 0
        %4475 = vmatprep.subr.bf16.mxu0 0
        %4476 = vmatpush1.bf16.msra.mxu0 0
        %4477 = vmatprep.subr.bf16.mxu0 0
        %4478 = vmatpush1.bf16.msra.mxu0 0
        %4479 = vmatprep.subr.bf16.mxu0 0
        %4480 = vmatpush1.bf16.msra.mxu0 0
        %4481 = vmatprep.subr.bf16.mxu0 0
        %4482 = vmatpush1.bf16.msra.mxu0 0
        %4483 = vmatprep.subr.bf16.mxu0 0
        %4484 = vmatpush1.bf16.msra.mxu0 0
        %4485 = vmatprep.subr.bf16.mxu0 0
        %4486 = vmatpush1.bf16.msra.mxu0 0
        %4487 = vmatprep.subr.bf16.mxu0 0
        %4488 = vmatpush1.bf16.msra.mxu0 0
        %4489 = vmatprep.subr.bf16.mxu0 0
        %4490 = vmatpush1.bf16.msra.mxu0 0
        %4491 = vmatprep.subr.bf16.mxu0 0
        %4492 = vmatpush1.bf16.msra.mxu0 0
        %4493 = vmatprep.mubr.bf16.mxu0 0
        %4494 = vmatmul.mubr.bf16.gmra.mrb[0].mxu0 %v4416
        %v4495 = vpop.f32.mrb[0].mxu0
        %v4496 = vadd.f32 0.0, %v4495
        %v4497 = vpop.f32.mrb[0].mxu0
        %v4498 = vadd.f32 0.0, %v4497
        %v4499 = vpop.f32.mrb[0].mxu0
        %v4500 = vadd.f32 0.0, %v4499
        %v4501 = vpop.f32.mrb[0].mxu0
        %v4502 = vadd.f32 0.0, %v4501
        %4503 = vdwg.mxu0
        %4504 = vmatprep.subr.bf16.mxu0 %v4399
        %4505 = vmatpush1.bf16.msra.mxu0 %v4398
        %4506 = vmatprep.subr.bf16.mxu0 %v4407
        %4507 = vmatpush1.bf16.msra.mxu0 %v4406
        %4508 = vmatprep.subr.bf16.mxu0 0
        %4509 = vmatpush1.bf16.msra.mxu0 0
        %4510 = vmatprep.subr.bf16.mxu0 0
        %4511 = vmatpush1.bf16.msra.mxu0 0
        %4512 = vmatprep.subr.bf16.mxu0 0
        %4513 = vmatpush1.bf16.msra.mxu0 0
        %4514 = vmatprep.subr.bf16.mxu0 0
        %4515 = vmatpush1.bf16.msra.mxu0 0
        %4516 = vmatprep.subr.bf16.mxu0 0
        %4517 = vmatpush1.bf16.msra.mxu0 0
        %4518 = vmatprep.subr.bf16.mxu0 0
        %4519 = vmatpush1.bf16.msra.mxu0 0
        %4520 = vmatprep.subr.bf16.mxu0 0
        %4521 = vmatpush1.bf16.msra.mxu0 0
        %4522 = vmatprep.subr.bf16.mxu0 0
        %4523 = vmatpush1.bf16.msra.mxu0 0
        %4524 = vmatprep.subr.bf16.mxu0 0
        %4525 = vmatpush1.bf16.msra.mxu0 0
        %4526 = vmatprep.subr.bf16.mxu0 0
        %4527 = vmatpush1.bf16.msra.mxu0 0
        %4528 = vmatprep.subr.bf16.mxu0 0
        %4529 = vmatpush1.bf16.msra.mxu0 0
        %4530 = vmatprep.subr.bf16.mxu0 0
        %4531 = vmatpush1.bf16.msra.mxu0 0
        %4532 = vmatprep.subr.bf16.mxu0 0
        %4533 = vmatpush1.bf16.msra.mxu0 0
        %4534 = vmatprep.subr.bf16.mxu0 0
        %4535 = vmatpush1.bf16.msra.mxu0 0
        %4536 = vmatprep.mubr.bf16.mxu0 0
        %4537 = vmatmul.mubr.bf16.gmra.mrb[0].mxu0 %v4416
        %v4538 = vpop.f32.mrb[0].mxu0
        %v4539 = vadd.f32 0.0, %v4538
        %v4540 = vpop.f32.mrb[0].mxu0
        %v4541 = vadd.f32 0.0, %v4540
        %v4542 = vpop.f32.mrb[0].mxu0
        %v4543 = vadd.f32 0.0, %v4542
        %v4544 = vpop.f32.mrb[0].mxu0
        %v4545 = vadd.f32 0.0, %v4544
        %4546 = vdwg.mxu0
        %4547 = vmatprep.subr.bf16.mxu0 %v4401
        %4548 = vmatpush1.bf16.msra.mxu0 %v4400
        %4549 = vmatprep.subr.bf16.mxu0 %v4409
        %4550 = vmatpush1.bf16.msra.mxu0 %v4408
        %4551 = vmatprep.subr.bf16.mxu0 0
        %4552 = vmatpush1.bf16.msra.mxu0 0
        %4553 = vmatprep.subr.bf16.mxu0 0
        %4554 = vmatpush1.bf16.msra.mxu0 0
        %4555 = vmatprep.subr.bf16.mxu0 0
        %4556 = vmatpush1.bf16.msra.mxu0 0
        %4557 = vmatprep.subr.bf16.mxu0 0
        %4558 = vmatpush1.bf16.msra.mxu0 0
        %4559 = vmatprep.subr.bf16.mxu0 0
        %4560 = vmatpush1.bf16.msra.mxu0 0
        %4561 = vmatprep.subr.bf16.mxu0 0
        %4562 = vmatpush1.bf16.msra.mxu0 0
        %4563 = vmatprep.subr.bf16.mxu0 0
        %4564 = vmatpush1.bf16.msra.mxu0 0
        %4565 = vmatprep.subr.bf16.mxu0 0
        %4566 = vmatpush1.bf16.msra.mxu0 0
        %4567 = vmatprep.subr.bf16.mxu0 0
        %4568 = vmatpush1.bf16.msra.mxu0 0
        %4569 = vmatprep.subr.bf16.mxu0 0
        %4570 = vmatpush1.bf16.msra.mxu0 0
        %4571 = vmatprep.subr.bf16.mxu0 0
        %4572 = vmatpush1.bf16.msra.mxu0 0
        %4573 = vmatprep.subr.bf16.mxu0 0
        %4574 = vmatpush1.bf16.msra.mxu0 0
        %4575 = vmatprep.subr.bf16.mxu0 0
        %4576 = vmatpush1.bf16.msra.mxu0 0
        %4577 = vmatprep.subr.bf16.mxu0 0
        %4578 = vmatpush1.bf16.msra.mxu0 0
        %4579 = vmatprep.mubr.bf16.mxu0 0
        %4580 = vmatmul.mubr.bf16.gmra.mrb[0].mxu0 %v4416
        %v4581 = vpop.f32.mrb[0].mxu0
        %v4582 = vadd.f32 0.0, %v4581
        %v4583 = vpop.f32.mrb[0].mxu0
        %v4584 = vadd.f32 0.0, %v4583
        %v4585 = vpop.f32.mrb[0].mxu0
        %v4586 = vadd.f32 0.0, %v4585
        %v4587 = vpop.f32.mrb[0].mxu0
        %v4588 = vadd.f32 0.0, %v4587
        %4589 = vdwg.mxu0
        %v4590 = vadd.f32 %v4203, %v4453
        %v4591 = vadd.f32 %v4204, %v4455
        %v4592 = vadd.f32 %v4205, %v4496
        %v4593 = vadd.f32 %v4206, %v4498
        %v4594 = vadd.f32 %v4207, %v4539
        %v4595 = vadd.f32 %v4208, %v4541
        %v4596 = vadd.f32 %v4209, %v4582
        %v4597 = vadd.f32 %v4210, %v4584
        %v4598 = vadd.f32 %v4211, %v4457
        %v4599 = vadd.f32 %v4212, %v4459
        %v4600 = vadd.f32 %v4213, %v4500
        %v4601 = vadd.f32 %v4214, %v4502
        %v4602 = vadd.f32 %v4215, %v4543
        %v4603 = vadd.f32 %v4216, %v4545
        %v4604 = vadd.f32 %v4217, %v4586
        %v4605 = vadd.f32 %v4218, %v4588
        %v4606 = vld [vmem:[%s330] sm:$0xff]
        %v4607 = vld [vmem:[%s330 + $0x8] sm:$0xff]
        %4609 = vset.pattern.permute.xlu0 0
        %4610 = vperm.xlu0 %4609, %v4606
        %v4611 = vpop.permute.xlu0 %4610
        %4614 = vset.pattern.permute.xlu0 0
        %4615 = vperm.xlu0 %4614, %v4607
        %v4616 = vpop.permute.xlu0 %4615
        %v4618 = vadd.f32 %v4590, %v4611
        %v4619 = vadd.f32 %v4591, %v4611
        %v4620 = vadd.f32 %v4592, %v4611
        %v4621 = vadd.f32 %v4593, %v4611
        %v4622 = vadd.f32 %v4594, %v4611
        %v4623 = vadd.f32 %v4595, %v4611
        %v4624 = vadd.f32 %v4596, %v4611
        %v4625 = vadd.f32 %v4597, %v4611
        %v4626 = vadd.f32 %v4598, %v4616
        %v4627 = vadd.f32 %v4599, %v4616
        %v4628 = vadd.f32 %v4600, %v4616
        %v4629 = vadd.f32 %v4601, %v4616
        %v4630 = vadd.f32 %v4602, %v4616
        %v4631 = vadd.f32 %v4603, %v4616
        %v4632 = vadd.f32 %v4604, %v4616
        %v4633 = vadd.f32 %v4605, %v4616
        %vm4634 = vcmp.ge.f32.partialorder %v4618, 0.0
        %vm4635 = vcmp.ge.f32.partialorder %v4619, 0.0
        %vm4636 = vcmp.ge.f32.partialorder %v4620, 0.0
        %vm4637 = vcmp.ge.f32.partialorder %v4621, 0.0
        %vm4638 = vcmp.ge.f32.partialorder %v4622, 0.0
        %vm4639 = vcmp.ge.f32.partialorder %v4623, 0.0
        %vm4640 = vcmp.ge.f32.partialorder %v4624, 0.0
        %vm4641 = vcmp.ge.f32.partialorder %v4625, 0.0
        %vm4642 = vcmp.ge.f32.partialorder %v4626, 0.0
        %vm4643 = vcmp.ge.f32.partialorder %v4627, 0.0
        %vm4644 = vcmp.ge.f32.partialorder %v4628, 0.0
        %vm4645 = vcmp.ge.f32.partialorder %v4629, 0.0
        %vm4646 = vcmp.ge.f32.partialorder %v4630, 0.0
        %vm4647 = vcmp.ge.f32.partialorder %v4631, 0.0
        %vm4648 = vcmp.ge.f32.partialorder %v4632, 0.0
        %vm4649 = vcmp.ge.f32.partialorder %v4633, 0.0
        %v4650 = vmul.f32 %v4618, 0.01
        %v4651 = vmul.f32 %v4619, 0.01
        %v4652 = vmul.f32 %v4620, 0.01
        %v4653 = vmul.f32 %v4621, 0.01
        %v4654 = vmul.f32 %v4622, 0.01
        %v4655 = vmul.f32 %v4623, 0.01
        %v4656 = vmul.f32 %v4624, 0.01
        %v4657 = vmul.f32 %v4625, 0.01
        %v4658 = vmul.f32 %v4626, 0.01
        %v4659 = vmul.f32 %v4627, 0.01
        %v4660 = vmul.f32 %v4628, 0.01
        %v4661 = vmul.f32 %v4629, 0.01
        %v4662 = vmul.f32 %v4630, 0.01
        %v4663 = vmul.f32 %v4631, 0.01
        %v4664 = vmul.f32 %v4632, 0.01
        %v4665 = vmul.f32 %v4633, 0.01
        %v4666 = vsel %vm4634, %v4618, %v4650
        %v4667 = vsel %vm4635, %v4619, %v4651
        %v4668 = vsel %vm4636, %v4620, %v4652
        %v4669 = vsel %vm4637, %v4621, %v4653
        %v4670 = vsel %vm4638, %v4622, %v4654
        %v4671 = vsel %vm4639, %v4623, %v4655
        %v4672 = vsel %vm4640, %v4624, %v4656
        %v4673 = vsel %vm4641, %v4625, %v4657
        %v4674 = vsel %vm4642, %v4626, %v4658
        %v4675 = vsel %vm4643, %v4627, %v4659
        %v4676 = vsel %vm4644, %v4628, %v4660
        %v4677 = vsel %vm4645, %v4629, %v4661
        %v4678 = vsel %vm4646, %v4630, %v4662
        %v4679 = vsel %vm4647, %v4631, %v4663
        %v4680 = vsel %vm4648, %v4632, %v4664
        %v4681 = vsel %vm4649, %v4633, %v4665
        %4682 = vst [vmem:[%s324] sm:$0xff] %v4666
        %4683 = vst [vmem:[%s324 + $0x8] sm:$0xff] %v4667
        %4684 = vst [vmem:[%s324 + $0x10] sm:$0xff] %v4668
        %4685 = vst [vmem:[%s324 + $0x18] sm:$0xff] %v4669
        %4686 = vst [vmem:[%s324 + $0x20] sm:$0xff] %v4670
        %4687 = vst [vmem:[%s324 + $0x28] sm:$0xff] %v4671
        %4688 = vst [vmem:[%s324 + $0x30] sm:$0xff] %v4672
        %4689 = vst [vmem:[%s324 + $0x38] sm:$0xff] %v4673
        %4690 = vst [vmem:[%s324 + $0x40] sm:$0xff] %v4674
        %4691 = vst [vmem:[%s324 + $0x48] sm:$0xff] %v4675
        %4692 = vst [vmem:[%s324 + $0x50] sm:$0xff] %v4676
        %4693 = vst [vmem:[%s324 + $0x58] sm:$0xff] %v4677
        %4694 = vst [vmem:[%s324 + $0x60] sm:$0xff] %v4678
        %4695 = vst [vmem:[%s324 + $0x68] sm:$0xff] %v4679
        %4696 = vst [vmem:[%s324 + $0x70] sm:$0xff] %v4680
        %4697 = vst [vmem:[%s324 + $0x78] sm:$0xff] %v4681
        %s4698 = sand.u32 %s166, 1
        %s4699 = scalar_lea.sflag [#allocation4], %s4698
        %s4700 = sand.u32 %s166, 1
        %s4701 = smul.addr %s4700, 128
        %s4702 = scalar_lea.vmem [#allocation10], %s4701
        // Predicated region
        $region57: #{tpu_custom_call.1} parent=39 // pred_check
          %p4703 = pneg %p176
        $region58: #{tpu_custom_call.1} parent=39 // pred_check_branch
          %4705 = sbr.rel (%p4703) target = $region60
        $region59: #{tpu_custom_call.1} parent=39 // pred_region
          %s4706 = smul.u32 2, %s29
          %s4708 = ssub.s32 2048, 2048
          %4709 = vsyncadd %s4699, %s4708
          %s4710 = smul.addr %s4706, 8
          %s4711 = smul.addr %s28, 16
          %s4712 = sadd.s32 %s4710, %s4711
          %s4713 = smul.addr %s4712, 128
          %s4714 = scalar_lea.hbm %s5, %s4713
          %s4715 = sshll.u32 %s4702, 4
          %s4716 = int_to_ptr.vmem [resolvable:$true] %s4715
          %4721 = dma.vmem_to_hbm [thread:$0]  %s4716, 2048, %s4714, %s4699, 1024, 1024, 64
        $region60: #{tpu_custom_call.1} parent=39 // pred_fallthru
          _
      $region40: #{tpu_custom_call.1} parent=5 // pred_fallthru
        _
      %p4722 = scmp.le.s32.totalorder 2, %s19
      // Predicated region
      $region61: #{tpu_custom_call.1} parent=5 // pred_check
        %p4723 = pneg %p4722
      $region62: #{tpu_custom_call.1} parent=5 // pred_check_branch
        %4725 = sbr.rel (%p4723) target = $region64
      $region63: #{tpu_custom_call.1} parent=5 // pred_region
        %s4726 = ssub.s32 %s19, 2
        // Predicated region
        $region65: #{tpu_custom_call.1} parent=63 // pred_check
          %p4727 = pneg %p182
        $region66: #{tpu_custom_call.1} parent=63 // pred_check_branch
          %4729 = sbr.rel (%p4727) target = $region68
        $region67: #{tpu_custom_call.1} parent=63 // pred_region
          %s4730 = sand.u32 %s167, 1
          %s4731 = scalar_lea.sflag [#allocation4], %s4730
          %s4732 = sand.u32 %s167, 1
          %s4733 = smul.addr %s4732, 128
          %s4734 = scalar_lea.vmem [#allocation10], %s4733
          %4735 = dma.done %s4731, 2048
        $region68: #{tpu_custom_call.1} parent=63 // pred_fallthru
          _
      $region64: #{tpu_custom_call.1} parent=5 // pred_fallthru
        _
    $region6: #{tpu_custom_call.1} parent=1 // loop_footer
      %s23 = sadd.s32 1, %s19
    $region7: #{tpu_custom_call.1} parent=1 // loop_footer_branch
      %18 = sbr.rel target = $region3
    $region8: #{tpu_custom_call.1} parent=1 // loop_exit
      _
    %4736 = vsyncpa [#allocation3], 1
    %s4737 = scalar_lea.sflag [#allocation3], 1
    %4738 = vsyncpa %s4737, 1
    %4739 = vsyncpa [#allocation6], 1
    %4740 = vsyncpa [#allocation9], 1
    %4741 = vsyncpa [#allocation4], 1
    %s4742 = scalar_lea.sflag [#allocation4], 1
    %4743 = vsyncpa %s4742, 1

</llo_original>
